<compile_context>
chip_gen: v7x
topology: tpu7x:2x2x1
jax: 0.10.0
libtpu: 0.0.40
codegen_flags: <defaults>
</compile_context>

<pallas_src>
import functools

import jax
import jax.numpy as jnp
from jax import lax
from jax.experimental import pallas as pl
from jax.experimental.pallas import tpu as pltpu

HIDDEN = 100


def _round_up(n, m):
    return ((n + m - 1) // m) * m


def _cdiv(a, b):
    return (a + b - 1) // b


# ---------------------------------------------------------------------------
# Kernel
# ---------------------------------------------------------------------------
def _lstm_student_kernel(x_ref, wih1_ref, whh1_ref, b1_ref,
                         w2_ref, b2_ref, wfc_ref, bfc_ref,
                         out_ref,
                         pre1_ref, h1_ref, c1_ref, h2_ref, c2_ref,
                         *, hidden, tc, t_total):
    """grid = (batch_blocks, time_chunks); time axis is serial ('arbitrary')."""
    tch = pl.program_id(1)
    n_t = pl.num_programs(1)
    H = hidden                       # padded hidden size (multiple of 128)
    H3, H4 = 3 * H, 4 * H
    TC, B, F = x_ref.shape           # time-chunk, batch block, padded features

    # ---- persistent carry in VMEM scratch; init on the first time chunk ----
    @pl.when(tch == 0)
    def _():
        h1_ref[...] = jnp.zeros_like(h1_ref)
        c1_ref[...] = jnp.zeros_like(c1_ref)
        h2_ref[...] = jnp.zeros_like(h2_ref)
        c2_ref[...] = jnp.zeros_like(c2_ref)

    # ---- hoisted layer-1 input projection for this chunk (one MXU matmul) ----
    x_flat = x_ref[...].reshape(TC * B, F)                       # bf16
    pre1 = (jnp.dot(x_flat, wih1_ref[...],
                    preferred_element_type=jnp.float32) + b1_ref[...])
    pre1_ref[...] = pre1.reshape(TC, B, H4)                      # f32 scratch

    whh1 = whh1_ref[...]             # bf16, resident across the chunk
    w2 = w2_ref[...]                 # bf16
    b2 = b2_ref[...]                 # f32

    needs_mask = (t_total % tc) != 0     # static: last chunk has padded steps

    # TODO(synk): advanced options not taken: layer-skewed single-matmul step
    # and pinning the recurrent RHS via pltpu.matmul_push_rhs/acc_lhs/pop.
    def step(t, carry):
        h1, c1, h2, c2 = carry

        # layer 1: recurrent matmul only (input projection precomputed).
        g1 = pre1_ref[t] + jnp.dot(h1.astype(jnp.bfloat16), whh1,
                                   preferred_element_type=jnp.float32)
        s1 = jax.nn.sigmoid(g1[:, :H3])        # (i, f, o) in one contiguous slab
        gg1 = jnp.tanh(g1[:, H3:])             # g
        c1n = s1[:, H:2 * H] * c1 + s1[:, :H] * gg1
        h1n = s1[:, 2 * H:H3] * jnp.tanh(c1n)

        # layer 2: single fused matmul on [h1n, h2] vs pre-concat weights.
        hcat = jnp.concatenate([h1n, h2], axis=1).astype(jnp.bfloat16)
        g2 = jnp.dot(hcat, w2, preferred_element_type=jnp.float32) + b2
        s2 = jax.nn.sigmoid(g2[:, :H3])
        gg2 = jnp.tanh(g2[:, H3:])
        c2n = s2[:, H:2 * H] * c2 + s2[:, :H] * gg2
        h2n = s2[:, 2 * H:H3] * jnp.tanh(c2n)

        if needs_mask:
            valid = (tch * tc + t) < t_total
            h1n = jnp.where(valid, h1n, h1)
            c1n = jnp.where(valid, c1n, c1)
            h2n = jnp.where(valid, h2n, h2)
            c2n = jnp.where(valid, c2n, c2)
        return (h1n, c1n, h2n, c2n)

    carry0 = (h1_ref[...], c1_ref[...], h2_ref[...], c2_ref[...])
    unroll = True if tc <= 8 else 8          # bounded live ranges, LLO visibility
    carry = lax.fori_loop(0, tc, step, carry0, unroll=unroll)
    h1_ref[...] = carry[0]
    c1_ref[...] = carry[1]
    h2_ref[...] = carry[2]
    c2_ref[...] = carry[3]

    # ---- final Linear on out[:, -1, :] (lane-dense padded output) ----
    @pl.when(tch == n_t - 1)
    def _():
        out_ref[...] = (jnp.dot(carry[2].astype(jnp.bfloat16), wfc_ref[...],
                                preferred_element_type=jnp.float32)
                        + bfc_ref[...]).astype(out_ref.dtype)


# ---------------------------------------------------------------------------
# Weight preparation (done once, cached across calls)
# ---------------------------------------------------------------------------
def _prep_gate_weight(w, H, Hp, in_pad):
    """w: [4H, in] PyTorch (i,f,g,o) row order -> [in_pad, 4*Hp] in (i,f,o,g)."""
    wi, wf, wg, wo = w[:H], w[H:2 * H], w[2 * H:3 * H], w[3 * H:]
    cols = []
    for blk in (wi, wf, wo, wg):
        blk_t = blk.T.astype(jnp.float32)                        # [in, H]
        cols.append(jnp.pad(blk_t, ((0, in_pad - blk_t.shape[0]), (0, Hp - H))))
    return jnp.concatenate(cols, axis=1)                         # [in_pad, 4*Hp]


def _prep_gate_bias(b, H, Hp):
    bi, bf, bg, bo = b[:H], b[H:2 * H], b[2 * H:3 * H], b[3 * H:]
    parts = [jnp.pad(p.astype(jnp.float32), (0, Hp - H)) for p in (bi, bf, bo, bg)]
    return jnp.concatenate(parts).reshape(1, 4 * Hp)


def prepare_params(params):
    """Pad/transpose/gate-reorder/concat the LSTM weights and cast matmul
    operands to bf16. Call once and reuse across forward calls."""
    H = HIDDEN
    Hp = _round_up(H, 128)
    F = params["fc_w"].shape[0]
    Fp = _round_up(F, 128)

    wih1 = _prep_gate_weight(params["w_ih_l0"], H, Hp, Fp).astype(jnp.bfloat16)
    whh1 = _prep_gate_weight(params["w_hh_l0"], H, Hp, Hp).astype(jnp.bfloat16)
    b1 = _prep_gate_bias(params["b_ih_l0"] + params["b_hh_l0"], H, Hp)

    wih2 = _prep_gate_weight(params["w_ih_l1"], H, Hp, Hp)
    whh2 = _prep_gate_weight(params["w_hh_l1"], H, Hp, Hp)
    w2 = jnp.concatenate([wih2, whh2], axis=0).astype(jnp.bfloat16)  # [2Hp,4Hp]
    b2 = _prep_gate_bias(params["b_ih_l1"] + params["b_hh_l1"], H, Hp)

    wfc = jnp.pad(params["fc_w"].T.astype(jnp.float32),
                  ((0, Hp - H), (0, Fp - F))).astype(jnp.bfloat16)   # [Hp, Fp]
    bfc = jnp.pad(params["fc_b"].astype(jnp.float32), (0, Fp - F)).reshape(1, Fp)

    return {"wih1": wih1, "whh1": whh1, "b1": b1,
            "w2": w2, "b2": b2, "wfc": wfc, "bfc": bfc}


# ---------------------------------------------------------------------------
# Forward wrapper
# ---------------------------------------------------------------------------
@functools.partial(jax.jit, static_argnames=("train", "inp_dropout", "time_chunk"))
def lstm_student_forward(x, prepped, rng=None, *, train=True, inp_dropout=0.3,
                         time_chunk=128):
    """x: [B, T, F] (batch_first, like the PyTorch module). Returns [B, F]."""
    B, T, F = x.shape
    H = HIDDEN
    Hp = _round_up(H, 128)         # 100 -> 128
    Fp = _round_up(F, 128)
    Bp = _round_up(B, 8)
    BB = min(Bp, 64)               # batch tile (multiple of 8); >1 tile -> megacore
    Bp = _round_up(Bp, BB)
    n_b = Bp // BB
    TC = max(1, min(int(time_chunk), T))
    n_t = _cdiv(T, TC)
    Tp = n_t * TC

    x = x.astype(jnp.float32)
    if train and float(inp_dropout) > 0.0:
        # TODO(synk): dropout matches F.dropout semantics (zero w.p. p, scale
        # 1/(1-p)) via jax.random, not torch's RNG stream.
        if rng is None:
            rng = jax.random.PRNGKey(0)
        keep = jax.random.bernoulli(rng, 1.0 - float(inp_dropout), x.shape)
        x = jnp.where(keep, x * (1.0 / (1.0 - float(inp_dropout))), 0.0)

    # pad (batch, time, features), go time-major, cast bf16 for the MXU; under
    # jit this fuses with the dropout mask into one elementwise pass.
    xp = jnp.pad(x, ((0, Bp - B), (0, Tp - T), (0, Fp - F)))
    x_tm = jnp.transpose(xp, (1, 0, 2)).astype(jnp.bfloat16)         # [Tp,Bp,Fp]

    kernel = functools.partial(_lstm_student_kernel, hidden=Hp, tc=TC, t_total=T)
    const2 = lambda b, t: (0, 0)

    # VMEM budget: resident bf16 weights + double-buffered x chunk + scratch.
    w_bytes = (Fp * 4 * Hp + Hp * 4 * Hp + 2 * Hp * 4 * Hp + Hp * Fp) * 2 \
              + (3 * 4 * Hp + Fp) * 4
    x_bytes = TC * BB * Fp * 2
    pre1_bytes = TC * BB * 4 * Hp * 4
    misc_bytes = 4 * BB * Hp * 4 + BB * Fp * 4
    vmem_limit = 2 * (2 * (w_bytes + x_bytes) + pre1_bytes + misc_bytes) + (2 << 20)
    vmem_limit = int(min(max(vmem_limit, 16 << 20), 48 << 20))

    out = pl.pallas_call(
        kernel,
        out_shape=jax.ShapeDtypeStruct((Bp, Fp), jnp.float32),
        grid_spec=pltpu.PrefetchScalarGridSpec(
            num_scalar_prefetch=0,
            grid=(n_b, n_t),
            in_specs=[
                pl.BlockSpec((TC, BB, Fp), lambda b, t: (t, b, 0)),   # x chunk
                pl.BlockSpec((Fp, 4 * Hp), const2),                   # wih1
                pl.BlockSpec((Hp, 4 * Hp), const2),                   # whh1
                pl.BlockSpec((1, 4 * Hp), const2),                    # b1
                pl.BlockSpec((2 * Hp, 4 * Hp), const2),               # w2
                pl.BlockSpec((1, 4 * Hp), const2),                    # b2
                pl.BlockSpec((Hp, Fp), const2),                       # wfc
                pl.BlockSpec((1, Fp), const2),                        # bfc
            ],
            out_specs=pl.BlockSpec((BB, Fp), lambda b, t: (b, 0)),
            scratch_shapes=[
                pltpu.VMEM((TC, BB, 4 * Hp), jnp.float32),   # pre1 chunk
                pltpu.VMEM((BB, Hp), jnp.float32),           # h1 carry
                pltpu.VMEM((BB, Hp), jnp.float32),           # c1 carry
                pltpu.VMEM((BB, Hp), jnp.float32),           # h2 carry
                pltpu.VMEM((BB, Hp), jnp.float32),           # c2 carry
            ]),
        compiler_params=pltpu.CompilerParams(
            dimension_semantics=("parallel", "arbitrary"),
            vmem_limit_bytes=vmem_limit),
    )(x_tm, prepped["wih1"], prepped["whh1"], prepped["b1"],
      prepped["w2"], prepped["b2"], prepped["wfc"], prepped["bfc"])

    return out[:B, :F]


# ---------------------------------------------------------------------------
# Pure-JAX reference (matmul_dtype=bf16 mimics the kernel's MXU precision)
# ---------------------------------------------------------------------------
def lstm_student_reference(x, params, *, matmul_dtype=jnp.float32):
    B, T, F = x.shape
    H = HIDDEN

    def mm(a, b):
        return jnp.dot(a.astype(matmul_dtype), b.astype(matmul_dtype),
                       preferred_element_type=jnp.float32)

    def cell(xt, h, c, w_ih, w_hh, b):
        g = mm(xt, w_ih.T) + mm(h, w_hh.T) + b
        i = jax.nn.sigmoid(g[:, 0 * H:1 * H])
        f = jax.nn.sigmoid(g[:, 1 * H:2 * H])
        gg = jnp.tanh(g[:, 2 * H:3 * H])
        o = jax.nn.sigmoid(g[:, 3 * H:4 * H])
        c = f * c + i * gg
        h = o * jnp.tanh(c)
        return h, c

    b1 = params["b_ih_l0"] + params["b_hh_l0"]
    b2 = params["b_ih_l1"] + params["b_hh_l1"]
    h1 = c1 = h2 = c2 = jnp.zeros((B, H), jnp.float32)
    for t in range(T):
        h1, c1 = cell(x[:, t, :], h1, c1, params["w_ih_l0"], params["w_hh_l0"], b1)
        h2, c2 = cell(h1, h2, c2, params["w_ih_l1"], params["w_hh_l1"], b2)
    return mm(h2, params["fc_w"].T) + params["fc_b"]


def init_params(key, num_features, hidden=HIDDEN):
    ks = jax.random.split(key, 10)
    s = 1.0 / float(hidden) ** 0.5

    def u(k, shape):
        return jax.random.uniform(k, shape, jnp.float32, -s, s)

    return {
        "w_ih_l0": u(ks[0], (4 * hidden, num_features)),
        "w_hh_l0": u(ks[1], (4 * hidden, hidden)),
        "b_ih_l0": u(ks[2], (4 * hidden,)),
        "b_hh_l0": u(ks[3], (4 * hidden,)),
        "w_ih_l1": u(ks[4], (4 * hidden, hidden)),
        "w_hh_l1": u(ks[5], (4 * hidden, hidden)),
        "b_ih_l1": u(ks[6], (4 * hidden,)),
        "b_hh_l1": u(ks[7], (4 * hidden,)),
        "fc_w": u(ks[8], (num_features, hidden)),
        "fc_b": u(ks[9], (num_features,)),
    }


if __name__ == "__main__":
    B, T, NUM_FEATURES = 2, 8, 32
    key = jax.random.PRNGKey(0)
    k_x, k_p, k_d = jax.random.split(key, 3)
    x = jax.random.normal(k_x, (B, T, NUM_FEATURES), dtype=jnp.float32)
    params = init_params(k_p, NUM_FEATURES)
    prepped = prepare_params(params)       # cached, reformatted weights

    # train=True path (input dropout active)
    out_train = lstm_student_forward(x, prepped, k_d, train=True, inp_dropout=0.3)
    jax.block_until_ready(out_train)
    assert out_train.shape == (B, NUM_FEATURES)

    # train=False path, checked against pure-JAX references
    out_eval = lstm_student_forward(x, prepped, None, train=False)
    jax.block_until_ready(out_eval)
    assert out_eval.shape == (B, NUM_FEATURES)

    ref_bf16 = lstm_student_reference(x, params, matmul_dtype=jnp.bfloat16)
    ref_f32 = lstm_student_reference(x, params, matmul_dtype=jnp.float32)
    err_bf16 = float(jnp.max(jnp.abs(out_eval - ref_bf16)))
    err_f32 = float(jnp.max(jnp.abs(out_eval - ref_f32)))
    # tight check vs a reference that matches the kernel's bf16 MXU precision,
    # loose sanity check vs the full-f32 reference.
    assert err_bf16 < 2e-3, f"max abs err vs bf16-matmul reference = {err_bf16}"
    assert err_f32 < 5e-2, f"max abs err vs f32 reference = {err_f32}"

    print("KERNEL_OK")
</pallas_src>

<mosaic_0001>
module attributes {stable_mosaic.version = 11 : i64} {
  func.func @_lstm_student_kernel(%arg0: i32, %arg1: i32, %arg2: memref<8x8x128xbf16, #tpu.memory_space<vmem>>, %arg3: memref<128x512xbf16, #tpu.memory_space<vmem>>, %arg4: memref<128x512xbf16, #tpu.memory_space<vmem>>, %arg5: memref<1x512xf32, #tpu.memory_space<vmem>>, %arg6: memref<256x512xbf16, #tpu.memory_space<vmem>>, %arg7: memref<1x512xf32, #tpu.memory_space<vmem>>, %arg8: memref<128x128xbf16, #tpu.memory_space<vmem>>, %arg9: memref<1x128xf32, #tpu.memory_space<vmem>>, %arg10: memref<8x128xf32, #tpu.memory_space<vmem>>, %arg11: memref<8x8x512xf32, #tpu.memory_space<vmem>>, %arg12: memref<8x128xf32, #tpu.memory_space<vmem>>, %arg13: memref<8x128xf32, #tpu.memory_space<vmem>>, %arg14: memref<8x128xf32, #tpu.memory_space<vmem>>, %arg15: memref<8x128xf32, #tpu.memory_space<vmem>>) attributes {dimension_semantics = [#tpu.dimension_semantics<parallel>, #tpu.dimension_semantics<arbitrary>], iteration_bounds = array<i64: 1, 1>, scalar_prefetch = 0 : i64, scratch_operands = 5 : i64, tpu.core_type = #tpu.core_type<tc>, window_params = [{transform_indices = @transform_0, window_bounds = array<i64: 8, 8, 128>}, {pipeline_mode = #tpu.pipeline_mode<synchronous>, transform_indices = @transform_1, window_bounds = array<i64: 128, 512>}, {pipeline_mode = #tpu.pipeline_mode<synchronous>, transform_indices = @transform_2, window_bounds = array<i64: 128, 512>}, {pipeline_mode = #tpu.pipeline_mode<synchronous>, transform_indices = @transform_3, window_bounds = array<i64: 1, 512>}, {pipeline_mode = #tpu.pipeline_mode<synchronous>, transform_indices = @transform_4, window_bounds = array<i64: 256, 512>}, {pipeline_mode = #tpu.pipeline_mode<synchronous>, transform_indices = @transform_5, window_bounds = array<i64: 1, 512>}, {pipeline_mode = #tpu.pipeline_mode<synchronous>, transform_indices = @transform_6, window_bounds = array<i64: 128, 128>}, {pipeline_mode = #tpu.pipeline_mode<synchronous>, transform_indices = @transform_7, window_bounds = array<i64: 1, 128>}, {transform_indices = @transform_8, window_bounds = array<i64: 8, 128>}]} {
    %c0_i32 = arith.constant 0 : i32
    %0 = arith.cmpi eq, %arg1, %c0_i32 : i32
    %1 = arith.extui %0 : i1 to i32
    %c0_i32_0 = arith.constant 0 : i32
    %2 = arith.cmpi ne, %1, %c0_i32_0 : i32
    scf.if %2 {
      %cst_83 = arith.constant 0.000000e+00 : f32
      %370 = vector.broadcast %cst_83 : f32 to vector<8x128xf32>
      %c0_84 = arith.constant 0 : index
      %c0_85 = arith.constant 0 : index
      %371 = vector.load %arg12[%c0_84, %c0_85] : memref<8x128xf32, #tpu.memory_space<vmem>>, vector<8x128xf32>
      tpu.vector_store %arg12[%c0_84, %c0_85], %370 {strides = array<i32>} : memref<8x128xf32, #tpu.memory_space<vmem>>, vector<8x128xf32>,
      %cst_86 = arith.constant 0.000000e+00 : f32
      %372 = vector.broadcast %cst_86 : f32 to vector<8x128xf32>
      %c0_87 = arith.constant 0 : index
      %c0_88 = arith.constant 0 : index
      %373 = vector.load %arg13[%c0_87, %c0_88] : memref<8x128xf32, #tpu.memory_space<vmem>>, vector<8x128xf32>
      tpu.vector_store %arg13[%c0_87, %c0_88], %372 {strides = array<i32>} : memref<8x128xf32, #tpu.memory_space<vmem>>, vector<8x128xf32>,
      %cst_89 = arith.constant 0.000000e+00 : f32
      %374 = vector.broadcast %cst_89 : f32 to vector<8x128xf32>
      %c0_90 = arith.constant 0 : index
      %c0_91 = arith.constant 0 : index
      %375 = vector.load %arg14[%c0_90, %c0_91] : memref<8x128xf32, #tpu.memory_space<vmem>>, vector<8x128xf32>
      tpu.vector_store %arg14[%c0_90, %c0_91], %374 {strides = array<i32>} : memref<8x128xf32, #tpu.memory_space<vmem>>, vector<8x128xf32>,
      %cst_92 = arith.constant 0.000000e+00 : f32
      %376 = vector.broadcast %cst_92 : f32 to vector<8x128xf32>
      %c0_93 = arith.constant 0 : index
      %c0_94 = arith.constant 0 : index
      %377 = vector.load %arg15[%c0_93, %c0_94] : memref<8x128xf32, #tpu.memory_space<vmem>>, vector<8x128xf32>
      tpu.vector_store %arg15[%c0_93, %c0_94], %376 {strides = array<i32>} : memref<8x128xf32, #tpu.memory_space<vmem>>, vector<8x128xf32>,
    } else {
    }
    %c0 = arith.constant 0 : index
    %c0_1 = arith.constant 0 : index
    %c0_2 = arith.constant 0 : index
    %3 = vector.load %arg2[%c0, %c0_1, %c0_2] : memref<8x8x128xbf16, #tpu.memory_space<vmem>>, vector<8x8x128xbf16>
    %4 = vector.shape_cast %3 : vector<8x8x128xbf16> to vector<64x128xbf16>
    %c0_3 = arith.constant 0 : index
    %c0_4 = arith.constant 0 : index
    %5 = vector.load %arg3[%c0_3, %c0_4] : memref<128x512xbf16, #tpu.memory_space<vmem>>, vector<128x512xbf16>
    %cst = arith.constant dense<0.000000e+00> : vector<64x512xf32>
    %6 = tpu.matmul %4, %5, %cst {dimension_numbers = #tpu.dot_dimension_numbers<[1], [0], [0], [1], [0, 0, 1, 1], [], []>} : vector<64x128xbf16>, vector<128x512xbf16>, vector<64x512xf32> -> vector<64x512xf32>
    %c0_5 = arith.constant 0 : index
    %c0_6 = arith.constant 0 : index
    %7 = vector.load %arg5[%c0_5, %c0_6] : memref<1x512xf32, #tpu.memory_space<vmem>>, vector<1x512xf32>
    %8 = vector.broadcast %7 : vector<1x512xf32> to vector<64x512xf32>
    %9 = arith.addf %6, %8 : vector<64x512xf32>
    %10 = vector.shape_cast %9 : vector<64x512xf32> to vector<8x8x512xf32>
    %c0_7 = arith.constant 0 : index
    %c0_8 = arith.constant 0 : index
    %c0_9 = arith.constant 0 : index
    %11 = vector.load %arg11[%c0_7, %c0_8, %c0_9] : memref<8x8x512xf32, #tpu.memory_space<vmem>>, vector<8x8x512xf32>
    tpu.vector_store %arg11[%c0_7, %c0_8, %c0_9], %10 {strides = array<i32>} : memref<8x8x512xf32, #tpu.memory_space<vmem>>, vector<8x8x512xf32>,
    %c0_10 = arith.constant 0 : index
    %c0_11 = arith.constant 0 : index
    %12 = vector.load %arg4[%c0_10, %c0_11] : memref<128x512xbf16, #tpu.memory_space<vmem>>, vector<128x512xbf16>
    %c0_12 = arith.constant 0 : index
    %c0_13 = arith.constant 0 : index
    %13 = vector.load %arg6[%c0_12, %c0_13] : memref<256x512xbf16, #tpu.memory_space<vmem>>, vector<256x512xbf16>
    %c0_14 = arith.constant 0 : index
    %c0_15 = arith.constant 0 : index
    %14 = vector.load %arg7[%c0_14, %c0_15] : memref<1x512xf32, #tpu.memory_space<vmem>>, vector<1x512xf32>
    %c0_16 = arith.constant 0 : index
    %c0_17 = arith.constant 0 : index
    %15 = vector.load %arg12[%c0_16, %c0_17] : memref<8x128xf32, #tpu.memory_space<vmem>>, vector<8x128xf32>
    %c0_18 = arith.constant 0 : index
    %c0_19 = arith.constant 0 : index
    %16 = vector.load %arg13[%c0_18, %c0_19] : memref<8x128xf32, #tpu.memory_space<vmem>>, vector<8x128xf32>
    %c0_20 = arith.constant 0 : index
    %c0_21 = arith.constant 0 : index
    %17 = vector.load %arg14[%c0_20, %c0_21] : memref<8x128xf32, #tpu.memory_space<vmem>>, vector<8x128xf32>
    %c0_22 = arith.constant 0 : index
    %c0_23 = arith.constant 0 : index
    %18 = vector.load %arg15[%c0_22, %c0_23] : memref<8x128xf32, #tpu.memory_space<vmem>>, vector<8x128xf32>
    %c0_i32_24 = arith.constant 0 : i32
    %19 = arith.index_cast %c0_i32_24 : i32 to index
    %c0_25 = arith.constant 0 : index
    %c0_26 = arith.constant 0 : index
    %20 = vector.load %arg11[%19, %c0_25, %c0_26] : memref<8x8x512xf32, #tpu.memory_space<vmem>>, vector<1x8x512xf32>
    %21 = vector.shape_cast %20 : vector<1x8x512xf32> to vector<8x512xf32>
    %22 = arith.truncf %15 : vector<8x128xf32> to vector<8x128xbf16>
    %cst_27 = arith.constant dense<0.000000e+00> : vector<8x512xf32>
    %23 = tpu.matmul %22, %12, %cst_27 {dimension_numbers = #tpu.dot_dimension_numbers<[1], [0], [0], [1], [0, 0, 1, 1], [], []>} : vector<8x128xbf16>, vector<128x512xbf16>, vector<8x512xf32> -> vector<8x512xf32>
    %24 = arith.addf %21, %23 : vector<8x512xf32>
    %25 = vector.extract_strided_slice %24 {offsets = [0, 0], sizes = [8, 384], strides = [1, 1]} : vector<8x512xf32> to vector<8x384xf32>
    %26 = arith.negf %25 : vector<8x384xf32>
    %27 = math.exp %26 : vector<8x384xf32>
    %cst_28 = arith.constant 1.000000e+00 : f32
    %28 = vector.broadcast %cst_28 : f32 to vector<8x384xf32>
    %29 = arith.addf %28, %27 : vector<8x384xf32>
    %30 = arith.divf %28, %29 : vector<8x384xf32>
    %31 = vector.extract_strided_slice %24 {offsets = [0, 384], sizes = [8, 128], strides = [1, 1]} : vector<8x512xf32> to vector<8x128xf32>
    %32 = math.tanh %31 : vector<8x128xf32>
    %33 = vector.extract_strided_slice %30 {offsets = [0, 128], sizes = [8, 128], strides = [1, 1]} : vector<8x384xf32> to vector<8x128xf32>
    %34 = arith.mulf %33, %16 : vector<8x128xf32>
    %35 = vector.extract_strided_slice %30 {offsets = [0, 0], sizes = [8, 128], strides = [1, 1]} : vector<8x384xf32> to vector<8x128xf32>
    %36 = arith.mulf %35, %32 : vector<8x128xf32>
    %37 = arith.addf %34, %36 : vector<8x128xf32>
    %38 = vector.extract_strided_slice %30 {offsets = [0, 256], sizes = [8, 128], strides = [1, 1]} : vector<8x384xf32> to vector<8x128xf32>
    %39 = math.tanh %37 : vector<8x128xf32>
    %40 = arith.mulf %38, %39 : vector<8x128xf32>
    %41 = tpu.concatenate %40, %17 in 1 : vector<8x128xf32>, vector<8x128xf32> -> vector<8x256xf32>
    %42 = arith.truncf %41 : vector<8x256xf32> to vector<8x256xbf16>
    %cst_29 = arith.constant dense<0.000000e+00> : vector<8x512xf32>
    %43 = tpu.matmul %42, %13, %cst_29 {dimension_numbers = #tpu.dot_dimension_numbers<[1], [0], [0], [1], [0, 0, 1, 1], [], []>} : vector<8x256xbf16>, vector<256x512xbf16>, vector<8x512xf32> -> vector<8x512xf32>
    %44 = vector.broadcast %14 : vector<1x512xf32> to vector<8x512xf32>
    %45 = arith.addf %43, %44 : vector<8x512xf32>
    %46 = vector.extract_strided_slice %45 {offsets = [0, 0], sizes = [8, 384], strides = [1, 1]} : vector<8x512xf32> to vector<8x384xf32>
    %47 = arith.negf %46 : vector<8x384xf32>
    %48 = math.exp %47 : vector<8x384xf32>
    %cst_30 = arith.constant 1.000000e+00 : f32
    %49 = vector.broadcast %cst_30 : f32 to vector<8x384xf32>
    %50 = arith.addf %49, %48 : vector<8x384xf32>
    %51 = arith.divf %49, %50 : vector<8x384xf32>
    %52 = vector.extract_strided_slice %45 {offsets = [0, 384], sizes = [8, 128], strides = [1, 1]} : vector<8x512xf32> to vector<8x128xf32>
    %53 = math.tanh %52 : vector<8x128xf32>
    %54 = vector.extract_strided_slice %51 {offsets = [0, 128], sizes = [8, 128], strides = [1, 1]} : vector<8x384xf32> to vector<8x128xf32>
    %55 = arith.mulf %54, %18 : vector<8x128xf32>
    %56 = vector.extract_strided_slice %51 {offsets = [0, 0], sizes = [8, 128], strides = [1, 1]} : vector<8x384xf32> to vector<8x128xf32>
    %57 = arith.mulf %56, %53 : vector<8x128xf32>
    %58 = arith.addf %55, %57 : vector<8x128xf32>
    %59 = vector.extract_strided_slice %51 {offsets = [0, 256], sizes = [8, 128], strides = [1, 1]} : vector<8x384xf32> to vector<8x128xf32>
    %60 = math.tanh %58 : vector<8x128xf32>
    %61 = arith.mulf %59, %60 : vector<8x128xf32>
    %c1_i32 = arith.constant 1 : i32
    %62 = arith.index_cast %c1_i32 : i32 to index
    %c0_31 = arith.constant 0 : index
    %c0_32 = arith.constant 0 : index
    %63 = vector.load %arg11[%62, %c0_31, %c0_32] : memref<8x8x512xf32, #tpu.memory_space<vmem>>, vector<1x8x512xf32>
    %64 = vector.shape_cast %63 : vector<1x8x512xf32> to vector<8x512xf32>
    %65 = arith.truncf %40 : vector<8x128xf32> to vector<8x128xbf16>
    %cst_33 = arith.constant dense<0.000000e+00> : vector<8x512xf32>
    %66 = tpu.matmul %65, %12, %cst_33 {dimension_numbers = #tpu.dot_dimension_numbers<[1], [0], [0], [1], [0, 0, 1, 1], [], []>} : vector<8x128xbf16>, vector<128x512xbf16>, vector<8x512xf32> -> vector<8x512xf32>
    %67 = arith.addf %64, %66 : vector<8x512xf32>
    %68 = vector.extract_strided_slice %67 {offsets = [0, 0], sizes = [8, 384], strides = [1, 1]} : vector<8x512xf32> to vector<8x384xf32>
    %69 = arith.negf %68 : vector<8x384xf32>
    %70 = math.exp %69 : vector<8x384xf32>
    %cst_34 = arith.constant 1.000000e+00 : f32
    %71 = vector.broadcast %cst_34 : f32 to vector<8x384xf32>
    %72 = arith.addf %71, %70 : vector<8x384xf32>
    %73 = arith.divf %71, %72 : vector<8x384xf32>
    %74 = vector.extract_strided_slice %67 {offsets = [0, 384], sizes = [8, 128], strides = [1, 1]} : vector<8x512xf32> to vector<8x128xf32>
    %75 = math.tanh %74 : vector<8x128xf32>
    %76 = vector.extract_strided_slice %73 {offsets = [0, 128], sizes = [8, 128], strides = [1, 1]} : vector<8x384xf32> to vector<8x128xf32>
    %77 = arith.mulf %76, %37 : vector<8x128xf32>
    %78 = vector.extract_strided_slice %73 {offsets = [0, 0], sizes = [8, 128], strides = [1, 1]} : vector<8x384xf32> to vector<8x128xf32>
    %79 = arith.mulf %78, %75 : vector<8x128xf32>
    %80 = arith.addf %77, %79 : vector<8x128xf32>
    %81 = vector.extract_strided_slice %73 {offsets = [0, 256], sizes = [8, 128], strides = [1, 1]} : vector<8x384xf32> to vector<8x128xf32>
    %82 = math.tanh %80 : vector<8x128xf32>
    %83 = arith.mulf %81, %82 : vector<8x128xf32>
    %84 = tpu.concatenate %83, %61 in 1 : vector<8x128xf32>, vector<8x128xf32> -> vector<8x256xf32>
    %85 = arith.truncf %84 : vector<8x256xf32> to vector<8x256xbf16>
    %cst_35 = arith.constant dense<0.000000e+00> : vector<8x512xf32>
    %86 = tpu.matmul %85, %13, %cst_35 {dimension_numbers = #tpu.dot_dimension_numbers<[1], [0], [0], [1], [0, 0, 1, 1], [], []>} : vector<8x256xbf16>, vector<256x512xbf16>, vector<8x512xf32> -> vector<8x512xf32>
    %87 = vector.broadcast %14 : vector<1x512xf32> to vector<8x512xf32>
    %88 = arith.addf %86, %87 : vector<8x512xf32>
    %89 = vector.extract_strided_slice %88 {offsets = [0, 0], sizes = [8, 384], strides = [1, 1]} : vector<8x512xf32> to vector<8x384xf32>
    %90 = arith.negf %89 : vector<8x384xf32>
    %91 = math.exp %90 : vector<8x384xf32>
    %cst_36 = arith.constant 1.000000e+00 : f32
    %92 = vector.broadcast %cst_36 : f32 to vector<8x384xf32>
    %93 = arith.addf %92, %91 : vector<8x384xf32>
    %94 = arith.divf %92, %93 : vector<8x384xf32>
    %95 = vector.extract_strided_slice %88 {offsets = [0, 384], sizes = [8, 128], strides = [1, 1]} : vector<8x512xf32> to vector<8x128xf32>
    %96 = math.tanh %95 : vector<8x128xf32>
    %97 = vector.extract_strided_slice %94 {offsets = [0, 128], sizes = [8, 128], strides = [1, 1]} : vector<8x384xf32> to vector<8x128xf32>
    %98 = arith.mulf %97, %58 : vector<8x128xf32>
    %99 = vector.extract_strided_slice %94 {offsets = [0, 0], sizes = [8, 128], strides = [1, 1]} : vector<8x384xf32> to vector<8x128xf32>
    %100 = arith.mulf %99, %96 : vector<8x128xf32>
    %101 = arith.addf %98, %100 : vector<8x128xf32>
    %102 = vector.extract_strided_slice %94 {offsets = [0, 256], sizes = [8, 128], strides = [1, 1]} : vector<8x384xf32> to vector<8x128xf32>
    %103 = math.tanh %101 : vector<8x128xf32>
    %104 = arith.mulf %102, %103 : vector<8x128xf32>
    %c2_i32 = arith.constant 2 : i32
    %105 = arith.index_cast %c2_i32 : i32 to index
    %c0_37 = arith.constant 0 : index
    %c0_38 = arith.constant 0 : index
    %106 = vector.load %arg11[%105, %c0_37, %c0_38] : memref<8x8x512xf32, #tpu.memory_space<vmem>>, vector<1x8x512xf32>
    %107 = vector.shape_cast %106 : vector<1x8x512xf32> to vector<8x512xf32>
    %108 = arith.truncf %83 : vector<8x128xf32> to vector<8x128xbf16>
    %cst_39 = arith.constant dense<0.000000e+00> : vector<8x512xf32>
    %109 = tpu.matmul %108, %12, %cst_39 {dimension_numbers = #tpu.dot_dimension_numbers<[1], [0], [0], [1], [0, 0, 1, 1], [], []>} : vector<8x128xbf16>, vector<128x512xbf16>, vector<8x512xf32> -> vector<8x512xf32>
    %110 = arith.addf %107, %109 : vector<8x512xf32>
    %111 = vector.extract_strided_slice %110 {offsets = [0, 0], sizes = [8, 384], strides = [1, 1]} : vector<8x512xf32> to vector<8x384xf32>
    %112 = arith.negf %111 : vector<8x384xf32>
    %113 = math.exp %112 : vector<8x384xf32>
    %cst_40 = arith.constant 1.000000e+00 : f32
    %114 = vector.broadcast %cst_40 : f32 to vector<8x384xf32>
    %115 = arith.addf %114, %113 : vector<8x384xf32>
    %116 = arith.divf %114, %115 : vector<8x384xf32>
    %117 = vector.extract_strided_slice %110 {offsets = [0, 384], sizes = [8, 128], strides = [1, 1]} : vector<8x512xf32> to vector<8x128xf32>
    %118 = math.tanh %117 : vector<8x128xf32>
    %119 = vector.extract_strided_slice %116 {offsets = [0, 128], sizes = [8, 128], strides = [1, 1]} : vector<8x384xf32> to vector<8x128xf32>
    %120 = arith.mulf %119, %80 : vector<8x128xf32>
    %121 = vector.extract_strided_slice %116 {offsets = [0, 0], sizes = [8, 128], strides = [1, 1]} : vector<8x384xf32> to vector<8x128xf32>
    %122 = arith.mulf %121, %118 : vector<8x128xf32>
    %123 = arith.addf %120, %122 : vector<8x128xf32>
    %124 = vector.extract_strided_slice %116 {offsets = [0, 256], sizes = [8, 128], strides = [1, 1]} : vector<8x384xf32> to vector<8x128xf32>
    %125 = math.tanh %123 : vector<8x128xf32>
    %126 = arith.mulf %124, %125 : vector<8x128xf32>
    %127 = tpu.concatenate %126, %104 in 1 : vector<8x128xf32>, vector<8x128xf32> -> vector<8x256xf32>
    %128 = arith.truncf %127 : vector<8x256xf32> to vector<8x256xbf16>
    %cst_41 = arith.constant dense<0.000000e+00> : vector<8x512xf32>
    %129 = tpu.matmul %128, %13, %cst_41 {dimension_numbers = #tpu.dot_dimension_numbers<[1], [0], [0], [1], [0, 0, 1, 1], [], []>} : vector<8x256xbf16>, vector<256x512xbf16>, vector<8x512xf32> -> vector<8x512xf32>
    %130 = vector.broadcast %14 : vector<1x512xf32> to vector<8x512xf32>
    %131 = arith.addf %129, %130 : vector<8x512xf32>
    %132 = vector.extract_strided_slice %131 {offsets = [0, 0], sizes = [8, 384], strides = [1, 1]} : vector<8x512xf32> to vector<8x384xf32>
    %133 = arith.negf %132 : vector<8x384xf32>
    %134 = math.exp %133 : vector<8x384xf32>
    %cst_42 = arith.constant 1.000000e+00 : f32
    %135 = vector.broadcast %cst_42 : f32 to vector<8x384xf32>
    %136 = arith.addf %135, %134 : vector<8x384xf32>
    %137 = arith.divf %135, %136 : vector<8x384xf32>
    %138 = vector.extract_strided_slice %131 {offsets = [0, 384], sizes = [8, 128], strides = [1, 1]} : vector<8x512xf32> to vector<8x128xf32>
    %139 = math.tanh %138 : vector<8x128xf32>
    %140 = vector.extract_strided_slice %137 {offsets = [0, 128], sizes = [8, 128], strides = [1, 1]} : vector<8x384xf32> to vector<8x128xf32>
    %141 = arith.mulf %140, %101 : vector<8x128xf32>
    %142 = vector.extract_strided_slice %137 {offsets = [0, 0], sizes = [8, 128], strides = [1, 1]} : vector<8x384xf32> to vector<8x128xf32>
    %143 = arith.mulf %142, %139 : vector<8x128xf32>
    %144 = arith.addf %141, %143 : vector<8x128xf32>
    %145 = vector.extract_strided_slice %137 {offsets = [0, 256], sizes = [8, 128], strides = [1, 1]} : vector<8x384xf32> to vector<8x128xf32>
    %146 = math.tanh %144 : vector<8x128xf32>
    %147 = arith.mulf %145, %146 : vector<8x128xf32>
    %c3_i32 = arith.constant 3 : i32
    %148 = arith.index_cast %c3_i32 : i32 to index
    %c0_43 = arith.constant 0 : index
    %c0_44 = arith.constant 0 : index
    %149 = vector.load %arg11[%148, %c0_43, %c0_44] : memref<8x8x512xf32, #tpu.memory_space<vmem>>, vector<1x8x512xf32>
    %150 = vector.shape_cast %149 : vector<1x8x512xf32> to vector<8x512xf32>
    %151 = arith.truncf %126 : vector<8x128xf32> to vector<8x128xbf16>
    %cst_45 = arith.constant dense<0.000000e+00> : vector<8x512xf32>
    %152 = tpu.matmul %151, %12, %cst_45 {dimension_numbers = #tpu.dot_dimension_numbers<[1], [0], [0], [1], [0, 0, 1, 1], [], []>} : vector<8x128xbf16>, vector<128x512xbf16>, vector<8x512xf32> -> vector<8x512xf32>
    %153 = arith.addf %150, %152 : vector<8x512xf32>
    %154 = vector.extract_strided_slice %153 {offsets = [0, 0], sizes = [8, 384], strides = [1, 1]} : vector<8x512xf32> to vector<8x384xf32>
    %155 = arith.negf %154 : vector<8x384xf32>
    %156 = math.exp %155 : vector<8x384xf32>
    %cst_46 = arith.constant 1.000000e+00 : f32
    %157 = vector.broadcast %cst_46 : f32 to vector<8x384xf32>
    %158 = arith.addf %157, %156 : vector<8x384xf32>
    %159 = arith.divf %157, %158 : vector<8x384xf32>
    %160 = vector.extract_strided_slice %153 {offsets = [0, 384], sizes = [8, 128], strides = [1, 1]} : vector<8x512xf32> to vector<8x128xf32>
    %161 = math.tanh %160 : vector<8x128xf32>
    %162 = vector.extract_strided_slice %159 {offsets = [0, 128], sizes = [8, 128], strides = [1, 1]} : vector<8x384xf32> to vector<8x128xf32>
    %163 = arith.mulf %162, %123 : vector<8x128xf32>
    %164 = vector.extract_strided_slice %159 {offsets = [0, 0], sizes = [8, 128], strides = [1, 1]} : vector<8x384xf32> to vector<8x128xf32>
    %165 = arith.mulf %164, %161 : vector<8x128xf32>
    %166 = arith.addf %163, %165 : vector<8x128xf32>
    %167 = vector.extract_strided_slice %159 {offsets = [0, 256], sizes = [8, 128], strides = [1, 1]} : vector<8x384xf32> to vector<8x128xf32>
    %168 = math.tanh %166 : vector<8x128xf32>
    %169 = arith.mulf %167, %168 : vector<8x128xf32>
    %170 = tpu.concatenate %169, %147 in 1 : vector<8x128xf32>, vector<8x128xf32> -> vector<8x256xf32>
    %171 = arith.truncf %170 : vector<8x256xf32> to vector<8x256xbf16>
    %cst_47 = arith.constant dense<0.000000e+00> : vector<8x512xf32>
    %172 = tpu.matmul %171, %13, %cst_47 {dimension_numbers = #tpu.dot_dimension_numbers<[1], [0], [0], [1], [0, 0, 1, 1], [], []>} : vector<8x256xbf16>, vector<256x512xbf16>, vector<8x512xf32> -> vector<8x512xf32>
    %173 = vector.broadcast %14 : vector<1x512xf32> to vector<8x512xf32>
    %174 = arith.addf %172, %173 : vector<8x512xf32>
    %175 = vector.extract_strided_slice %174 {offsets = [0, 0], sizes = [8, 384], strides = [1, 1]} : vector<8x512xf32> to vector<8x384xf32>
    %176 = arith.negf %175 : vector<8x384xf32>
    %177 = math.exp %176 : vector<8x384xf32>
    %cst_48 = arith.constant 1.000000e+00 : f32
    %178 = vector.broadcast %cst_48 : f32 to vector<8x384xf32>
    %179 = arith.addf %178, %177 : vector<8x384xf32>
    %180 = arith.divf %178, %179 : vector<8x384xf32>
    %181 = vector.extract_strided_slice %174 {offsets = [0, 384], sizes = [8, 128], strides = [1, 1]} : vector<8x512xf32> to vector<8x128xf32>
    %182 = math.tanh %181 : vector<8x128xf32>
    %183 = vector.extract_strided_slice %180 {offsets = [0, 128], sizes = [8, 128], strides = [1, 1]} : vector<8x384xf32> to vector<8x128xf32>
    %184 = arith.mulf %183, %144 : vector<8x128xf32>
    %185 = vector.extract_strided_slice %180 {offsets = [0, 0], sizes = [8, 128], strides = [1, 1]} : vector<8x384xf32> to vector<8x128xf32>
    %186 = arith.mulf %185, %182 : vector<8x128xf32>
    %187 = arith.addf %184, %186 : vector<8x128xf32>
    %188 = vector.extract_strided_slice %180 {offsets = [0, 256], sizes = [8, 128], strides = [1, 1]} : vector<8x384xf32> to vector<8x128xf32>
    %189 = math.tanh %187 : vector<8x128xf32>
    %190 = arith.mulf %188, %189 : vector<8x128xf32>
    %c4_i32 = arith.constant 4 : i32
    %191 = arith.index_cast %c4_i32 : i32 to index
    %c0_49 = arith.constant 0 : index
    %c0_50 = arith.constant 0 : index
    %192 = vector.load %arg11[%191, %c0_49, %c0_50] : memref<8x8x512xf32, #tpu.memory_space<vmem>>, vector<1x8x512xf32>
    %193 = vector.shape_cast %192 : vector<1x8x512xf32> to vector<8x512xf32>
    %194 = arith.truncf %169 : vector<8x128xf32> to vector<8x128xbf16>
    %cst_51 = arith.constant dense<0.000000e+00> : vector<8x512xf32>
    %195 = tpu.matmul %194, %12, %cst_51 {dimension_numbers = #tpu.dot_dimension_numbers<[1], [0], [0], [1], [0, 0, 1, 1], [], []>} : vector<8x128xbf16>, vector<128x512xbf16>, vector<8x512xf32> -> vector<8x512xf32>
    %196 = arith.addf %193, %195 : vector<8x512xf32>
    %197 = vector.extract_strided_slice %196 {offsets = [0, 0], sizes = [8, 384], strides = [1, 1]} : vector<8x512xf32> to vector<8x384xf32>
    %198 = arith.negf %197 : vector<8x384xf32>
    %199 = math.exp %198 : vector<8x384xf32>
    %cst_52 = arith.constant 1.000000e+00 : f32
    %200 = vector.broadcast %cst_52 : f32 to vector<8x384xf32>
    %201 = arith.addf %200, %199 : vector<8x384xf32>
    %202 = arith.divf %200, %201 : vector<8x384xf32>
    %203 = vector.extract_strided_slice %196 {offsets = [0, 384], sizes = [8, 128], strides = [1, 1]} : vector<8x512xf32> to vector<8x128xf32>
    %204 = math.tanh %203 : vector<8x128xf32>
    %205 = vector.extract_strided_slice %202 {offsets = [0, 128], sizes = [8, 128], strides = [1, 1]} : vector<8x384xf32> to vector<8x128xf32>
    %206 = arith.mulf %205, %166 : vector<8x128xf32>
    %207 = vector.extract_strided_slice %202 {offsets = [0, 0], sizes = [8, 128], strides = [1, 1]} : vector<8x384xf32> to vector<8x128xf32>
    %208 = arith.mulf %207, %204 : vector<8x128xf32>
    %209 = arith.addf %206, %208 : vector<8x128xf32>
    %210 = vector.extract_strided_slice %202 {offsets = [0, 256], sizes = [8, 128], strides = [1, 1]} : vector<8x384xf32> to vector<8x128xf32>
    %211 = math.tanh %209 : vector<8x128xf32>
    %212 = arith.mulf %210, %211 : vector<8x128xf32>
    %213 = tpu.concatenate %212, %190 in 1 : vector<8x128xf32>, vector<8x128xf32> -> vector<8x256xf32>
    %214 = arith.truncf %213 : vector<8x256xf32> to vector<8x256xbf16>
    %cst_53 = arith.constant dense<0.000000e+00> : vector<8x512xf32>
    %215 = tpu.matmul %214, %13, %cst_53 {dimension_numbers = #tpu.dot_dimension_numbers<[1], [0], [0], [1], [0, 0, 1, 1], [], []>} : vector<8x256xbf16>, vector<256x512xbf16>, vector<8x512xf32> -> vector<8x512xf32>
    %216 = vector.broadcast %14 : vector<1x512xf32> to vector<8x512xf32>
    %217 = arith.addf %215, %216 : vector<8x512xf32>
    %218 = vector.extract_strided_slice %217 {offsets = [0, 0], sizes = [8, 384], strides = [1, 1]} : vector<8x512xf32> to vector<8x384xf32>
    %219 = arith.negf %218 : vector<8x384xf32>
    %220 = math.exp %219 : vector<8x384xf32>
    %cst_54 = arith.constant 1.000000e+00 : f32
    %221 = vector.broadcast %cst_54 : f32 to vector<8x384xf32>
    %222 = arith.addf %221, %220 : vector<8x384xf32>
    %223 = arith.divf %221, %222 : vector<8x384xf32>
    %224 = vector.extract_strided_slice %217 {offsets = [0, 384], sizes = [8, 128], strides = [1, 1]} : vector<8x512xf32> to vector<8x128xf32>
    %225 = math.tanh %224 : vector<8x128xf32>
    %226 = vector.extract_strided_slice %223 {offsets = [0, 128], sizes = [8, 128], strides = [1, 1]} : vector<8x384xf32> to vector<8x128xf32>
    %227 = arith.mulf %226, %187 : vector<8x128xf32>
    %228 = vector.extract_strided_slice %223 {offsets = [0, 0], sizes = [8, 128], strides = [1, 1]} : vector<8x384xf32> to vector<8x128xf32>
    %229 = arith.mulf %228, %225 : vector<8x128xf32>
    %230 = arith.addf %227, %229 : vector<8x128xf32>
    %231 = vector.extract_strided_slice %223 {offsets = [0, 256], sizes = [8, 128], strides = [1, 1]} : vector<8x384xf32> to vector<8x128xf32>
    %232 = math.tanh %230 : vector<8x128xf32>
    %233 = arith.mulf %231, %232 : vector<8x128xf32>
    %c5_i32 = arith.constant 5 : i32
    %234 = arith.index_cast %c5_i32 : i32 to index
    %c0_55 = arith.constant 0 : index
    %c0_56 = arith.constant 0 : index
    %235 = vector.load %arg11[%234, %c0_55, %c0_56] : memref<8x8x512xf32, #tpu.memory_space<vmem>>, vector<1x8x512xf32>
    %236 = vector.shape_cast %235 : vector<1x8x512xf32> to vector<8x512xf32>
    %237 = arith.truncf %212 : vector<8x128xf32> to vector<8x128xbf16>
    %cst_57 = arith.constant dense<0.000000e+00> : vector<8x512xf32>
    %238 = tpu.matmul %237, %12, %cst_57 {dimension_numbers = #tpu.dot_dimension_numbers<[1], [0], [0], [1], [0, 0, 1, 1], [], []>} : vector<8x128xbf16>, vector<128x512xbf16>, vector<8x512xf32> -> vector<8x512xf32>
    %239 = arith.addf %236, %238 : vector<8x512xf32>
    %240 = vector.extract_strided_slice %239 {offsets = [0, 0], sizes = [8, 384], strides = [1, 1]} : vector<8x512xf32> to vector<8x384xf32>
    %241 = arith.negf %240 : vector<8x384xf32>
    %242 = math.exp %241 : vector<8x384xf32>
    %cst_58 = arith.constant 1.000000e+00 : f32
    %243 = vector.broadcast %cst_58 : f32 to vector<8x384xf32>
    %244 = arith.addf %243, %242 : vector<8x384xf32>
    %245 = arith.divf %243, %244 : vector<8x384xf32>
    %246 = vector.extract_strided_slice %239 {offsets = [0, 384], sizes = [8, 128], strides = [1, 1]} : vector<8x512xf32> to vector<8x128xf32>
    %247 = math.tanh %246 : vector<8x128xf32>
    %248 = vector.extract_strided_slice %245 {offsets = [0, 128], sizes = [8, 128], strides = [1, 1]} : vector<8x384xf32> to vector<8x128xf32>
    %249 = arith.mulf %248, %209 : vector<8x128xf32>
    %250 = vector.extract_strided_slice %245 {offsets = [0, 0], sizes = [8, 128], strides = [1, 1]} : vector<8x384xf32> to vector<8x128xf32>
    %251 = arith.mulf %250, %247 : vector<8x128xf32>
    %252 = arith.addf %249, %251 : vector<8x128xf32>
    %253 = vector.extract_strided_slice %245 {offsets = [0, 256], sizes = [8, 128], strides = [1, 1]} : vector<8x384xf32> to vector<8x128xf32>
    %254 = math.tanh %252 : vector<8x128xf32>
    %255 = arith.mulf %253, %254 : vector<8x128xf32>
    %256 = tpu.concatenate %255, %233 in 1 : vector<8x128xf32>, vector<8x128xf32> -> vector<8x256xf32>
    %257 = arith.truncf %256 : vector<8x256xf32> to vector<8x256xbf16>
    %cst_59 = arith.constant dense<0.000000e+00> : vector<8x512xf32>
    %258 = tpu.matmul %257, %13, %cst_59 {dimension_numbers = #tpu.dot_dimension_numbers<[1], [0], [0], [1], [0, 0, 1, 1], [], []>} : vector<8x256xbf16>, vector<256x512xbf16>, vector<8x512xf32> -> vector<8x512xf32>
    %259 = vector.broadcast %14 : vector<1x512xf32> to vector<8x512xf32>
    %260 = arith.addf %258, %259 : vector<8x512xf32>
    %261 = vector.extract_strided_slice %260 {offsets = [0, 0], sizes = [8, 384], strides = [1, 1]} : vector<8x512xf32> to vector<8x384xf32>
    %262 = arith.negf %261 : vector<8x384xf32>
    %263 = math.exp %262 : vector<8x384xf32>
    %cst_60 = arith.constant 1.000000e+00 : f32
    %264 = vector.broadcast %cst_60 : f32 to vector<8x384xf32>
    %265 = arith.addf %264, %263 : vector<8x384xf32>
    %266 = arith.divf %264, %265 : vector<8x384xf32>
    %267 = vector.extract_strided_slice %260 {offsets = [0, 384], sizes = [8, 128], strides = [1, 1]} : vector<8x512xf32> to vector<8x128xf32>
    %268 = math.tanh %267 : vector<8x128xf32>
    %269 = vector.extract_strided_slice %266 {offsets = [0, 128], sizes = [8, 128], strides = [1, 1]} : vector<8x384xf32> to vector<8x128xf32>
    %270 = arith.mulf %269, %230 : vector<8x128xf32>
    %271 = vector.extract_strided_slice %266 {offsets = [0, 0], sizes = [8, 128], strides = [1, 1]} : vector<8x384xf32> to vector<8x128xf32>
    %272 = arith.mulf %271, %268 : vector<8x128xf32>
    %273 = arith.addf %270, %272 : vector<8x128xf32>
    %274 = vector.extract_strided_slice %266 {offsets = [0, 256], sizes = [8, 128], strides = [1, 1]} : vector<8x384xf32> to vector<8x128xf32>
    %275 = math.tanh %273 : vector<8x128xf32>
    %276 = arith.mulf %274, %275 : vector<8x128xf32>
    %c6_i32 = arith.constant 6 : i32
    %277 = arith.index_cast %c6_i32 : i32 to index
    %c0_61 = arith.constant 0 : index
    %c0_62 = arith.constant 0 : index
    %278 = vector.load %arg11[%277, %c0_61, %c0_62] : memref<8x8x512xf32, #tpu.memory_space<vmem>>, vector<1x8x512xf32>
    %279 = vector.shape_cast %278 : vector<1x8x512xf32> to vector<8x512xf32>
    %280 = arith.truncf %255 : vector<8x128xf32> to vector<8x128xbf16>
    %cst_63 = arith.constant dense<0.000000e+00> : vector<8x512xf32>
    %281 = tpu.matmul %280, %12, %cst_63 {dimension_numbers = #tpu.dot_dimension_numbers<[1], [0], [0], [1], [0, 0, 1, 1], [], []>} : vector<8x128xbf16>, vector<128x512xbf16>, vector<8x512xf32> -> vector<8x512xf32>
    %282 = arith.addf %279, %281 : vector<8x512xf32>
    %283 = vector.extract_strided_slice %282 {offsets = [0, 0], sizes = [8, 384], strides = [1, 1]} : vector<8x512xf32> to vector<8x384xf32>
    %284 = arith.negf %283 : vector<8x384xf32>
    %285 = math.exp %284 : vector<8x384xf32>
    %cst_64 = arith.constant 1.000000e+00 : f32
    %286 = vector.broadcast %cst_64 : f32 to vector<8x384xf32>
    %287 = arith.addf %286, %285 : vector<8x384xf32>
    %288 = arith.divf %286, %287 : vector<8x384xf32>
    %289 = vector.extract_strided_slice %282 {offsets = [0, 384], sizes = [8, 128], strides = [1, 1]} : vector<8x512xf32> to vector<8x128xf32>
    %290 = math.tanh %289 : vector<8x128xf32>
    %291 = vector.extract_strided_slice %288 {offsets = [0, 128], sizes = [8, 128], strides = [1, 1]} : vector<8x384xf32> to vector<8x128xf32>
    %292 = arith.mulf %291, %252 : vector<8x128xf32>
    %293 = vector.extract_strided_slice %288 {offsets = [0, 0], sizes = [8, 128], strides = [1, 1]} : vector<8x384xf32> to vector<8x128xf32>
    %294 = arith.mulf %293, %290 : vector<8x128xf32>
    %295 = arith.addf %292, %294 : vector<8x128xf32>
    %296 = vector.extract_strided_slice %288 {offsets = [0, 256], sizes = [8, 128], strides = [1, 1]} : vector<8x384xf32> to vector<8x128xf32>
    %297 = math.tanh %295 : vector<8x128xf32>
    %298 = arith.mulf %296, %297 : vector<8x128xf32>
    %299 = tpu.concatenate %298, %276 in 1 : vector<8x128xf32>, vector<8x128xf32> -> vector<8x256xf32>
    %300 = arith.truncf %299 : vector<8x256xf32> to vector<8x256xbf16>
    %cst_65 = arith.constant dense<0.000000e+00> : vector<8x512xf32>
    %301 = tpu.matmul %300, %13, %cst_65 {dimension_numbers = #tpu.dot_dimension_numbers<[1], [0], [0], [1], [0, 0, 1, 1], [], []>} : vector<8x256xbf16>, vector<256x512xbf16>, vector<8x512xf32> -> vector<8x512xf32>
    %302 = vector.broadcast %14 : vector<1x512xf32> to vector<8x512xf32>
    %303 = arith.addf %301, %302 : vector<8x512xf32>
    %304 = vector.extract_strided_slice %303 {offsets = [0, 0], sizes = [8, 384], strides = [1, 1]} : vector<8x512xf32> to vector<8x384xf32>
    %305 = arith.negf %304 : vector<8x384xf32>
    %306 = math.exp %305 : vector<8x384xf32>
    %cst_66 = arith.constant 1.000000e+00 : f32
    %307 = vector.broadcast %cst_66 : f32 to vector<8x384xf32>
    %308 = arith.addf %307, %306 : vector<8x384xf32>
    %309 = arith.divf %307, %308 : vector<8x384xf32>
    %310 = vector.extract_strided_slice %303 {offsets = [0, 384], sizes = [8, 128], strides = [1, 1]} : vector<8x512xf32> to vector<8x128xf32>
    %311 = math.tanh %310 : vector<8x128xf32>
    %312 = vector.extract_strided_slice %309 {offsets = [0, 128], sizes = [8, 128], strides = [1, 1]} : vector<8x384xf32> to vector<8x128xf32>
    %313 = arith.mulf %312, %273 : vector<8x128xf32>
    %314 = vector.extract_strided_slice %309 {offsets = [0, 0], sizes = [8, 128], strides = [1, 1]} : vector<8x384xf32> to vector<8x128xf32>
    %315 = arith.mulf %314, %311 : vector<8x128xf32>
    %316 = arith.addf %313, %315 : vector<8x128xf32>
    %317 = vector.extract_strided_slice %309 {offsets = [0, 256], sizes = [8, 128], strides = [1, 1]} : vector<8x384xf32> to vector<8x128xf32>
    %318 = math.tanh %316 : vector<8x128xf32>
    %319 = arith.mulf %317, %318 : vector<8x128xf32>
    %c7_i32 = arith.constant 7 : i32
    %320 = arith.index_cast %c7_i32 : i32 to index
    %c0_67 = arith.constant 0 : index
    %c0_68 = arith.constant 0 : index
    %321 = vector.load %arg11[%320, %c0_67, %c0_68] : memref<8x8x512xf32, #tpu.memory_space<vmem>>, vector<1x8x512xf32>
    %322 = vector.shape_cast %321 : vector<1x8x512xf32> to vector<8x512xf32>
    %323 = arith.truncf %298 : vector<8x128xf32> to vector<8x128xbf16>
    %cst_69 = arith.constant dense<0.000000e+00> : vector<8x512xf32>
    %324 = tpu.matmul %323, %12, %cst_69 {dimension_numbers = #tpu.dot_dimension_numbers<[1], [0], [0], [1], [0, 0, 1, 1], [], []>} : vector<8x128xbf16>, vector<128x512xbf16>, vector<8x512xf32> -> vector<8x512xf32>
    %325 = arith.addf %322, %324 : vector<8x512xf32>
    %326 = vector.extract_strided_slice %325 {offsets = [0, 0], sizes = [8, 384], strides = [1, 1]} : vector<8x512xf32> to vector<8x384xf32>
    %327 = arith.negf %326 : vector<8x384xf32>
    %328 = math.exp %327 : vector<8x384xf32>
    %cst_70 = arith.constant 1.000000e+00 : f32
    %329 = vector.broadcast %cst_70 : f32 to vector<8x384xf32>
    %330 = arith.addf %329, %328 : vector<8x384xf32>
    %331 = arith.divf %329, %330 : vector<8x384xf32>
    %332 = vector.extract_strided_slice %325 {offsets = [0, 384], sizes = [8, 128], strides = [1, 1]} : vector<8x512xf32> to vector<8x128xf32>
    %333 = math.tanh %332 : vector<8x128xf32>
    %334 = vector.extract_strided_slice %331 {offsets = [0, 128], sizes = [8, 128], strides = [1, 1]} : vector<8x384xf32> to vector<8x128xf32>
    %335 = arith.mulf %334, %295 : vector<8x128xf32>
    %336 = vector.extract_strided_slice %331 {offsets = [0, 0], sizes = [8, 128], strides = [1, 1]} : vector<8x384xf32> to vector<8x128xf32>
    %337 = arith.mulf %336, %333 : vector<8x128xf32>
    %338 = arith.addf %335, %337 : vector<8x128xf32>
    %339 = vector.extract_strided_slice %331 {offsets = [0, 256], sizes = [8, 128], strides = [1, 1]} : vector<8x384xf32> to vector<8x128xf32>
    %340 = math.tanh %338 : vector<8x128xf32>
    %341 = arith.mulf %339, %340 : vector<8x128xf32>
    %342 = tpu.concatenate %341, %319 in 1 : vector<8x128xf32>, vector<8x128xf32> -> vector<8x256xf32>
    %343 = arith.truncf %342 : vector<8x256xf32> to vector<8x256xbf16>
    %cst_71 = arith.constant dense<0.000000e+00> : vector<8x512xf32>
    %344 = tpu.matmul %343, %13, %cst_71 {dimension_numbers = #tpu.dot_dimension_numbers<[1], [0], [0], [1], [0, 0, 1, 1], [], []>} : vector<8x256xbf16>, vector<256x512xbf16>, vector<8x512xf32> -> vector<8x512xf32>
    %345 = vector.broadcast %14 : vector<1x512xf32> to vector<8x512xf32>
    %346 = arith.addf %344, %345 : vector<8x512xf32>
    %347 = vector.extract_strided_slice %346 {offsets = [0, 0], sizes = [8, 384], strides = [1, 1]} : vector<8x512xf32> to vector<8x384xf32>
    %348 = arith.negf %347 : vector<8x384xf32>
    %349 = math.exp %348 : vector<8x384xf32>
    %cst_72 = arith.constant 1.000000e+00 : f32
    %350 = vector.broadcast %cst_72 : f32 to vector<8x384xf32>
    %351 = arith.addf %350, %349 : vector<8x384xf32>
    %352 = arith.divf %350, %351 : vector<8x384xf32>
    %353 = vector.extract_strided_slice %346 {offsets = [0, 384], sizes = [8, 128], strides = [1, 1]} : vector<8x512xf32> to vector<8x128xf32>
    %354 = math.tanh %353 : vector<8x128xf32>
    %355 = vector.extract_strided_slice %352 {offsets = [0, 128], sizes = [8, 128], strides = [1, 1]} : vector<8x384xf32> to vector<8x128xf32>
    %356 = arith.mulf %355, %316 : vector<8x128xf32>
    %357 = vector.extract_strided_slice %352 {offsets = [0, 0], sizes = [8, 128], strides = [1, 1]} : vector<8x384xf32> to vector<8x128xf32>
    %358 = arith.mulf %357, %354 : vector<8x128xf32>
    %359 = arith.addf %356, %358 : vector<8x128xf32>
    %360 = vector.extract_strided_slice %352 {offsets = [0, 256], sizes = [8, 128], strides = [1, 1]} : vector<8x384xf32> to vector<8x128xf32>
    %361 = math.tanh %359 : vector<8x128xf32>
    %362 = arith.mulf %360, %361 : vector<8x128xf32>
    %c8_i32 = arith.constant 8 : i32
    %c0_73 = arith.constant 0 : index
    %c0_74 = arith.constant 0 : index
    %363 = vector.load %arg12[%c0_73, %c0_74] : memref<8x128xf32, #tpu.memory_space<vmem>>, vector<8x128xf32>
    tpu.vector_store %arg12[%c0_73, %c0_74], %341 {strides = array<i32>} : memref<8x128xf32, #tpu.memory_space<vmem>>, vector<8x128xf32>,
    %c0_75 = arith.constant 0 : index
    %c0_76 = arith.constant 0 : index
    %364 = vector.load %arg13[%c0_75, %c0_76] : memref<8x128xf32, #tpu.memory_space<vmem>>, vector<8x128xf32>
    tpu.vector_store %arg13[%c0_75, %c0_76], %338 {strides = array<i32>} : memref<8x128xf32, #tpu.memory_space<vmem>>, vector<8x128xf32>,
    %c0_77 = arith.constant 0 : index
    %c0_78 = arith.constant 0 : index
    %365 = vector.load %arg14[%c0_77, %c0_78] : memref<8x128xf32, #tpu.memory_space<vmem>>, vector<8x128xf32>
    tpu.vector_store %arg14[%c0_77, %c0_78], %362 {strides = array<i32>} : memref<8x128xf32, #tpu.memory_space<vmem>>, vector<8x128xf32>,
    %c0_79 = arith.constant 0 : index
    %c0_80 = arith.constant 0 : index
    %366 = vector.load %arg15[%c0_79, %c0_80] : memref<8x128xf32, #tpu.memory_space<vmem>>, vector<8x128xf32>
    tpu.vector_store %arg15[%c0_79, %c0_80], %359 {strides = array<i32>} : memref<8x128xf32, #tpu.memory_space<vmem>>, vector<8x128xf32>,
    %c0_i32_81 = arith.constant 0 : i32
    %367 = arith.cmpi eq, %arg1, %c0_i32_81 : i32
    %368 = arith.extui %367 : i1 to i32
    %c0_i32_82 = arith.constant 0 : i32
    %369 = arith.cmpi ne, %368, %c0_i32_82 : i32
    scf.if %369 {
      %370 = arith.truncf %362 : vector<8x128xf32> to vector<8x128xbf16>
      %c0_83 = arith.constant 0 : index
      %c0_84 = arith.constant 0 : index
      %371 = vector.load %arg8[%c0_83, %c0_84] : memref<128x128xbf16, #tpu.memory_space<vmem>>, vector<128x128xbf16>
      %cst_85 = arith.constant dense<0.000000e+00> : vector<8x128xf32>
      %372 = tpu.matmul %370, %371, %cst_85 {dimension_numbers = #tpu.dot_dimension_numbers<[1], [0], [0], [1], [0, 0, 1, 1], [], []>} : vector<8x128xbf16>, vector<128x128xbf16>, vector<8x128xf32> -> vector<8x128xf32>
      %c0_86 = arith.constant 0 : index
      %c0_87 = arith.constant 0 : index
      %373 = vector.load %arg9[%c0_86, %c0_87] : memref<1x128xf32, #tpu.memory_space<vmem>>, vector<1x128xf32>
      %374 = vector.broadcast %373 : vector<1x128xf32> to vector<8x128xf32>
      %375 = arith.addf %372, %374 : vector<8x128xf32>
      %c0_88 = arith.constant 0 : index
      %c0_89 = arith.constant 0 : index
      %376 = vector.load %arg10[%c0_88, %c0_89] : memref<8x128xf32, #tpu.memory_space<vmem>>, vector<8x128xf32>
      tpu.vector_store %arg10[%c0_88, %c0_89], %375 {strides = array<i32>} : memref<8x128xf32, #tpu.memory_space<vmem>>, vector<8x128xf32>,
    } else {
    }
    return
  }
  func.func @transform_0(%arg0: i32, %arg1: i32) -> (i32, i32, i32) {
    %c0_i32 = arith.constant 0 : i32
    %c0_i32_0 = arith.constant 0 : i32
    return %arg1, %arg0, %c0_i32 : i32, i32, i32
  }
  func.func @transform_1(%arg0: i32, %arg1: i32) -> (i32, i32) {
    %c0_i32 = arith.constant 0 : i32
    %c0_i32_0 = arith.constant 0 : i32
    %c0_i32_1 = arith.constant 0 : i32
    return %c0_i32, %c0_i32_0 : i32, i32
  }
  func.func @transform_2(%arg0: i32, %arg1: i32) -> (i32, i32) {
    %c0_i32 = arith.constant 0 : i32
    %c0_i32_0 = arith.constant 0 : i32
    %c0_i32_1 = arith.constant 0 : i32
    return %c0_i32, %c0_i32_0 : i32, i32
  }
  func.func @transform_3(%arg0: i32, %arg1: i32) -> (i32, i32) {
    %c0_i32 = arith.constant 0 : i32
    %c0_i32_0 = arith.constant 0 : i32
    %c0_i32_1 = arith.constant 0 : i32
    return %c0_i32, %c0_i32_0 : i32, i32
  }
  func.func @transform_4(%arg0: i32, %arg1: i32) -> (i32, i32) {
    %c0_i32 = arith.constant 0 : i32
    %c0_i32_0 = arith.constant 0 : i32
    %c0_i32_1 = arith.constant 0 : i32
    return %c0_i32, %c0_i32_0 : i32, i32
  }
  func.func @transform_5(%arg0: i32, %arg1: i32) -> (i32, i32) {
    %c0_i32 = arith.constant 0 : i32
    %c0_i32_0 = arith.constant 0 : i32
    %c0_i32_1 = arith.constant 0 : i32
    return %c0_i32, %c0_i32_0 : i32, i32
  }
  func.func @transform_6(%arg0: i32, %arg1: i32) -> (i32, i32) {
    %c0_i32 = arith.constant 0 : i32
    %c0_i32_0 = arith.constant 0 : i32
    %c0_i32_1 = arith.constant 0 : i32
    return %c0_i32, %c0_i32_0 : i32, i32
  }
  func.func @transform_7(%arg0: i32, %arg1: i32) -> (i32, i32) {
    %c0_i32 = arith.constant 0 : i32
    %c0_i32_0 = arith.constant 0 : i32
    %c0_i32_1 = arith.constant 0 : i32
    return %c0_i32, %c0_i32_0 : i32, i32
  }
  func.func @transform_8(%arg0: i32, %arg1: i32) -> (i32, i32) {
    %c0_i32 = arith.constant 0 : i32
    %c0_i32_0 = arith.constant 0 : i32
    return %arg0, %c0_i32 : i32, i32
  }
}

</mosaic_0001>

<llo_original>
// kernel: lstm_student_forward.1
$region0: #{lstm_student_forward.1}
  #allocation0 [shape = 'u32[]', space=smem, size = 0x4, offset = 0x4, fixed_abs, tag = 'smem constant byte address 0x4 - core index']
  #allocation1 [shape = 'u32[144,128]{1,0:T(1,128)}', space=vmem, size = 0x12000, scoped, tag = 'internal scratch']
  #allocation2 [shape = 'f32[8,8,512]{2,1,0:T(8,128)}', space=vmem, size = 0x20000, scoped, tag = 'scratch operand']
  #allocation3 [shape = 'f32[8,128]{1,0:T(8,128)}', space=vmem, size = 0x1000, scoped, tag = 'scratch operand']
  #allocation4 [shape = 'f32[8,128]{1,0:T(8,128)}', space=vmem, size = 0x1000, scoped, tag = 'scratch operand']
  #allocation5 [shape = 'f32[8,128]{1,0:T(8,128)}', space=vmem, size = 0x1000, scoped, tag = 'scratch operand']
  #allocation6 [shape = 'f32[8,128]{1,0:T(8,128)}', space=vmem, size = 0x1000, scoped, tag = 'scratch operand']
  %s0 = inlined_call_operand.vmem [shape: bf16[8,8,128], index: 0, kind: input, shape index: {}]
  %s1 = inlined_call_operand.hbm [shape: bf16[128,512], index: 1, kind: input, shape index: {}]
  %s2 = inlined_call_operand.hbm [shape: bf16[128,512], index: 2, kind: input, shape index: {}]
  %s3 = inlined_call_operand.vmem [shape: f32[1,512], index: 3, kind: input, shape index: {}]
  %s4 = inlined_call_operand.hbm [shape: bf16[256,512], index: 4, kind: input, shape index: {}]
  %s5 = inlined_call_operand.vmem [shape: f32[1,512], index: 5, kind: input, shape index: {}]
  %s6 = inlined_call_operand.vmem [shape: bf16[128,128], index: 6, kind: input, shape index: {}]
  %s7 = inlined_call_operand.vmem [shape: f32[1,128], index: 7, kind: input, shape index: {}]
  %s8 = inlined_call_operand.vmem [shape: f32[8,128], index: 8, kind: output, shape index: {}]
  %s9 = sld [smem:[#allocation0]]
  $region62: #{lstm_student_forward.1} parent=0
    _
  %s11 = ssub.s32 1, %s9
  %s12 = scalar_select 0, %s11, %s9
  $region1: #{lstm_student_forward.1} parent=0
    #allocation7 [shape = 'u8[131072]{0}', space=vmem, size = 0x20000, scoped, tag = 'input window, operand 1, single buffered']
    #allocation8 [shape = 's32[1]{0}', space=sflag, size = 0x4, scoped, tag = 'scoped memory for lstm_student_forward.1']
    #allocation9 [shape = 'u8[131072]{0}', space=vmem, size = 0x20000, scoped, tag = 'input window, operand 2, single buffered']
    #allocation10 [shape = 's32[1]{0}', space=sflag, size = 0x4, scoped, tag = 'scoped memory for lstm_student_forward.1']
    #allocation11 [shape = 'u8[262144]{0}', space=vmem, size = 0x40000, scoped, tag = 'input window, operand 4, single buffered']
    %13 = vsyncpa [#allocation8], 0
    %14 = vsyncpa [#allocation10], 0
    // Predicated region
    $region2: #{lstm_student_forward.1} parent=1 // pred_check
      _
    $region3: #{lstm_student_forward.1} parent=1 // pred_check_branch
      %16 = sbr.rel (0) target = $region5
    $region4: #{lstm_student_forward.1} parent=1 // pred_region
      _
    $region5: #{lstm_student_forward.1} parent=1 // pred_fallthru
      _
    // Predicated region
    $region6: #{lstm_student_forward.1} parent=1 // pred_check
      _
    $region7: #{lstm_student_forward.1} parent=1 // pred_check_branch
      %18 = sbr.rel (0) target = $region9
    $region8: #{lstm_student_forward.1} parent=1 // pred_region
      %s20 = ssub.s32 4096, 4096
      %21 = vsyncadd [#allocation8], %s20
      %s22 = sshll.u32 [#allocation7], 4
      %s23 = int_to_ptr.vmem [resolvable:$true] %s22
      %28 = dma.hbm_to_vmem [thread:$0]  %s1, 4096, %s23, [#allocation8], 256, 256, 16
    $region9: #{lstm_student_forward.1} parent=1 // pred_fallthru
      _
    // Predicated region
    $region10: #{lstm_student_forward.1} parent=1 // pred_check
      _
    $region11: #{lstm_student_forward.1} parent=1 // pred_check_branch
      %30 = sbr.rel (0) target = $region13
    $region12: #{lstm_student_forward.1} parent=1 // pred_region
      %s32 = ssub.s32 4096, 4096
      %33 = vsyncadd [#allocation10], %s32
      %s34 = sshll.u32 [#allocation9], 4
      %s35 = int_to_ptr.vmem [resolvable:$true] %s34
      %40 = dma.hbm_to_vmem [thread:$0]  %s2, 4096, %s35, [#allocation10], 256, 256, 16
    $region13: #{lstm_student_forward.1} parent=1 // pred_fallthru
      _
    // Predicated region
    $region14: #{lstm_student_forward.1} parent=1 // pred_check
      _
    $region15: #{lstm_student_forward.1} parent=1 // pred_check_branch
      %42 = sbr.rel (0) target = $region17
    $region16: #{lstm_student_forward.1} parent=1 // pred_region
      _
    $region17: #{lstm_student_forward.1} parent=1 // pred_fallthru
      _
    // Predicated region
    $region18: #{lstm_student_forward.1} parent=1 // pred_check
      _
    $region19: #{lstm_student_forward.1} parent=1 // pred_check_branch
      %44 = sbr.rel (0) target = $region21
    $region20: #{lstm_student_forward.1} parent=1 // pred_region
      %s46 = ssub.s32 8192, 8192
      %47 = vsyncadd [#allocation10], %s46
      %s48 = sshll.u32 [#allocation11], 4
      %s49 = int_to_ptr.vmem [resolvable:$true] %s48
      %54 = dma.hbm_to_vmem [thread:$0]  %s4, 8192, %s49, [#allocation10], 256, 256, 16
    $region21: #{lstm_student_forward.1} parent=1 // pred_fallthru
      _
    // Predicated region
    $region22: #{lstm_student_forward.1} parent=1 // pred_check
      _
    $region23: #{lstm_student_forward.1} parent=1 // pred_check_branch
      %56 = sbr.rel (0) target = $region25
    $region24: #{lstm_student_forward.1} parent=1 // pred_region
      _
    $region25: #{lstm_student_forward.1} parent=1 // pred_fallthru
      _
    // Predicated region
    $region26: #{lstm_student_forward.1} parent=1 // pred_check
      _
    $region27: #{lstm_student_forward.1} parent=1 // pred_check_branch
      %58 = sbr.rel (0) target = $region29
    $region28: #{lstm_student_forward.1} parent=1 // pred_region
      _
    $region29: #{lstm_student_forward.1} parent=1 // pred_fallthru
      _
    // Predicated region
    $region30: #{lstm_student_forward.1} parent=1 // pred_check
      _
    $region31: #{lstm_student_forward.1} parent=1 // pred_check_branch
      %60 = sbr.rel (0) target = $region33
    $region32: #{lstm_student_forward.1} parent=1 // pred_region
      _
    $region33: #{lstm_student_forward.1} parent=1 // pred_fallthru
      _
    // Predicated region
    $region34: #{lstm_student_forward.1} parent=1 // pred_check
      _
    $region35: #{lstm_student_forward.1} parent=1 // pred_check_branch
      %62 = sbr.rel (0) target = $region37
    $region36: #{lstm_student_forward.1} parent=1 // pred_region
      %63 = dma.done [#allocation8], 4096
    $region37: #{lstm_student_forward.1} parent=1 // pred_fallthru
      _
    // Predicated region
    $region38: #{lstm_student_forward.1} parent=1 // pred_check
      _
    $region39: #{lstm_student_forward.1} parent=1 // pred_check_branch
      %65 = sbr.rel (0) target = $region41
    $region40: #{lstm_student_forward.1} parent=1 // pred_region
      %66 = dma.done [#allocation10], 4096
    $region41: #{lstm_student_forward.1} parent=1 // pred_fallthru
      _
    // Predicated region
    $region42: #{lstm_student_forward.1} parent=1 // pred_check
      _
    $region43: #{lstm_student_forward.1} parent=1 // pred_check_branch
      %68 = sbr.rel (0) target = $region45
    $region44: #{lstm_student_forward.1} parent=1 // pred_region
      %69 = dma.done [#allocation10], 8192
    $region45: #{lstm_student_forward.1} parent=1 // pred_fallthru
      _
    %p71 = scmp.eq.s32.totalorder 0, 0
    // Predicated region
    $region46: #{lstm_student_forward.1} parent=1 // pred_check
      %p72 = pneg %p71
    $region47: #{lstm_student_forward.1} parent=1 // pred_check_branch
      %74 = sbr.rel (%p72) target = $region49
    $region48: #{lstm_student_forward.1} parent=1 // pred_region
      %75 = vst [vmem:[#allocation3] sm:$0xff] 0.0
      %76 = vst [vmem:[#allocation4] sm:$0xff] 0.0
      %77 = vst [vmem:[#allocation5] sm:$0xff] 0.0
      %78 = vst [vmem:[#allocation6] sm:$0xff] 0.0
    $region49: #{lstm_student_forward.1} parent=1 // pred_fallthru
      _
    %v79 = vld [vmem:[%s0] sm:$0xf]
    %v80 = vld [vmem:[%s0 + $0x4] sm:$0xf]
    %v81 = vld [vmem:[%s0 + $0x8] sm:$0xf]
    %v82 = vld [vmem:[%s0 + $0xc] sm:$0xf]
    %v83 = vld [vmem:[%s0 + $0x10] sm:$0xf]
    %v84 = vld [vmem:[%s0 + $0x14] sm:$0xf]
    %v85 = vld [vmem:[%s0 + $0x18] sm:$0xf]
    %v86 = vld [vmem:[%s0 + $0x1c] sm:$0xf]
    %v87 = vld [vmem:[#allocation7] sm:$0xff]
    %v88 = vld [vmem:[#allocation7 + $0x8] sm:$0xff]
    %v89 = vld [vmem:[#allocation7 + $0x10] sm:$0xff]
    %v90 = vld [vmem:[#allocation7 + $0x18] sm:$0xff]
    %v91 = vld [vmem:[#allocation7 + $0x20] sm:$0xff]
    %v92 = vld [vmem:[#allocation7 + $0x28] sm:$0xff]
    %v93 = vld [vmem:[#allocation7 + $0x30] sm:$0xff]
    %v94 = vld [vmem:[#allocation7 + $0x38] sm:$0xff]
    %v95 = vld [vmem:[#allocation7 + $0x40] sm:$0xff]
    %v96 = vld [vmem:[#allocation7 + $0x48] sm:$0xff]
    %v97 = vld [vmem:[#allocation7 + $0x50] sm:$0xff]
    %v98 = vld [vmem:[#allocation7 + $0x58] sm:$0xff]
    %v99 = vld [vmem:[#allocation7 + $0x60] sm:$0xff]
    %v100 = vld [vmem:[#allocation7 + $0x68] sm:$0xff]
    %v101 = vld [vmem:[#allocation7 + $0x70] sm:$0xff]
    %v102 = vld [vmem:[#allocation7 + $0x78] sm:$0xff]
    %v103 = vld [vmem:[#allocation7 + $0x80] sm:$0xff]
    %v104 = vld [vmem:[#allocation7 + $0x88] sm:$0xff]
    %v105 = vld [vmem:[#allocation7 + $0x90] sm:$0xff]
    %v106 = vld [vmem:[#allocation7 + $0x98] sm:$0xff]
    %v107 = vld [vmem:[#allocation7 + $0xa0] sm:$0xff]
    %v108 = vld [vmem:[#allocation7 + $0xa8] sm:$0xff]
    %v109 = vld [vmem:[#allocation7 + $0xb0] sm:$0xff]
    %v110 = vld [vmem:[#allocation7 + $0xb8] sm:$0xff]
    %v111 = vld [vmem:[#allocation7 + $0xc0] sm:$0xff]
    %v112 = vld [vmem:[#allocation7 + $0xc8] sm:$0xff]
    %v113 = vld [vmem:[#allocation7 + $0xd0] sm:$0xff]
    %v114 = vld [vmem:[#allocation7 + $0xd8] sm:$0xff]
    %v115 = vld [vmem:[#allocation7 + $0xe0] sm:$0xff]
    %v116 = vld [vmem:[#allocation7 + $0xe8] sm:$0xff]
    %v117 = vld [vmem:[#allocation7 + $0xf0] sm:$0xff]
    %v118 = vld [vmem:[#allocation7 + $0xf8] sm:$0xff]
    %v119 = vld [vmem:[%s3] sm:$0xf]
    %v121 = vlaneseq
    %v122 = vshrl.u32 %v121, 7
    %v123 = vsub.s32 0, %v122
    %v124 = vrot.slane %v119, %v123
    %v125 = vlaneseq
    %v126 = vshrl.u32 %v125, 7
    %v127 = vsub.s32 1, %v126
    %v128 = vrot.slane %v119, %v127
    %v129 = vlaneseq
    %v130 = vshrl.u32 %v129, 7
    %v131 = vsub.s32 2, %v130
    %v132 = vrot.slane %v119, %v131
    %v133 = vlaneseq
    %v134 = vshrl.u32 %v133, 7
    %v135 = vsub.s32 3, %v134
    %v136 = vrot.slane %v119, %v135
    %v149 = vunpack.c.l.b16 %v79
    %v150 = vunpack.c.l.b16 %v80
    %v151 = vunpack.c.l.b16 %v81
    %v152 = vunpack.c.l.b16 %v82
    %v153 = vunpack.c.l.b16 %v83
    %v154 = vunpack.c.l.b16 %v84
    %v155 = vunpack.c.l.b16 %v85
    %v156 = vunpack.c.l.b16 %v86
    %v157 = vpack.c.b16 %v150, %v149
    %v158 = vpack.c.b16 %v152, %v151
    %v159 = vpack.c.b16 %v154, %v153
    %v160 = vpack.c.b16 %v156, %v155
    %v197 = vunpack.c.l.b16 %v87
    %v198 = vunpack.c.h.b16 %v87
    %v199 = vunpack.c.l.b16 %v88
    %v200 = vunpack.c.h.b16 %v88
    %v201 = vunpack.c.l.b16 %v89
    %v202 = vunpack.c.h.b16 %v89
    %v203 = vunpack.c.l.b16 %v90
    %v204 = vunpack.c.h.b16 %v90
    %v205 = vunpack.c.l.b16 %v91
    %v206 = vunpack.c.h.b16 %v91
    %v207 = vunpack.c.l.b16 %v92
    %v208 = vunpack.c.h.b16 %v92
    %v209 = vunpack.c.l.b16 %v93
    %v210 = vunpack.c.h.b16 %v93
    %v211 = vunpack.c.l.b16 %v94
    %v212 = vunpack.c.h.b16 %v94
    %v213 = vunpack.c.l.b16 %v95
    %v214 = vunpack.c.h.b16 %v95
    %v215 = vunpack.c.l.b16 %v96
    %v216 = vunpack.c.h.b16 %v96
    %v217 = vunpack.c.l.b16 %v97
    %v218 = vunpack.c.h.b16 %v97
    %v219 = vunpack.c.l.b16 %v98
    %v220 = vunpack.c.h.b16 %v98
    %v221 = vunpack.c.l.b16 %v99
    %v222 = vunpack.c.h.b16 %v99
    %v223 = vunpack.c.l.b16 %v100
    %v224 = vunpack.c.h.b16 %v100
    %v225 = vunpack.c.l.b16 %v101
    %v226 = vunpack.c.h.b16 %v101
    %v227 = vunpack.c.l.b16 %v102
    %v228 = vunpack.c.h.b16 %v102
    %v229 = vunpack.c.l.b16 %v103
    %v230 = vunpack.c.h.b16 %v103
    %v231 = vunpack.c.l.b16 %v104
    %v232 = vunpack.c.h.b16 %v104
    %v233 = vunpack.c.l.b16 %v105
    %v234 = vunpack.c.h.b16 %v105
    %v235 = vunpack.c.l.b16 %v106
    %v236 = vunpack.c.h.b16 %v106
    %v237 = vunpack.c.l.b16 %v107
    %v238 = vunpack.c.h.b16 %v107
    %v239 = vunpack.c.l.b16 %v108
    %v240 = vunpack.c.h.b16 %v108
    %v241 = vunpack.c.l.b16 %v109
    %v242 = vunpack.c.h.b16 %v109
    %v243 = vunpack.c.l.b16 %v110
    %v244 = vunpack.c.h.b16 %v110
    %v245 = vunpack.c.l.b16 %v111
    %v246 = vunpack.c.h.b16 %v111
    %v247 = vunpack.c.l.b16 %v112
    %v248 = vunpack.c.h.b16 %v112
    %v249 = vunpack.c.l.b16 %v113
    %v250 = vunpack.c.h.b16 %v113
    %v251 = vunpack.c.l.b16 %v114
    %v252 = vunpack.c.h.b16 %v114
    %v253 = vunpack.c.l.b16 %v115
    %v254 = vunpack.c.h.b16 %v115
    %v255 = vunpack.c.l.b16 %v116
    %v256 = vunpack.c.h.b16 %v116
    %v257 = vunpack.c.l.b16 %v117
    %v258 = vunpack.c.h.b16 %v117
    %v259 = vunpack.c.l.b16 %v118
    %v260 = vunpack.c.h.b16 %v118
    %v261 = vpack.c.b16 %v201, %v197
    %v262 = vpack.c.b16 %v202, %v198
    %v263 = vpack.c.b16 %v203, %v199
    %v264 = vpack.c.b16 %v204, %v200
    %v265 = vpack.c.b16 %v209, %v205
    %v266 = vpack.c.b16 %v210, %v206
    %v267 = vpack.c.b16 %v211, %v207
    %v268 = vpack.c.b16 %v212, %v208
    %v269 = vpack.c.b16 %v217, %v213
    %v270 = vpack.c.b16 %v218, %v214
    %v271 = vpack.c.b16 %v219, %v215
    %v272 = vpack.c.b16 %v220, %v216
    %v273 = vpack.c.b16 %v225, %v221
    %v274 = vpack.c.b16 %v226, %v222
    %v275 = vpack.c.b16 %v227, %v223
    %v276 = vpack.c.b16 %v228, %v224
    %v277 = vpack.c.b16 %v233, %v229
    %v278 = vpack.c.b16 %v234, %v230
    %v279 = vpack.c.b16 %v235, %v231
    %v280 = vpack.c.b16 %v236, %v232
    %v281 = vpack.c.b16 %v241, %v237
    %v282 = vpack.c.b16 %v242, %v238
    %v283 = vpack.c.b16 %v243, %v239
    %v284 = vpack.c.b16 %v244, %v240
    %v285 = vpack.c.b16 %v249, %v245
    %v286 = vpack.c.b16 %v250, %v246
    %v287 = vpack.c.b16 %v251, %v247
    %v288 = vpack.c.b16 %v252, %v248
    %v289 = vpack.c.b16 %v257, %v253
    %v290 = vpack.c.b16 %v258, %v254
    %v291 = vpack.c.b16 %v259, %v255
    %v292 = vpack.c.b16 %v260, %v256
    %325 = vmatprep.subr.bf16.mxu0 %v262
    %326 = vmatpush1.bf16.msra.mxu0 %v261
    %327 = vmatprep.subr.bf16.mxu0 %v266
    %328 = vmatpush1.bf16.msra.mxu0 %v265
    %329 = vmatprep.subr.bf16.mxu0 %v270
    %330 = vmatpush1.bf16.msra.mxu0 %v269
    %331 = vmatprep.subr.bf16.mxu0 %v274
    %332 = vmatpush1.bf16.msra.mxu0 %v273
    %333 = vmatprep.subr.bf16.mxu0 %v278
    %334 = vmatpush1.bf16.msra.mxu0 %v277
    %335 = vmatprep.subr.bf16.mxu0 %v282
    %336 = vmatpush1.bf16.msra.mxu0 %v281
    %337 = vmatprep.subr.bf16.mxu0 %v286
    %338 = vmatpush1.bf16.msra.mxu0 %v285
    %339 = vmatprep.subr.bf16.mxu0 %v290
    %340 = vmatpush1.bf16.msra.mxu0 %v289
    %341 = vmatprep.subr.bf16.mxu0 0
    %342 = vmatpush1.bf16.msra.mxu0 0
    %343 = vmatprep.subr.bf16.mxu0 0
    %344 = vmatpush1.bf16.msra.mxu0 0
    %345 = vmatprep.subr.bf16.mxu0 0
    %346 = vmatpush1.bf16.msra.mxu0 0
    %347 = vmatprep.subr.bf16.mxu0 0
    %348 = vmatpush1.bf16.msra.mxu0 0
    %349 = vmatprep.subr.bf16.mxu0 0
    %350 = vmatpush1.bf16.msra.mxu0 0
    %351 = vmatprep.subr.bf16.mxu0 0
    %352 = vmatpush1.bf16.msra.mxu0 0
    %353 = vmatprep.subr.bf16.mxu0 0
    %354 = vmatpush1.bf16.msra.mxu0 0
    %355 = vmatprep.subr.bf16.mxu0 0
    %356 = vmatpush1.bf16.msra.mxu0 0
    %357 = vmatprep.mubr.bf16.mxu0 0
    %358 = vmatmul.mubr.bf16.gmra.mrb[0].mxu0 %v157
    %v359 = vpop.f32.mrb[0].mxu0
    %v360 = vadd.f32 %v124, %v359
    %v361 = vpop.f32.mrb[0].mxu0
    %v362 = vadd.f32 %v128, %v361
    %v363 = vpop.f32.mrb[0].mxu0
    %v364 = vadd.f32 %v124, %v363
    %v365 = vpop.f32.mrb[0].mxu0
    %v366 = vadd.f32 %v128, %v365
    %367 = vmatprep.mubr.bf16.mxu0 0
    %368 = vmatmul.mubr.bf16.gmra.mrb[0].mxu0 %v158
    %v369 = vpop.f32.mrb[0].mxu0
    %v370 = vadd.f32 %v124, %v369
    %v371 = vpop.f32.mrb[0].mxu0
    %v372 = vadd.f32 %v128, %v371
    %v373 = vpop.f32.mrb[0].mxu0
    %v374 = vadd.f32 %v124, %v373
    %v375 = vpop.f32.mrb[0].mxu0
    %v376 = vadd.f32 %v128, %v375
    %377 = vmatprep.mubr.bf16.mxu0 0
    %378 = vmatmul.mubr.bf16.gmra.mrb[0].mxu0 %v159
    %v379 = vpop.f32.mrb[0].mxu0
    %v380 = vadd.f32 %v124, %v379
    %v381 = vpop.f32.mrb[0].mxu0
    %v382 = vadd.f32 %v128, %v381
    %v383 = vpop.f32.mrb[0].mxu0
    %v384 = vadd.f32 %v124, %v383
    %v385 = vpop.f32.mrb[0].mxu0
    %v386 = vadd.f32 %v128, %v385
    %387 = vmatprep.mubr.bf16.mxu0 0
    %388 = vmatmul.mubr.bf16.gmra.mrb[0].mxu0 %v160
    %v389 = vpop.f32.mrb[0].mxu0
    %v390 = vadd.f32 %v124, %v389
    %v391 = vpop.f32.mrb[0].mxu0
    %v392 = vadd.f32 %v128, %v391
    %v393 = vpop.f32.mrb[0].mxu0
    %v394 = vadd.f32 %v124, %v393
    %v395 = vpop.f32.mrb[0].mxu0
    %v396 = vadd.f32 %v128, %v395
    %397 = vdwg.mxu0
    %398 = vmatprep.subr.bf16.mxu0 %v264
    %399 = vmatpush1.bf16.msra.mxu0 %v263
    %400 = vmatprep.subr.bf16.mxu0 %v268
    %401 = vmatpush1.bf16.msra.mxu0 %v267
    %402 = vmatprep.subr.bf16.mxu0 %v272
    %403 = vmatpush1.bf16.msra.mxu0 %v271
    %404 = vmatprep.subr.bf16.mxu0 %v276
    %405 = vmatpush1.bf16.msra.mxu0 %v275
    %406 = vmatprep.subr.bf16.mxu0 %v280
    %407 = vmatpush1.bf16.msra.mxu0 %v279
    %408 = vmatprep.subr.bf16.mxu0 %v284
    %409 = vmatpush1.bf16.msra.mxu0 %v283
    %410 = vmatprep.subr.bf16.mxu0 %v288
    %411 = vmatpush1.bf16.msra.mxu0 %v287
    %412 = vmatprep.subr.bf16.mxu0 %v292
    %413 = vmatpush1.bf16.msra.mxu0 %v291
    %414 = vmatprep.subr.bf16.mxu0 0
    %415 = vmatpush1.bf16.msra.mxu0 0
    %416 = vmatprep.subr.bf16.mxu0 0
    %417 = vmatpush1.bf16.msra.mxu0 0
    %418 = vmatprep.subr.bf16.mxu0 0
    %419 = vmatpush1.bf16.msra.mxu0 0
    %420 = vmatprep.subr.bf16.mxu0 0
    %421 = vmatpush1.bf16.msra.mxu0 0
    %422 = vmatprep.subr.bf16.mxu0 0
    %423 = vmatpush1.bf16.msra.mxu0 0
    %424 = vmatprep.subr.bf16.mxu0 0
    %425 = vmatpush1.bf16.msra.mxu0 0
    %426 = vmatprep.subr.bf16.mxu0 0
    %427 = vmatpush1.bf16.msra.mxu0 0
    %428 = vmatprep.subr.bf16.mxu0 0
    %429 = vmatpush1.bf16.msra.mxu0 0
    %430 = vmatprep.mubr.bf16.mxu0 0
    %431 = vmatmul.mubr.bf16.gmra.mrb[0].mxu0 %v157
    %v432 = vpop.f32.mrb[0].mxu0
    %v433 = vadd.f32 %v132, %v432
    %v434 = vpop.f32.mrb[0].mxu0
    %v435 = vadd.f32 %v136, %v434
    %v436 = vpop.f32.mrb[0].mxu0
    %v437 = vadd.f32 %v132, %v436
    %v438 = vpop.f32.mrb[0].mxu0
    %v439 = vadd.f32 %v136, %v438
    %440 = vmatprep.mubr.bf16.mxu0 0
    %441 = vmatmul.mubr.bf16.gmra.mrb[0].mxu0 %v158
    %v442 = vpop.f32.mrb[0].mxu0
    %v443 = vadd.f32 %v132, %v442
    %v444 = vpop.f32.mrb[0].mxu0
    %v445 = vadd.f32 %v136, %v444
    %v446 = vpop.f32.mrb[0].mxu0
    %v447 = vadd.f32 %v132, %v446
    %v448 = vpop.f32.mrb[0].mxu0
    %v449 = vadd.f32 %v136, %v448
    %450 = vmatprep.mubr.bf16.mxu0 0
    %451 = vmatmul.mubr.bf16.gmra.mrb[0].mxu0 %v159
    %v452 = vpop.f32.mrb[0].mxu0
    %v453 = vadd.f32 %v132, %v452
    %v454 = vpop.f32.mrb[0].mxu0
    %v455 = vadd.f32 %v136, %v454
    %v456 = vpop.f32.mrb[0].mxu0
    %v457 = vadd.f32 %v132, %v456
    %v458 = vpop.f32.mrb[0].mxu0
    %v459 = vadd.f32 %v136, %v458
    %460 = vmatprep.mubr.bf16.mxu0 0
    %461 = vmatmul.mubr.bf16.gmra.mrb[0].mxu0 %v160
    %v462 = vpop.f32.mrb[0].mxu0
    %v463 = vadd.f32 %v132, %v462
    %v464 = vpop.f32.mrb[0].mxu0
    %v465 = vadd.f32 %v136, %v464
    %v466 = vpop.f32.mrb[0].mxu0
    %v467 = vadd.f32 %v132, %v466
    %v468 = vpop.f32.mrb[0].mxu0
    %v469 = vadd.f32 %v136, %v468
    %470 = vdwg.mxu0
    %471 = vst [vmem:[#allocation2] sm:$0xff] %v360
    %472 = vst [vmem:[#allocation2 + $0x8] sm:$0xff] %v362
    %473 = vst [vmem:[#allocation2 + $0x10] sm:$0xff] %v433
    %474 = vst [vmem:[#allocation2 + $0x18] sm:$0xff] %v435
    %475 = vst [vmem:[#allocation2 + $0x20] sm:$0xff] %v364
    %476 = vst [vmem:[#allocation2 + $0x28] sm:$0xff] %v366
    %477 = vst [vmem:[#allocation2 + $0x30] sm:$0xff] %v437
    %478 = vst [vmem:[#allocation2 + $0x38] sm:$0xff] %v439
    %479 = vst [vmem:[#allocation2 + $0x40] sm:$0xff] %v370
    %480 = vst [vmem:[#allocation2 + $0x48] sm:$0xff] %v372
    %481 = vst [vmem:[#allocation2 + $0x50] sm:$0xff] %v443
    %482 = vst [vmem:[#allocation2 + $0x58] sm:$0xff] %v445
    %483 = vst [vmem:[#allocation2 + $0x60] sm:$0xff] %v374
    %484 = vst [vmem:[#allocation2 + $0x68] sm:$0xff] %v376
    %485 = vst [vmem:[#allocation2 + $0x70] sm:$0xff] %v447
    %486 = vst [vmem:[#allocation2 + $0x78] sm:$0xff] %v449
    %487 = vst [vmem:[#allocation2 + $0x80] sm:$0xff] %v380
    %488 = vst [vmem:[#allocation2 + $0x88] sm:$0xff] %v382
    %489 = vst [vmem:[#allocation2 + $0x90] sm:$0xff] %v453
    %490 = vst [vmem:[#allocation2 + $0x98] sm:$0xff] %v455
    %491 = vst [vmem:[#allocation2 + $0xa0] sm:$0xff] %v384
    %492 = vst [vmem:[#allocation2 + $0xa8] sm:$0xff] %v386
    %493 = vst [vmem:[#allocation2 + $0xb0] sm:$0xff] %v457
    %494 = vst [vmem:[#allocation2 + $0xb8] sm:$0xff] %v459
    %495 = vst [vmem:[#allocation2 + $0xc0] sm:$0xff] %v390
    %496 = vst [vmem:[#allocation2 + $0xc8] sm:$0xff] %v392
    %497 = vst [vmem:[#allocation2 + $0xd0] sm:$0xff] %v463
    %498 = vst [vmem:[#allocation2 + $0xd8] sm:$0xff] %v465
    %499 = vst [vmem:[#allocation2 + $0xe0] sm:$0xff] %v394
    %500 = vst [vmem:[#allocation2 + $0xe8] sm:$0xff] %v396
    %501 = vst [vmem:[#allocation2 + $0xf0] sm:$0xff] %v467
    %502 = vst [vmem:[#allocation2 + $0xf8] sm:$0xff] %v469
    %v503 = vld [vmem:[#allocation9] sm:$0xff]
    %v504 = vld [vmem:[#allocation9 + $0x8] sm:$0xff]
    %v505 = vld [vmem:[#allocation9 + $0x10] sm:$0xff]
    %v506 = vld [vmem:[#allocation9 + $0x18] sm:$0xff]
    %v507 = vld [vmem:[#allocation9 + $0x20] sm:$0xff]
    %v508 = vld [vmem:[#allocation9 + $0x28] sm:$0xff]
    %v509 = vld [vmem:[#allocation9 + $0x30] sm:$0xff]
    %v510 = vld [vmem:[#allocation9 + $0x38] sm:$0xff]
    %v511 = vld [vmem:[#allocation9 + $0x40] sm:$0xff]
    %v512 = vld [vmem:[#allocation9 + $0x48] sm:$0xff]
    %v513 = vld [vmem:[#allocation9 + $0x50] sm:$0xff]
    %v514 = vld [vmem:[#allocation9 + $0x58] sm:$0xff]
    %v515 = vld [vmem:[#allocation9 + $0x60] sm:$0xff]
    %v516 = vld [vmem:[#allocation9 + $0x68] sm:$0xff]
    %v517 = vld [vmem:[#allocation9 + $0x70] sm:$0xff]
    %v518 = vld [vmem:[#allocation9 + $0x78] sm:$0xff]
    %v519 = vld [vmem:[#allocation9 + $0x80] sm:$0xff]
    %v520 = vld [vmem:[#allocation9 + $0x88] sm:$0xff]
    %v521 = vld [vmem:[#allocation9 + $0x90] sm:$0xff]
    %v522 = vld [vmem:[#allocation9 + $0x98] sm:$0xff]
    %v523 = vld [vmem:[#allocation9 + $0xa0] sm:$0xff]
    %v524 = vld [vmem:[#allocation9 + $0xa8] sm:$0xff]
    %v525 = vld [vmem:[#allocation9 + $0xb0] sm:$0xff]
    %v526 = vld [vmem:[#allocation9 + $0xb8] sm:$0xff]
    %v527 = vld [vmem:[#allocation9 + $0xc0] sm:$0xff]
    %v528 = vld [vmem:[#allocation9 + $0xc8] sm:$0xff]
    %v529 = vld [vmem:[#allocation9 + $0xd0] sm:$0xff]
    %v530 = vld [vmem:[#allocation9 + $0xd8] sm:$0xff]
    %v531 = vld [vmem:[#allocation9 + $0xe0] sm:$0xff]
    %v532 = vld [vmem:[#allocation9 + $0xe8] sm:$0xff]
    %v533 = vld [vmem:[#allocation9 + $0xf0] sm:$0xff]
    %v534 = vld [vmem:[#allocation9 + $0xf8] sm:$0xff]
    %v535 = vld [vmem:[#allocation11] sm:$0xff]
    %v536 = vld [vmem:[#allocation11 + $0x8] sm:$0xff]
    %v537 = vld [vmem:[#allocation11 + $0x10] sm:$0xff]
    %v538 = vld [vmem:[#allocation11 + $0x18] sm:$0xff]
    %v539 = vld [vmem:[#allocation11 + $0x20] sm:$0xff]
    %v540 = vld [vmem:[#allocation11 + $0x28] sm:$0xff]
    %v541 = vld [vmem:[#allocation11 + $0x30] sm:$0xff]
    %v542 = vld [vmem:[#allocation11 + $0x38] sm:$0xff]
    %v543 = vld [vmem:[#allocation11 + $0x40] sm:$0xff]
    %v544 = vld [vmem:[#allocation11 + $0x48] sm:$0xff]
    %v545 = vld [vmem:[#allocation11 + $0x50] sm:$0xff]
    %v546 = vld [vmem:[#allocation11 + $0x58] sm:$0xff]
    %v547 = vld [vmem:[#allocation11 + $0x60] sm:$0xff]
    %v548 = vld [vmem:[#allocation11 + $0x68] sm:$0xff]
    %v549 = vld [vmem:[#allocation11 + $0x70] sm:$0xff]
    %v550 = vld [vmem:[#allocation11 + $0x78] sm:$0xff]
    %v551 = vld [vmem:[#allocation11 + $0x80] sm:$0xff]
    %v552 = vld [vmem:[#allocation11 + $0x88] sm:$0xff]
    %v553 = vld [vmem:[#allocation11 + $0x90] sm:$0xff]
    %v554 = vld [vmem:[#allocation11 + $0x98] sm:$0xff]
    %v555 = vld [vmem:[#allocation11 + $0xa0] sm:$0xff]
    %v556 = vld [vmem:[#allocation11 + $0xa8] sm:$0xff]
    %v557 = vld [vmem:[#allocation11 + $0xb0] sm:$0xff]
    %v558 = vld [vmem:[#allocation11 + $0xb8] sm:$0xff]
    %v559 = vld [vmem:[#allocation11 + $0xc0] sm:$0xff]
    %v560 = vld [vmem:[#allocation11 + $0xc8] sm:$0xff]
    %v561 = vld [vmem:[#allocation11 + $0xd0] sm:$0xff]
    %v562 = vld [vmem:[#allocation11 + $0xd8] sm:$0xff]
    %v563 = vld [vmem:[#allocation11 + $0xe0] sm:$0xff]
    %v564 = vld [vmem:[#allocation11 + $0xe8] sm:$0xff]
    %v565 = vld [vmem:[#allocation11 + $0xf0] sm:$0xff]
    %v566 = vld [vmem:[#allocation11 + $0xf8] sm:$0xff]
    %v567 = vld [vmem:[#allocation11 + $0x100] sm:$0xff]
    %v568 = vld [vmem:[#allocation11 + $0x108] sm:$0xff]
    %v569 = vld [vmem:[#allocation11 + $0x110] sm:$0xff]
    %v570 = vld [vmem:[#allocation11 + $0x118] sm:$0xff]
    %v571 = vld [vmem:[#allocation11 + $0x120] sm:$0xff]
    %v572 = vld [vmem:[#allocation11 + $0x128] sm:$0xff]
    %v573 = vld [vmem:[#allocation11 + $0x130] sm:$0xff]
    %v574 = vld [vmem:[#allocation11 + $0x138] sm:$0xff]
    %v575 = vld [vmem:[#allocation11 + $0x140] sm:$0xff]
    %v576 = vld [vmem:[#allocation11 + $0x148] sm:$0xff]
    %v577 = vld [vmem:[#allocation11 + $0x150] sm:$0xff]
    %v578 = vld [vmem:[#allocation11 + $0x158] sm:$0xff]
    %v579 = vld [vmem:[#allocation11 + $0x160] sm:$0xff]
    %v580 = vld [vmem:[#allocation11 + $0x168] sm:$0xff]
    %v581 = vld [vmem:[#allocation11 + $0x170] sm:$0xff]
    %v582 = vld [vmem:[#allocation11 + $0x178] sm:$0xff]
    %v583 = vld [vmem:[#allocation11 + $0x180] sm:$0xff]
    %v584 = vld [vmem:[#allocation11 + $0x188] sm:$0xff]
    %v585 = vld [vmem:[#allocation11 + $0x190] sm:$0xff]
    %v586 = vld [vmem:[#allocation11 + $0x198] sm:$0xff]
    %v587 = vld [vmem:[#allocation11 + $0x1a0] sm:$0xff]
    %v588 = vld [vmem:[#allocation11 + $0x1a8] sm:$0xff]
    %v589 = vld [vmem:[#allocation11 + $0x1b0] sm:$0xff]
    %v590 = vld [vmem:[#allocation11 + $0x1b8] sm:$0xff]
    %v591 = vld [vmem:[#allocation11 + $0x1c0] sm:$0xff]
    %v592 = vld [vmem:[#allocation11 + $0x1c8] sm:$0xff]
    %v593 = vld [vmem:[#allocation11 + $0x1d0] sm:$0xff]
    %v594 = vld [vmem:[#allocation11 + $0x1d8] sm:$0xff]
    %v595 = vld [vmem:[#allocation11 + $0x1e0] sm:$0xff]
    %v596 = vld [vmem:[#allocation11 + $0x1e8] sm:$0xff]
    %v597 = vld [vmem:[#allocation11 + $0x1f0] sm:$0xff]
    %v598 = vld [vmem:[#allocation11 + $0x1f8] sm:$0xff]
    %v599 = vld [vmem:[%s5] sm:$0xf]
    %v600 = vld [vmem:[#allocation3] sm:$0xff]
    %v601 = vld [vmem:[#allocation4] sm:$0xff]
    %v602 = vld [vmem:[#allocation5] sm:$0xff]
    %v603 = vld [vmem:[#allocation6] sm:$0xff]
    %v604 = vld [vmem:[#allocation2] sm:$0xff]
    %v605 = vld [vmem:[#allocation2 + $0x8] sm:$0xff]
    %v606 = vld [vmem:[#allocation2 + $0x10] sm:$0xff]
    %v607 = vld [vmem:[#allocation2 + $0x18] sm:$0xff]
    %v608 = vpack.c.bf16 %v600, %v600
    %v641 = vunpack.c.l.b16 %v503
    %v642 = vunpack.c.h.b16 %v503
    %v643 = vunpack.c.l.b16 %v504
    %v644 = vunpack.c.h.b16 %v504
    %v645 = vunpack.c.l.b16 %v505
    %v646 = vunpack.c.h.b16 %v505
    %v647 = vunpack.c.l.b16 %v506
    %v648 = vunpack.c.h.b16 %v506
    %v649 = vunpack.c.l.b16 %v507
    %v650 = vunpack.c.h.b16 %v507
    %v651 = vunpack.c.l.b16 %v508
    %v652 = vunpack.c.h.b16 %v508
    %v653 = vunpack.c.l.b16 %v509
    %v654 = vunpack.c.h.b16 %v509
    %v655 = vunpack.c.l.b16 %v510
    %v656 = vunpack.c.h.b16 %v510
    %v657 = vunpack.c.l.b16 %v511
    %v658 = vunpack.c.h.b16 %v511
    %v659 = vunpack.c.l.b16 %v512
    %v660 = vunpack.c.h.b16 %v512
    %v661 = vunpack.c.l.b16 %v513
    %v662 = vunpack.c.h.b16 %v513
    %v663 = vunpack.c.l.b16 %v514
    %v664 = vunpack.c.h.b16 %v514
    %v665 = vunpack.c.l.b16 %v515
    %v666 = vunpack.c.h.b16 %v515
    %v667 = vunpack.c.l.b16 %v516
    %v668 = vunpack.c.h.b16 %v516
    %v669 = vunpack.c.l.b16 %v517
    %v670 = vunpack.c.h.b16 %v517
    %v671 = vunpack.c.l.b16 %v518
    %v672 = vunpack.c.h.b16 %v518
    %v673 = vunpack.c.l.b16 %v519
    %v674 = vunpack.c.h.b16 %v519
    %v675 = vunpack.c.l.b16 %v520
    %v676 = vunpack.c.h.b16 %v520
    %v677 = vunpack.c.l.b16 %v521
    %v678 = vunpack.c.h.b16 %v521
    %v679 = vunpack.c.l.b16 %v522
    %v680 = vunpack.c.h.b16 %v522
    %v681 = vunpack.c.l.b16 %v523
    %v682 = vunpack.c.h.b16 %v523
    %v683 = vunpack.c.l.b16 %v524
    %v684 = vunpack.c.h.b16 %v524
    %v685 = vunpack.c.l.b16 %v525
    %v686 = vunpack.c.h.b16 %v525
    %v687 = vunpack.c.l.b16 %v526
    %v688 = vunpack.c.h.b16 %v526
    %v689 = vunpack.c.l.b16 %v527
    %v690 = vunpack.c.h.b16 %v527
    %v691 = vunpack.c.l.b16 %v528
    %v692 = vunpack.c.h.b16 %v528
    %v693 = vunpack.c.l.b16 %v529
    %v694 = vunpack.c.h.b16 %v529
    %v695 = vunpack.c.l.b16 %v530
    %v696 = vunpack.c.h.b16 %v530
    %v697 = vunpack.c.l.b16 %v531
    %v698 = vunpack.c.h.b16 %v531
    %v699 = vunpack.c.l.b16 %v532
    %v700 = vunpack.c.h.b16 %v532
    %v701 = vunpack.c.l.b16 %v533
    %v702 = vunpack.c.h.b16 %v533
    %v703 = vunpack.c.l.b16 %v534
    %v704 = vunpack.c.h.b16 %v534
    %v705 = vpack.c.b16 %v645, %v641
    %v706 = vpack.c.b16 %v646, %v642
    %v707 = vpack.c.b16 %v647, %v643
    %v708 = vpack.c.b16 %v648, %v644
    %v709 = vpack.c.b16 %v653, %v649
    %v710 = vpack.c.b16 %v654, %v650
    %v711 = vpack.c.b16 %v655, %v651
    %v712 = vpack.c.b16 %v656, %v652
    %v713 = vpack.c.b16 %v661, %v657
    %v714 = vpack.c.b16 %v662, %v658
    %v715 = vpack.c.b16 %v663, %v659
    %v716 = vpack.c.b16 %v664, %v660
    %v717 = vpack.c.b16 %v669, %v665
    %v718 = vpack.c.b16 %v670, %v666
    %v719 = vpack.c.b16 %v671, %v667
    %v720 = vpack.c.b16 %v672, %v668
    %v721 = vpack.c.b16 %v677, %v673
    %v722 = vpack.c.b16 %v678, %v674
    %v723 = vpack.c.b16 %v679, %v675
    %v724 = vpack.c.b16 %v680, %v676
    %v725 = vpack.c.b16 %v685, %v681
    %v726 = vpack.c.b16 %v686, %v682
    %v727 = vpack.c.b16 %v687, %v683
    %v728 = vpack.c.b16 %v688, %v684
    %v729 = vpack.c.b16 %v693, %v689
    %v730 = vpack.c.b16 %v694, %v690
    %v731 = vpack.c.b16 %v695, %v691
    %v732 = vpack.c.b16 %v696, %v692
    %v733 = vpack.c.b16 %v701, %v697
    %v734 = vpack.c.b16 %v702, %v698
    %v735 = vpack.c.b16 %v703, %v699
    %v736 = vpack.c.b16 %v704, %v700
    %769 = vmatprep.subr.bf16.mxu0 %v706
    %770 = vmatpush1.bf16.msra.mxu0 %v705
    %771 = vmatprep.subr.bf16.mxu0 %v710
    %772 = vmatpush1.bf16.msra.mxu0 %v709
    %773 = vmatprep.subr.bf16.mxu0 %v714
    %774 = vmatpush1.bf16.msra.mxu0 %v713
    %775 = vmatprep.subr.bf16.mxu0 %v718
    %776 = vmatpush1.bf16.msra.mxu0 %v717
    %777 = vmatprep.subr.bf16.mxu0 %v722
    %778 = vmatpush1.bf16.msra.mxu0 %v721
    %779 = vmatprep.subr.bf16.mxu0 %v726
    %780 = vmatpush1.bf16.msra.mxu0 %v725
    %781 = vmatprep.subr.bf16.mxu0 %v730
    %782 = vmatpush1.bf16.msra.mxu0 %v729
    %783 = vmatprep.subr.bf16.mxu0 %v734
    %784 = vmatpush1.bf16.msra.mxu0 %v733
    %785 = vmatprep.subr.bf16.mxu0 0
    %786 = vmatpush1.bf16.msra.mxu0 0
    %787 = vmatprep.subr.bf16.mxu0 0
    %788 = vmatpush1.bf16.msra.mxu0 0
    %789 = vmatprep.subr.bf16.mxu0 0
    %790 = vmatpush1.bf16.msra.mxu0 0
    %791 = vmatprep.subr.bf16.mxu0 0
    %792 = vmatpush1.bf16.msra.mxu0 0
    %793 = vmatprep.subr.bf16.mxu0 0
    %794 = vmatpush1.bf16.msra.mxu0 0
    %795 = vmatprep.subr.bf16.mxu0 0
    %796 = vmatpush1.bf16.msra.mxu0 0
    %797 = vmatprep.subr.bf16.mxu0 0
    %798 = vmatpush1.bf16.msra.mxu0 0
    %799 = vmatprep.subr.bf16.mxu0 0
    %800 = vmatpush1.bf16.msra.mxu0 0
    %801 = vmatprep.mubr.bf16.mxu0 0
    %802 = vmatmul.mubr.bf16.gmra.mrb[0].mxu0 %v608
    %v803 = vpop.f32.mrb[0].mxu0
    %v804 = vadd.f32 0.0, %v803
    %v805 = vpop.f32.mrb[0].mxu0
    %v806 = vadd.f32 0.0, %v805
    %v807 = vpop.f32.mrb[0].mxu0
    %v808 = vpop.f32.mrb[0].mxu0
    %809 = vdwg.mxu0
    %810 = vmatprep.subr.bf16.mxu0 %v708
    %811 = vmatpush1.bf16.msra.mxu0 %v707
    %812 = vmatprep.subr.bf16.mxu0 %v712
    %813 = vmatpush1.bf16.msra.mxu0 %v711
    %814 = vmatprep.subr.bf16.mxu0 %v716
    %815 = vmatpush1.bf16.msra.mxu0 %v715
    %816 = vmatprep.subr.bf16.mxu0 %v720
    %817 = vmatpush1.bf16.msra.mxu0 %v719
    %818 = vmatprep.subr.bf16.mxu0 %v724
    %819 = vmatpush1.bf16.msra.mxu0 %v723
    %820 = vmatprep.subr.bf16.mxu0 %v728
    %821 = vmatpush1.bf16.msra.mxu0 %v727
    %822 = vmatprep.subr.bf16.mxu0 %v732
    %823 = vmatpush1.bf16.msra.mxu0 %v731
    %824 = vmatprep.subr.bf16.mxu0 %v736
    %825 = vmatpush1.bf16.msra.mxu0 %v735
    %826 = vmatprep.subr.bf16.mxu0 0
    %827 = vmatpush1.bf16.msra.mxu0 0
    %828 = vmatprep.subr.bf16.mxu0 0
    %829 = vmatpush1.bf16.msra.mxu0 0
    %830 = vmatprep.subr.bf16.mxu0 0
    %831 = vmatpush1.bf16.msra.mxu0 0
    %832 = vmatprep.subr.bf16.mxu0 0
    %833 = vmatpush1.bf16.msra.mxu0 0
    %834 = vmatprep.subr.bf16.mxu0 0
    %835 = vmatpush1.bf16.msra.mxu0 0
    %836 = vmatprep.subr.bf16.mxu0 0
    %837 = vmatpush1.bf16.msra.mxu0 0
    %838 = vmatprep.subr.bf16.mxu0 0
    %839 = vmatpush1.bf16.msra.mxu0 0
    %840 = vmatprep.subr.bf16.mxu0 0
    %841 = vmatpush1.bf16.msra.mxu0 0
    %842 = vmatprep.mubr.bf16.mxu0 0
    %843 = vmatmul.mubr.bf16.gmra.mrb[0].mxu0 %v608
    %v844 = vpop.f32.mrb[0].mxu0
    %v845 = vadd.f32 0.0, %v844
    %v846 = vpop.f32.mrb[0].mxu0
    %v847 = vadd.f32 0.0, %v846
    %v848 = vpop.f32.mrb[0].mxu0
    %v849 = vpop.f32.mrb[0].mxu0
    %850 = vdwg.mxu0
    %v851 = vadd.f32 %v604, %v804
    %v852 = vadd.f32 %v605, %v806
    %v853 = vadd.f32 %v606, %v845
    %v854 = vadd.f32 %v607, %v847
    %v855 = vxor.u32 %v851, 2147483648
    %v856 = vxor.u32 %v852, 2147483648
    %v857 = vxor.u32 %v853, 2147483648
    %v858 = vmul.f32 %v855, 1.442695
    %v859 = vpow.pop %v858
    %v860 = vmul.f32 %v856, 1.442695
    %v861 = vpow.pop %v860
    %v862 = vmul.f32 %v857, 1.442695
    %v863 = vpow.pop %v862
    %v864 = vadd.f32 %v859, 1.0
    %v865 = vadd.f32 %v861, 1.0
    %v866 = vadd.f32 %v863, 1.0
    %v867 = vrcp.pop %v864
    %v868 = vmul.f32 1.0, %v867
    %v869 = vrcp.pop %v865
    %v870 = vmul.f32 1.0, %v869
    %v871 = vrcp.pop %v866
    %v872 = vmul.f32 1.0, %v871
    %v873 = vtanh.pop %v854
    %v874 = vmul.f32 %v870, %v601
    %v875 = vmul.f32 %v868, %v873
    %v876 = vadd.f32 %v874, %v875
    %v877 = vtanh.pop %v876
    %v878 = vmul.f32 %v872, %v877
    %v879 = vpack.c.bf16 %v878, %v878
    %v880 = vpack.c.bf16 %v602, %v602
    %v882 = vlaneseq
    %v883 = vshrl.u32 %v882, 7
    %v884 = vsub.s32 0, %v883
    %v885 = vrot.slane %v599, %v884
    %v886 = vlaneseq
    %v887 = vshrl.u32 %v886, 7
    %v888 = vsub.s32 1, %v887
    %v889 = vrot.slane %v599, %v888
    %v890 = vlaneseq
    %v891 = vshrl.u32 %v890, 7
    %v892 = vsub.s32 2, %v891
    %v893 = vrot.slane %v599, %v892
    %v894 = vlaneseq
    %v895 = vshrl.u32 %v894, 7
    %v896 = vsub.s32 3, %v895
    %v897 = vrot.slane %v599, %v896
    %v966 = vunpack.c.l.b16 %v535
    %v967 = vunpack.c.h.b16 %v535
    %v968 = vunpack.c.l.b16 %v536
    %v969 = vunpack.c.h.b16 %v536
    %v970 = vunpack.c.l.b16 %v537
    %v971 = vunpack.c.h.b16 %v537
    %v972 = vunpack.c.l.b16 %v538
    %v973 = vunpack.c.h.b16 %v538
    %v974 = vunpack.c.l.b16 %v539
    %v975 = vunpack.c.h.b16 %v539
    %v976 = vunpack.c.l.b16 %v540
    %v977 = vunpack.c.h.b16 %v540
    %v978 = vunpack.c.l.b16 %v541
    %v979 = vunpack.c.h.b16 %v541
    %v980 = vunpack.c.l.b16 %v542
    %v981 = vunpack.c.h.b16 %v542
    %v982 = vunpack.c.l.b16 %v543
    %v983 = vunpack.c.h.b16 %v543
    %v984 = vunpack.c.l.b16 %v544
    %v985 = vunpack.c.h.b16 %v544
    %v986 = vunpack.c.l.b16 %v545
    %v987 = vunpack.c.h.b16 %v545
    %v988 = vunpack.c.l.b16 %v546
    %v989 = vunpack.c.h.b16 %v546
    %v990 = vunpack.c.l.b16 %v547
    %v991 = vunpack.c.h.b16 %v547
    %v992 = vunpack.c.l.b16 %v548
    %v993 = vunpack.c.h.b16 %v548
    %v994 = vunpack.c.l.b16 %v549
    %v995 = vunpack.c.h.b16 %v549
    %v996 = vunpack.c.l.b16 %v550
    %v997 = vunpack.c.h.b16 %v550
    %v998 = vunpack.c.l.b16 %v551
    %v999 = vunpack.c.h.b16 %v551
    %v1000 = vunpack.c.l.b16 %v552
    %v1001 = vunpack.c.h.b16 %v552
    %v1002 = vunpack.c.l.b16 %v553
    %v1003 = vunpack.c.h.b16 %v553
    %v1004 = vunpack.c.l.b16 %v554
    %v1005 = vunpack.c.h.b16 %v554
    %v1006 = vunpack.c.l.b16 %v555
    %v1007 = vunpack.c.h.b16 %v555
    %v1008 = vunpack.c.l.b16 %v556
    %v1009 = vunpack.c.h.b16 %v556
    %v1010 = vunpack.c.l.b16 %v557
    %v1011 = vunpack.c.h.b16 %v557
    %v1012 = vunpack.c.l.b16 %v558
    %v1013 = vunpack.c.h.b16 %v558
    %v1014 = vunpack.c.l.b16 %v559
    %v1015 = vunpack.c.h.b16 %v559
    %v1016 = vunpack.c.l.b16 %v560
    %v1017 = vunpack.c.h.b16 %v560
    %v1018 = vunpack.c.l.b16 %v561
    %v1019 = vunpack.c.h.b16 %v561
    %v1020 = vunpack.c.l.b16 %v562
    %v1021 = vunpack.c.h.b16 %v562
    %v1022 = vunpack.c.l.b16 %v563
    %v1023 = vunpack.c.h.b16 %v563
    %v1024 = vunpack.c.l.b16 %v564
    %v1025 = vunpack.c.h.b16 %v564
    %v1026 = vunpack.c.l.b16 %v565
    %v1027 = vunpack.c.h.b16 %v565
    %v1028 = vunpack.c.l.b16 %v566
    %v1029 = vunpack.c.h.b16 %v566
    %v1030 = vunpack.c.l.b16 %v567
    %v1031 = vunpack.c.h.b16 %v567
    %v1032 = vunpack.c.l.b16 %v568
    %v1033 = vunpack.c.h.b16 %v568
    %v1034 = vunpack.c.l.b16 %v569
    %v1035 = vunpack.c.h.b16 %v569
    %v1036 = vunpack.c.l.b16 %v570
    %v1037 = vunpack.c.h.b16 %v570
    %v1038 = vunpack.c.l.b16 %v571
    %v1039 = vunpack.c.h.b16 %v571
    %v1040 = vunpack.c.l.b16 %v572
    %v1041 = vunpack.c.h.b16 %v572
    %v1042 = vunpack.c.l.b16 %v573
    %v1043 = vunpack.c.h.b16 %v573
    %v1044 = vunpack.c.l.b16 %v574
    %v1045 = vunpack.c.h.b16 %v574
    %v1046 = vunpack.c.l.b16 %v575
    %v1047 = vunpack.c.h.b16 %v575
    %v1048 = vunpack.c.l.b16 %v576
    %v1049 = vunpack.c.h.b16 %v576
    %v1050 = vunpack.c.l.b16 %v577
    %v1051 = vunpack.c.h.b16 %v577
    %v1052 = vunpack.c.l.b16 %v578
    %v1053 = vunpack.c.h.b16 %v578
    %v1054 = vunpack.c.l.b16 %v579
    %v1055 = vunpack.c.h.b16 %v579
    %v1056 = vunpack.c.l.b16 %v580
    %v1057 = vunpack.c.h.b16 %v580
    %v1058 = vunpack.c.l.b16 %v581
    %v1059 = vunpack.c.h.b16 %v581
    %v1060 = vunpack.c.l.b16 %v582
    %v1061 = vunpack.c.h.b16 %v582
    %v1062 = vunpack.c.l.b16 %v583
    %v1063 = vunpack.c.h.b16 %v583
    %v1064 = vunpack.c.l.b16 %v584
    %v1065 = vunpack.c.h.b16 %v584
    %v1066 = vunpack.c.l.b16 %v585
    %v1067 = vunpack.c.h.b16 %v585
    %v1068 = vunpack.c.l.b16 %v586
    %v1069 = vunpack.c.h.b16 %v586
    %v1070 = vunpack.c.l.b16 %v587
    %v1071 = vunpack.c.h.b16 %v587
    %v1072 = vunpack.c.l.b16 %v588
    %v1073 = vunpack.c.h.b16 %v588
    %v1074 = vunpack.c.l.b16 %v589
    %v1075 = vunpack.c.h.b16 %v589
    %v1076 = vunpack.c.l.b16 %v590
    %v1077 = vunpack.c.h.b16 %v590
    %v1078 = vunpack.c.l.b16 %v591
    %v1079 = vunpack.c.h.b16 %v591
    %v1080 = vunpack.c.l.b16 %v592
    %v1081 = vunpack.c.h.b16 %v592
    %v1082 = vunpack.c.l.b16 %v593
    %v1083 = vunpack.c.h.b16 %v593
    %v1084 = vunpack.c.l.b16 %v594
    %v1085 = vunpack.c.h.b16 %v594
    %v1086 = vunpack.c.l.b16 %v595
    %v1087 = vunpack.c.h.b16 %v595
    %v1088 = vunpack.c.l.b16 %v596
    %v1089 = vunpack.c.h.b16 %v596
    %v1090 = vunpack.c.l.b16 %v597
    %v1091 = vunpack.c.h.b16 %v597
    %v1092 = vunpack.c.l.b16 %v598
    %v1093 = vunpack.c.h.b16 %v598
    %v1094 = vpack.c.b16 %v970, %v966
    %v1095 = vpack.c.b16 %v971, %v967
    %v1096 = vpack.c.b16 %v972, %v968
    %v1097 = vpack.c.b16 %v973, %v969
    %v1098 = vpack.c.b16 %v978, %v974
    %v1099 = vpack.c.b16 %v979, %v975
    %v1100 = vpack.c.b16 %v980, %v976
    %v1101 = vpack.c.b16 %v981, %v977
    %v1102 = vpack.c.b16 %v986, %v982
    %v1103 = vpack.c.b16 %v987, %v983
    %v1104 = vpack.c.b16 %v988, %v984
    %v1105 = vpack.c.b16 %v989, %v985
    %v1106 = vpack.c.b16 %v994, %v990
    %v1107 = vpack.c.b16 %v995, %v991
    %v1108 = vpack.c.b16 %v996, %v992
    %v1109 = vpack.c.b16 %v997, %v993
    %v1110 = vpack.c.b16 %v1002, %v998
    %v1111 = vpack.c.b16 %v1003, %v999
    %v1112 = vpack.c.b16 %v1004, %v1000
    %v1113 = vpack.c.b16 %v1005, %v1001
    %v1114 = vpack.c.b16 %v1010, %v1006
    %v1115 = vpack.c.b16 %v1011, %v1007
    %v1116 = vpack.c.b16 %v1012, %v1008
    %v1117 = vpack.c.b16 %v1013, %v1009
    %v1118 = vpack.c.b16 %v1018, %v1014
    %v1119 = vpack.c.b16 %v1019, %v1015
    %v1120 = vpack.c.b16 %v1020, %v1016
    %v1121 = vpack.c.b16 %v1021, %v1017
    %v1122 = vpack.c.b16 %v1026, %v1022
    %v1123 = vpack.c.b16 %v1027, %v1023
    %v1124 = vpack.c.b16 %v1028, %v1024
    %v1125 = vpack.c.b16 %v1029, %v1025
    %v1126 = vpack.c.b16 %v1034, %v1030
    %v1127 = vpack.c.b16 %v1035, %v1031
    %v1128 = vpack.c.b16 %v1036, %v1032
    %v1129 = vpack.c.b16 %v1037, %v1033
    %v1130 = vpack.c.b16 %v1042, %v1038
    %v1131 = vpack.c.b16 %v1043, %v1039
    %v1132 = vpack.c.b16 %v1044, %v1040
    %v1133 = vpack.c.b16 %v1045, %v1041
    %v1134 = vpack.c.b16 %v1050, %v1046
    %v1135 = vpack.c.b16 %v1051, %v1047
    %v1136 = vpack.c.b16 %v1052, %v1048
    %v1137 = vpack.c.b16 %v1053, %v1049
    %v1138 = vpack.c.b16 %v1058, %v1054
    %v1139 = vpack.c.b16 %v1059, %v1055
    %v1140 = vpack.c.b16 %v1060, %v1056
    %v1141 = vpack.c.b16 %v1061, %v1057
    %v1142 = vpack.c.b16 %v1066, %v1062
    %v1143 = vpack.c.b16 %v1067, %v1063
    %v1144 = vpack.c.b16 %v1068, %v1064
    %v1145 = vpack.c.b16 %v1069, %v1065
    %v1146 = vpack.c.b16 %v1074, %v1070
    %v1147 = vpack.c.b16 %v1075, %v1071
    %v1148 = vpack.c.b16 %v1076, %v1072
    %v1149 = vpack.c.b16 %v1077, %v1073
    %v1150 = vpack.c.b16 %v1082, %v1078
    %v1151 = vpack.c.b16 %v1083, %v1079
    %v1152 = vpack.c.b16 %v1084, %v1080
    %v1153 = vpack.c.b16 %v1085, %v1081
    %v1154 = vpack.c.b16 %v1090, %v1086
    %v1155 = vpack.c.b16 %v1091, %v1087
    %v1156 = vpack.c.b16 %v1092, %v1088
    %v1157 = vpack.c.b16 %v1093, %v1089
    %1222 = vmatprep.subr.bf16.mxu0 %v1095
    %1223 = vmatpush1.bf16.msra.mxu0 %v1094
    %1224 = vmatprep.subr.bf16.mxu0 %v1099
    %1225 = vmatpush1.bf16.msra.mxu0 %v1098
    %1226 = vmatprep.subr.bf16.mxu0 %v1103
    %1227 = vmatpush1.bf16.msra.mxu0 %v1102
    %1228 = vmatprep.subr.bf16.mxu0 %v1107
    %1229 = vmatpush1.bf16.msra.mxu0 %v1106
    %1230 = vmatprep.subr.bf16.mxu0 %v1111
    %1231 = vmatpush1.bf16.msra.mxu0 %v1110
    %1232 = vmatprep.subr.bf16.mxu0 %v1115
    %1233 = vmatpush1.bf16.msra.mxu0 %v1114
    %1234 = vmatprep.subr.bf16.mxu0 %v1119
    %1235 = vmatpush1.bf16.msra.mxu0 %v1118
    %1236 = vmatprep.subr.bf16.mxu0 %v1123
    %1237 = vmatpush1.bf16.msra.mxu0 %v1122
    %1238 = vmatprep.subr.bf16.mxu0 %v1127
    %1239 = vmatpush1.bf16.msra.mxu0 %v1126
    %1240 = vmatprep.subr.bf16.mxu0 %v1131
    %1241 = vmatpush1.bf16.msra.mxu0 %v1130
    %1242 = vmatprep.subr.bf16.mxu0 %v1135
    %1243 = vmatpush1.bf16.msra.mxu0 %v1134
    %1244 = vmatprep.subr.bf16.mxu0 %v1139
    %1245 = vmatpush1.bf16.msra.mxu0 %v1138
    %1246 = vmatprep.subr.bf16.mxu0 %v1143
    %1247 = vmatpush1.bf16.msra.mxu0 %v1142
    %1248 = vmatprep.subr.bf16.mxu0 %v1147
    %1249 = vmatpush1.bf16.msra.mxu0 %v1146
    %1250 = vmatprep.subr.bf16.mxu0 %v1151
    %1251 = vmatpush1.bf16.msra.mxu0 %v1150
    %1252 = vmatprep.subr.bf16.mxu0 %v1155
    %1253 = vmatpush1.bf16.msra.mxu0 %v1154
    %1254 = vmatprep.mubr.bf16.mxu0 %v880
    %1255 = vmatmul.mubr.bf16.gmra.mrb[0].mxu0 %v879
    %v1256 = vpop.f32.mrb[0].mxu0
    %v1257 = vadd.f32 %v885, %v1256
    %v1258 = vpop.f32.mrb[0].mxu0
    %v1259 = vadd.f32 %v889, %v1258
    %v1260 = vpop.f32.mrb[0].mxu0
    %v1261 = vpop.f32.mrb[0].mxu0
    %1262 = vdwg.mxu0
    %1263 = vmatprep.subr.bf16.mxu0 %v1097
    %1264 = vmatpush1.bf16.msra.mxu0 %v1096
    %1265 = vmatprep.subr.bf16.mxu0 %v1101
    %1266 = vmatpush1.bf16.msra.mxu0 %v1100
    %1267 = vmatprep.subr.bf16.mxu0 %v1105
    %1268 = vmatpush1.bf16.msra.mxu0 %v1104
    %1269 = vmatprep.subr.bf16.mxu0 %v1109
    %1270 = vmatpush1.bf16.msra.mxu0 %v1108
    %1271 = vmatprep.subr.bf16.mxu0 %v1113
    %1272 = vmatpush1.bf16.msra.mxu0 %v1112
    %1273 = vmatprep.subr.bf16.mxu0 %v1117
    %1274 = vmatpush1.bf16.msra.mxu0 %v1116
    %1275 = vmatprep.subr.bf16.mxu0 %v1121
    %1276 = vmatpush1.bf16.msra.mxu0 %v1120
    %1277 = vmatprep.subr.bf16.mxu0 %v1125
    %1278 = vmatpush1.bf16.msra.mxu0 %v1124
    %1279 = vmatprep.subr.bf16.mxu0 %v1129
    %1280 = vmatpush1.bf16.msra.mxu0 %v1128
    %1281 = vmatprep.subr.bf16.mxu0 %v1133
    %1282 = vmatpush1.bf16.msra.mxu0 %v1132
    %1283 = vmatprep.subr.bf16.mxu0 %v1137
    %1284 = vmatpush1.bf16.msra.mxu0 %v1136
    %1285 = vmatprep.subr.bf16.mxu0 %v1141
    %1286 = vmatpush1.bf16.msra.mxu0 %v1140
    %1287 = vmatprep.subr.bf16.mxu0 %v1145
    %1288 = vmatpush1.bf16.msra.mxu0 %v1144
    %1289 = vmatprep.subr.bf16.mxu0 %v1149
    %1290 = vmatpush1.bf16.msra.mxu0 %v1148
    %1291 = vmatprep.subr.bf16.mxu0 %v1153
    %1292 = vmatpush1.bf16.msra.mxu0 %v1152
    %1293 = vmatprep.subr.bf16.mxu0 %v1157
    %1294 = vmatpush1.bf16.msra.mxu0 %v1156
    %1295 = vmatprep.mubr.bf16.mxu0 %v880
    %1296 = vmatmul.mubr.bf16.gmra.mrb[0].mxu0 %v879
    %v1297 = vpop.f32.mrb[0].mxu0
    %v1298 = vadd.f32 %v893, %v1297
    %v1299 = vpop.f32.mrb[0].mxu0
    %v1300 = vadd.f32 %v897, %v1299
    %v1301 = vpop.f32.mrb[0].mxu0
    %v1302 = vpop.f32.mrb[0].mxu0
    %1303 = vdwg.mxu0
    %v1304 = vxor.u32 %v1257, 2147483648
    %v1305 = vxor.u32 %v1259, 2147483648
    %v1306 = vxor.u32 %v1298, 2147483648
    %v1307 = vmul.f32 %v1304, 1.442695
    %v1308 = vpow.pop %v1307
    %v1309 = vmul.f32 %v1305, 1.442695
    %v1310 = vpow.pop %v1309
    %v1311 = vmul.f32 %v1306, 1.442695
    %v1312 = vpow.pop %v1311
    %v1313 = vadd.f32 %v1308, 1.0
    %v1314 = vadd.f32 %v1310, 1.0
    %v1315 = vadd.f32 %v1312, 1.0
    %v1316 = vrcp.pop %v1313
    %v1317 = vmul.f32 1.0, %v1316
    %v1318 = vrcp.pop %v1314
    %v1319 = vmul.f32 1.0, %v1318
    %v1320 = vrcp.pop %v1315
    %v1321 = vmul.f32 1.0, %v1320
    %v1322 = vtanh.pop %v1300
    %v1323 = vmul.f32 %v1319, %v603
    %v1324 = vmul.f32 %v1317, %v1322
    %v1325 = vadd.f32 %v1323, %v1324
    %v1326 = vtanh.pop %v1325
    %v1327 = vmul.f32 %v1321, %v1326
    %s1328 = scalar_lea.vmem [#allocation2], 32
    %v1329 = vld [vmem:[%s1328] sm:$0xff]
    %v1330 = vld [vmem:[%s1328 + $0x8] sm:$0xff]
    %v1331 = vld [vmem:[%s1328 + $0x10] sm:$0xff]
    %v1332 = vld [vmem:[%s1328 + $0x18] sm:$0xff]
    %1333 = vmatprep.subr.bf16.mxu0 %v706
    %1334 = vmatpush1.bf16.msra.mxu0 %v705
    %1335 = vmatprep.subr.bf16.mxu0 %v710
    %1336 = vmatpush1.bf16.msra.mxu0 %v709
    %1337 = vmatprep.subr.bf16.mxu0 %v714
    %1338 = vmatpush1.bf16.msra.mxu0 %v713
    %1339 = vmatprep.subr.bf16.mxu0 %v718
    %1340 = vmatpush1.bf16.msra.mxu0 %v717
    %1341 = vmatprep.subr.bf16.mxu0 %v722
    %1342 = vmatpush1.bf16.msra.mxu0 %v721
    %1343 = vmatprep.subr.bf16.mxu0 %v726
    %1344 = vmatpush1.bf16.msra.mxu0 %v725
    %1345 = vmatprep.subr.bf16.mxu0 %v730
    %1346 = vmatpush1.bf16.msra.mxu0 %v729
    %1347 = vmatprep.subr.bf16.mxu0 %v734
    %1348 = vmatpush1.bf16.msra.mxu0 %v733
    %1349 = vmatprep.subr.bf16.mxu0 0
    %1350 = vmatpush1.bf16.msra.mxu0 0
    %1351 = vmatprep.subr.bf16.mxu0 0
    %1352 = vmatpush1.bf16.msra.mxu0 0
    %1353 = vmatprep.subr.bf16.mxu0 0
    %1354 = vmatpush1.bf16.msra.mxu0 0
    %1355 = vmatprep.subr.bf16.mxu0 0
    %1356 = vmatpush1.bf16.msra.mxu0 0
    %1357 = vmatprep.subr.bf16.mxu0 0
    %1358 = vmatpush1.bf16.msra.mxu0 0
    %1359 = vmatprep.subr.bf16.mxu0 0
    %1360 = vmatpush1.bf16.msra.mxu0 0
    %1361 = vmatprep.subr.bf16.mxu0 0
    %1362 = vmatpush1.bf16.msra.mxu0 0
    %1363 = vmatprep.subr.bf16.mxu0 0
    %1364 = vmatpush1.bf16.msra.mxu0 0
    %1365 = vmatprep.mubr.bf16.mxu0 0
    %1366 = vmatmul.mubr.bf16.gmra.mrb[0].mxu0 %v879
    %v1367 = vpop.f32.mrb[0].mxu0
    %v1368 = vadd.f32 0.0, %v1367
    %v1369 = vpop.f32.mrb[0].mxu0
    %v1370 = vadd.f32 0.0, %v1369
    %v1371 = vpop.f32.mrb[0].mxu0
    %v1372 = vpop.f32.mrb[0].mxu0
    %1373 = vdwg.mxu0
    %1374 = vmatprep.subr.bf16.mxu0 %v708
    %1375 = vmatpush1.bf16.msra.mxu0 %v707
    %1376 = vmatprep.subr.bf16.mxu0 %v712
    %1377 = vmatpush1.bf16.msra.mxu0 %v711
    %1378 = vmatprep.subr.bf16.mxu0 %v716
    %1379 = vmatpush1.bf16.msra.mxu0 %v715
    %1380 = vmatprep.subr.bf16.mxu0 %v720
    %1381 = vmatpush1.bf16.msra.mxu0 %v719
    %1382 = vmatprep.subr.bf16.mxu0 %v724
    %1383 = vmatpush1.bf16.msra.mxu0 %v723
    %1384 = vmatprep.subr.bf16.mxu0 %v728
    %1385 = vmatpush1.bf16.msra.mxu0 %v727
    %1386 = vmatprep.subr.bf16.mxu0 %v732
    %1387 = vmatpush1.bf16.msra.mxu0 %v731
    %1388 = vmatprep.subr.bf16.mxu0 %v736
    %1389 = vmatpush1.bf16.msra.mxu0 %v735
    %1390 = vmatprep.subr.bf16.mxu0 0
    %1391 = vmatpush1.bf16.msra.mxu0 0
    %1392 = vmatprep.subr.bf16.mxu0 0
    %1393 = vmatpush1.bf16.msra.mxu0 0
    %1394 = vmatprep.subr.bf16.mxu0 0
    %1395 = vmatpush1.bf16.msra.mxu0 0
    %1396 = vmatprep.subr.bf16.mxu0 0
    %1397 = vmatpush1.bf16.msra.mxu0 0
    %1398 = vmatprep.subr.bf16.mxu0 0
    %1399 = vmatpush1.bf16.msra.mxu0 0
    %1400 = vmatprep.subr.bf16.mxu0 0
    %1401 = vmatpush1.bf16.msra.mxu0 0
    %1402 = vmatprep.subr.bf16.mxu0 0
    %1403 = vmatpush1.bf16.msra.mxu0 0
    %1404 = vmatprep.subr.bf16.mxu0 0
    %1405 = vmatpush1.bf16.msra.mxu0 0
    %1406 = vmatprep.mubr.bf16.mxu0 0
    %1407 = vmatmul.mubr.bf16.gmra.mrb[0].mxu0 %v879
    %v1408 = vpop.f32.mrb[0].mxu0
    %v1409 = vadd.f32 0.0, %v1408
    %v1410 = vpop.f32.mrb[0].mxu0
    %v1411 = vadd.f32 0.0, %v1410
    %v1412 = vpop.f32.mrb[0].mxu0
    %v1413 = vpop.f32.mrb[0].mxu0
    %1414 = vdwg.mxu0
    %v1415 = vadd.f32 %v1329, %v1368
    %v1416 = vadd.f32 %v1330, %v1370
    %v1417 = vadd.f32 %v1331, %v1409
    %v1418 = vadd.f32 %v1332, %v1411
    %v1419 = vxor.u32 %v1415, 2147483648
    %v1420 = vxor.u32 %v1416, 2147483648
    %v1421 = vxor.u32 %v1417, 2147483648
    %v1422 = vmul.f32 %v1419, 1.442695
    %v1423 = vpow.pop %v1422
    %v1424 = vmul.f32 %v1420, 1.442695
    %v1425 = vpow.pop %v1424
    %v1426 = vmul.f32 %v1421, 1.442695
    %v1427 = vpow.pop %v1426
    %v1428 = vadd.f32 %v1423, 1.0
    %v1429 = vadd.f32 %v1425, 1.0
    %v1430 = vadd.f32 %v1427, 1.0
    %v1431 = vrcp.pop %v1428
    %v1432 = vmul.f32 1.0, %v1431
    %v1433 = vrcp.pop %v1429
    %v1434 = vmul.f32 1.0, %v1433
    %v1435 = vrcp.pop %v1430
    %v1436 = vmul.f32 1.0, %v1435
    %v1437 = vtanh.pop %v1418
    %v1438 = vmul.f32 %v1434, %v876
    %v1439 = vmul.f32 %v1432, %v1437
    %v1440 = vadd.f32 %v1438, %v1439
    %v1441 = vtanh.pop %v1440
    %v1442 = vmul.f32 %v1436, %v1441
    %v1443 = vpack.c.bf16 %v1442, %v1442
    %v1444 = vpack.c.bf16 %v1327, %v1327
    %1445 = vmatprep.subr.bf16.mxu0 %v1095
    %1446 = vmatpush1.bf16.msra.mxu0 %v1094
    %1447 = vmatprep.subr.bf16.mxu0 %v1099
    %1448 = vmatpush1.bf16.msra.mxu0 %v1098
    %1449 = vmatprep.subr.bf16.mxu0 %v1103
    %1450 = vmatpush1.bf16.msra.mxu0 %v1102
    %1451 = vmatprep.subr.bf16.mxu0 %v1107
    %1452 = vmatpush1.bf16.msra.mxu0 %v1106
    %1453 = vmatprep.subr.bf16.mxu0 %v1111
    %1454 = vmatpush1.bf16.msra.mxu0 %v1110
    %1455 = vmatprep.subr.bf16.mxu0 %v1115
    %1456 = vmatpush1.bf16.msra.mxu0 %v1114
    %1457 = vmatprep.subr.bf16.mxu0 %v1119
    %1458 = vmatpush1.bf16.msra.mxu0 %v1118
    %1459 = vmatprep.subr.bf16.mxu0 %v1123
    %1460 = vmatpush1.bf16.msra.mxu0 %v1122
    %1461 = vmatprep.subr.bf16.mxu0 %v1127
    %1462 = vmatpush1.bf16.msra.mxu0 %v1126
    %1463 = vmatprep.subr.bf16.mxu0 %v1131
    %1464 = vmatpush1.bf16.msra.mxu0 %v1130
    %1465 = vmatprep.subr.bf16.mxu0 %v1135
    %1466 = vmatpush1.bf16.msra.mxu0 %v1134
    %1467 = vmatprep.subr.bf16.mxu0 %v1139
    %1468 = vmatpush1.bf16.msra.mxu0 %v1138
    %1469 = vmatprep.subr.bf16.mxu0 %v1143
    %1470 = vmatpush1.bf16.msra.mxu0 %v1142
    %1471 = vmatprep.subr.bf16.mxu0 %v1147
    %1472 = vmatpush1.bf16.msra.mxu0 %v1146
    %1473 = vmatprep.subr.bf16.mxu0 %v1151
    %1474 = vmatpush1.bf16.msra.mxu0 %v1150
    %1475 = vmatprep.subr.bf16.mxu0 %v1155
    %1476 = vmatpush1.bf16.msra.mxu0 %v1154
    %1477 = vmatprep.mubr.bf16.mxu0 %v1444
    %1478 = vmatmul.mubr.bf16.gmra.mrb[0].mxu0 %v1443
    %v1479 = vpop.f32.mrb[0].mxu0
    %v1480 = vadd.f32 %v885, %v1479
    %v1481 = vpop.f32.mrb[0].mxu0
    %v1482 = vadd.f32 %v889, %v1481
    %v1483 = vpop.f32.mrb[0].mxu0
    %v1484 = vpop.f32.mrb[0].mxu0
    %1485 = vdwg.mxu0
    %1486 = vmatprep.subr.bf16.mxu0 %v1097
    %1487 = vmatpush1.bf16.msra.mxu0 %v1096
    %1488 = vmatprep.subr.bf16.mxu0 %v1101
    %1489 = vmatpush1.bf16.msra.mxu0 %v1100
    %1490 = vmatprep.subr.bf16.mxu0 %v1105
    %1491 = vmatpush1.bf16.msra.mxu0 %v1104
    %1492 = vmatprep.subr.bf16.mxu0 %v1109
    %1493 = vmatpush1.bf16.msra.mxu0 %v1108
    %1494 = vmatprep.subr.bf16.mxu0 %v1113
    %1495 = vmatpush1.bf16.msra.mxu0 %v1112
    %1496 = vmatprep.subr.bf16.mxu0 %v1117
    %1497 = vmatpush1.bf16.msra.mxu0 %v1116
    %1498 = vmatprep.subr.bf16.mxu0 %v1121
    %1499 = vmatpush1.bf16.msra.mxu0 %v1120
    %1500 = vmatprep.subr.bf16.mxu0 %v1125
    %1501 = vmatpush1.bf16.msra.mxu0 %v1124
    %1502 = vmatprep.subr.bf16.mxu0 %v1129
    %1503 = vmatpush1.bf16.msra.mxu0 %v1128
    %1504 = vmatprep.subr.bf16.mxu0 %v1133
    %1505 = vmatpush1.bf16.msra.mxu0 %v1132
    %1506 = vmatprep.subr.bf16.mxu0 %v1137
    %1507 = vmatpush1.bf16.msra.mxu0 %v1136
    %1508 = vmatprep.subr.bf16.mxu0 %v1141
    %1509 = vmatpush1.bf16.msra.mxu0 %v1140
    %1510 = vmatprep.subr.bf16.mxu0 %v1145
    %1511 = vmatpush1.bf16.msra.mxu0 %v1144
    %1512 = vmatprep.subr.bf16.mxu0 %v1149
    %1513 = vmatpush1.bf16.msra.mxu0 %v1148
    %1514 = vmatprep.subr.bf16.mxu0 %v1153
    %1515 = vmatpush1.bf16.msra.mxu0 %v1152
    %1516 = vmatprep.subr.bf16.mxu0 %v1157
    %1517 = vmatpush1.bf16.msra.mxu0 %v1156
    %1518 = vmatprep.mubr.bf16.mxu0 %v1444
    %1519 = vmatmul.mubr.bf16.gmra.mrb[0].mxu0 %v1443
    %v1520 = vpop.f32.mrb[0].mxu0
    %v1521 = vadd.f32 %v893, %v1520
    %v1522 = vpop.f32.mrb[0].mxu0
    %v1523 = vadd.f32 %v897, %v1522
    %v1524 = vpop.f32.mrb[0].mxu0
    %v1525 = vpop.f32.mrb[0].mxu0
    %1526 = vdwg.mxu0
    %v1527 = vxor.u32 %v1480, 2147483648
    %v1528 = vxor.u32 %v1482, 2147483648
    %v1529 = vxor.u32 %v1521, 2147483648
    %v1530 = vmul.f32 %v1527, 1.442695
    %v1531 = vpow.pop %v1530
    %v1532 = vmul.f32 %v1528, 1.442695
    %v1533 = vpow.pop %v1532
    %v1534 = vmul.f32 %v1529, 1.442695
    %v1535 = vpow.pop %v1534
    %v1536 = vadd.f32 %v1531, 1.0
    %v1537 = vadd.f32 %v1533, 1.0
    %v1538 = vadd.f32 %v1535, 1.0
    %v1539 = vrcp.pop %v1536
    %v1540 = vmul.f32 1.0, %v1539
    %v1541 = vrcp.pop %v1537
    %v1542 = vmul.f32 1.0, %v1541
    %v1543 = vrcp.pop %v1538
    %v1544 = vmul.f32 1.0, %v1543
    %v1545 = vtanh.pop %v1523
    %v1546 = vmul.f32 %v1542, %v1325
    %v1547 = vmul.f32 %v1540, %v1545
    %v1548 = vadd.f32 %v1546, %v1547
    %v1549 = vtanh.pop %v1548
    %v1550 = vmul.f32 %v1544, %v1549
    %s1551 = scalar_lea.vmem [#allocation2], 64
    %v1552 = vld [vmem:[%s1551] sm:$0xff]
    %v1553 = vld [vmem:[%s1551 + $0x8] sm:$0xff]
    %v1554 = vld [vmem:[%s1551 + $0x10] sm:$0xff]
    %v1555 = vld [vmem:[%s1551 + $0x18] sm:$0xff]
    %1556 = vmatprep.subr.bf16.mxu0 %v706
    %1557 = vmatpush1.bf16.msra.mxu0 %v705
    %1558 = vmatprep.subr.bf16.mxu0 %v710
    %1559 = vmatpush1.bf16.msra.mxu0 %v709
    %1560 = vmatprep.subr.bf16.mxu0 %v714
    %1561 = vmatpush1.bf16.msra.mxu0 %v713
    %1562 = vmatprep.subr.bf16.mxu0 %v718
    %1563 = vmatpush1.bf16.msra.mxu0 %v717
    %1564 = vmatprep.subr.bf16.mxu0 %v722
    %1565 = vmatpush1.bf16.msra.mxu0 %v721
    %1566 = vmatprep.subr.bf16.mxu0 %v726
    %1567 = vmatpush1.bf16.msra.mxu0 %v725
    %1568 = vmatprep.subr.bf16.mxu0 %v730
    %1569 = vmatpush1.bf16.msra.mxu0 %v729
    %1570 = vmatprep.subr.bf16.mxu0 %v734
    %1571 = vmatpush1.bf16.msra.mxu0 %v733
    %1572 = vmatprep.subr.bf16.mxu0 0
    %1573 = vmatpush1.bf16.msra.mxu0 0
    %1574 = vmatprep.subr.bf16.mxu0 0
    %1575 = vmatpush1.bf16.msra.mxu0 0
    %1576 = vmatprep.subr.bf16.mxu0 0
    %1577 = vmatpush1.bf16.msra.mxu0 0
    %1578 = vmatprep.subr.bf16.mxu0 0
    %1579 = vmatpush1.bf16.msra.mxu0 0
    %1580 = vmatprep.subr.bf16.mxu0 0
    %1581 = vmatpush1.bf16.msra.mxu0 0
    %1582 = vmatprep.subr.bf16.mxu0 0
    %1583 = vmatpush1.bf16.msra.mxu0 0
    %1584 = vmatprep.subr.bf16.mxu0 0
    %1585 = vmatpush1.bf16.msra.mxu0 0
    %1586 = vmatprep.subr.bf16.mxu0 0
    %1587 = vmatpush1.bf16.msra.mxu0 0
    %1588 = vmatprep.mubr.bf16.mxu0 0
    %1589 = vmatmul.mubr.bf16.gmra.mrb[0].mxu0 %v1443
    %v1590 = vpop.f32.mrb[0].mxu0
    %v1591 = vadd.f32 0.0, %v1590
    %v1592 = vpop.f32.mrb[0].mxu0
    %v1593 = vadd.f32 0.0, %v1592
    %v1594 = vpop.f32.mrb[0].mxu0
    %v1595 = vpop.f32.mrb[0].mxu0
    %1596 = vdwg.mxu0
    %1597 = vmatprep.subr.bf16.mxu0 %v708
    %1598 = vmatpush1.bf16.msra.mxu0 %v707
    %1599 = vmatprep.subr.bf16.mxu0 %v712
    %1600 = vmatpush1.bf16.msra.mxu0 %v711
    %1601 = vmatprep.subr.bf16.mxu0 %v716
    %1602 = vmatpush1.bf16.msra.mxu0 %v715
    %1603 = vmatprep.subr.bf16.mxu0 %v720
    %1604 = vmatpush1.bf16.msra.mxu0 %v719
    %1605 = vmatprep.subr.bf16.mxu0 %v724
    %1606 = vmatpush1.bf16.msra.mxu0 %v723
    %1607 = vmatprep.subr.bf16.mxu0 %v728
    %1608 = vmatpush1.bf16.msra.mxu0 %v727
    %1609 = vmatprep.subr.bf16.mxu0 %v732
    %1610 = vmatpush1.bf16.msra.mxu0 %v731
    %1611 = vmatprep.subr.bf16.mxu0 %v736
    %1612 = vmatpush1.bf16.msra.mxu0 %v735
    %1613 = vmatprep.subr.bf16.mxu0 0
    %1614 = vmatpush1.bf16.msra.mxu0 0
    %1615 = vmatprep.subr.bf16.mxu0 0
    %1616 = vmatpush1.bf16.msra.mxu0 0
    %1617 = vmatprep.subr.bf16.mxu0 0
    %1618 = vmatpush1.bf16.msra.mxu0 0
    %1619 = vmatprep.subr.bf16.mxu0 0
    %1620 = vmatpush1.bf16.msra.mxu0 0
    %1621 = vmatprep.subr.bf16.mxu0 0
    %1622 = vmatpush1.bf16.msra.mxu0 0
    %1623 = vmatprep.subr.bf16.mxu0 0
    %1624 = vmatpush1.bf16.msra.mxu0 0
    %1625 = vmatprep.subr.bf16.mxu0 0
    %1626 = vmatpush1.bf16.msra.mxu0 0
    %1627 = vmatprep.subr.bf16.mxu0 0
    %1628 = vmatpush1.bf16.msra.mxu0 0
    %1629 = vmatprep.mubr.bf16.mxu0 0
    %1630 = vmatmul.mubr.bf16.gmra.mrb[0].mxu0 %v1443
    %v1631 = vpop.f32.mrb[0].mxu0
    %v1632 = vadd.f32 0.0, %v1631
    %v1633 = vpop.f32.mrb[0].mxu0
    %v1634 = vadd.f32 0.0, %v1633
    %v1635 = vpop.f32.mrb[0].mxu0
    %v1636 = vpop.f32.mrb[0].mxu0
    %1637 = vdwg.mxu0
    %v1638 = vadd.f32 %v1552, %v1591
    %v1639 = vadd.f32 %v1553, %v1593
    %v1640 = vadd.f32 %v1554, %v1632
    %v1641 = vadd.f32 %v1555, %v1634
    %v1642 = vxor.u32 %v1638, 2147483648
    %v1643 = vxor.u32 %v1639, 2147483648
    %v1644 = vxor.u32 %v1640, 2147483648
    %v1645 = vmul.f32 %v1642, 1.442695
    %v1646 = vpow.pop %v1645
    %v1647 = vmul.f32 %v1643, 1.442695
    %v1648 = vpow.pop %v1647
    %v1649 = vmul.f32 %v1644, 1.442695
    %v1650 = vpow.pop %v1649
    %v1651 = vadd.f32 %v1646, 1.0
    %v1652 = vadd.f32 %v1648, 1.0
    %v1653 = vadd.f32 %v1650, 1.0
    %v1654 = vrcp.pop %v1651
    %v1655 = vmul.f32 1.0, %v1654
    %v1656 = vrcp.pop %v1652
    %v1657 = vmul.f32 1.0, %v1656
    %v1658 = vrcp.pop %v1653
    %v1659 = vmul.f32 1.0, %v1658
    %v1660 = vtanh.pop %v1641
    %v1661 = vmul.f32 %v1657, %v1440
    %v1662 = vmul.f32 %v1655, %v1660
    %v1663 = vadd.f32 %v1661, %v1662
    %v1664 = vtanh.pop %v1663
    %v1665 = vmul.f32 %v1659, %v1664
    %v1666 = vpack.c.bf16 %v1665, %v1665
    %v1667 = vpack.c.bf16 %v1550, %v1550
    %1668 = vmatprep.subr.bf16.mxu0 %v1095
    %1669 = vmatpush1.bf16.msra.mxu0 %v1094
    %1670 = vmatprep.subr.bf16.mxu0 %v1099
    %1671 = vmatpush1.bf16.msra.mxu0 %v1098
    %1672 = vmatprep.subr.bf16.mxu0 %v1103
    %1673 = vmatpush1.bf16.msra.mxu0 %v1102
    %1674 = vmatprep.subr.bf16.mxu0 %v1107
    %1675 = vmatpush1.bf16.msra.mxu0 %v1106
    %1676 = vmatprep.subr.bf16.mxu0 %v1111
    %1677 = vmatpush1.bf16.msra.mxu0 %v1110
    %1678 = vmatprep.subr.bf16.mxu0 %v1115
    %1679 = vmatpush1.bf16.msra.mxu0 %v1114
    %1680 = vmatprep.subr.bf16.mxu0 %v1119
    %1681 = vmatpush1.bf16.msra.mxu0 %v1118
    %1682 = vmatprep.subr.bf16.mxu0 %v1123
    %1683 = vmatpush1.bf16.msra.mxu0 %v1122
    %1684 = vmatprep.subr.bf16.mxu0 %v1127
    %1685 = vmatpush1.bf16.msra.mxu0 %v1126
    %1686 = vmatprep.subr.bf16.mxu0 %v1131
    %1687 = vmatpush1.bf16.msra.mxu0 %v1130
    %1688 = vmatprep.subr.bf16.mxu0 %v1135
    %1689 = vmatpush1.bf16.msra.mxu0 %v1134
    %1690 = vmatprep.subr.bf16.mxu0 %v1139
    %1691 = vmatpush1.bf16.msra.mxu0 %v1138
    %1692 = vmatprep.subr.bf16.mxu0 %v1143
    %1693 = vmatpush1.bf16.msra.mxu0 %v1142
    %1694 = vmatprep.subr.bf16.mxu0 %v1147
    %1695 = vmatpush1.bf16.msra.mxu0 %v1146
    %1696 = vmatprep.subr.bf16.mxu0 %v1151
    %1697 = vmatpush1.bf16.msra.mxu0 %v1150
    %1698 = vmatprep.subr.bf16.mxu0 %v1155
    %1699 = vmatpush1.bf16.msra.mxu0 %v1154
    %1700 = vmatprep.mubr.bf16.mxu0 %v1667
    %1701 = vmatmul.mubr.bf16.gmra.mrb[0].mxu0 %v1666
    %v1702 = vpop.f32.mrb[0].mxu0
    %v1703 = vadd.f32 %v885, %v1702
    %v1704 = vpop.f32.mrb[0].mxu0
    %v1705 = vadd.f32 %v889, %v1704
    %v1706 = vpop.f32.mrb[0].mxu0
    %v1707 = vpop.f32.mrb[0].mxu0
    %1708 = vdwg.mxu0
    %1709 = vmatprep.subr.bf16.mxu0 %v1097
    %1710 = vmatpush1.bf16.msra.mxu0 %v1096
    %1711 = vmatprep.subr.bf16.mxu0 %v1101
    %1712 = vmatpush1.bf16.msra.mxu0 %v1100
    %1713 = vmatprep.subr.bf16.mxu0 %v1105
    %1714 = vmatpush1.bf16.msra.mxu0 %v1104
    %1715 = vmatprep.subr.bf16.mxu0 %v1109
    %1716 = vmatpush1.bf16.msra.mxu0 %v1108
    %1717 = vmatprep.subr.bf16.mxu0 %v1113
    %1718 = vmatpush1.bf16.msra.mxu0 %v1112
    %1719 = vmatprep.subr.bf16.mxu0 %v1117
    %1720 = vmatpush1.bf16.msra.mxu0 %v1116
    %1721 = vmatprep.subr.bf16.mxu0 %v1121
    %1722 = vmatpush1.bf16.msra.mxu0 %v1120
    %1723 = vmatprep.subr.bf16.mxu0 %v1125
    %1724 = vmatpush1.bf16.msra.mxu0 %v1124
    %1725 = vmatprep.subr.bf16.mxu0 %v1129
    %1726 = vmatpush1.bf16.msra.mxu0 %v1128
    %1727 = vmatprep.subr.bf16.mxu0 %v1133
    %1728 = vmatpush1.bf16.msra.mxu0 %v1132
    %1729 = vmatprep.subr.bf16.mxu0 %v1137
    %1730 = vmatpush1.bf16.msra.mxu0 %v1136
    %1731 = vmatprep.subr.bf16.mxu0 %v1141
    %1732 = vmatpush1.bf16.msra.mxu0 %v1140
    %1733 = vmatprep.subr.bf16.mxu0 %v1145
    %1734 = vmatpush1.bf16.msra.mxu0 %v1144
    %1735 = vmatprep.subr.bf16.mxu0 %v1149
    %1736 = vmatpush1.bf16.msra.mxu0 %v1148
    %1737 = vmatprep.subr.bf16.mxu0 %v1153
    %1738 = vmatpush1.bf16.msra.mxu0 %v1152
    %1739 = vmatprep.subr.bf16.mxu0 %v1157
    %1740 = vmatpush1.bf16.msra.mxu0 %v1156
    %1741 = vmatprep.mubr.bf16.mxu0 %v1667
    %1742 = vmatmul.mubr.bf16.gmra.mrb[0].mxu0 %v1666
    %v1743 = vpop.f32.mrb[0].mxu0
    %v1744 = vadd.f32 %v893, %v1743
    %v1745 = vpop.f32.mrb[0].mxu0
    %v1746 = vadd.f32 %v897, %v1745
    %v1747 = vpop.f32.mrb[0].mxu0
    %v1748 = vpop.f32.mrb[0].mxu0
    %1749 = vdwg.mxu0
    %v1750 = vxor.u32 %v1703, 2147483648
    %v1751 = vxor.u32 %v1705, 2147483648
    %v1752 = vxor.u32 %v1744, 2147483648
    %v1753 = vmul.f32 %v1750, 1.442695
    %v1754 = vpow.pop %v1753
    %v1755 = vmul.f32 %v1751, 1.442695
    %v1756 = vpow.pop %v1755
    %v1757 = vmul.f32 %v1752, 1.442695
    %v1758 = vpow.pop %v1757
    %v1759 = vadd.f32 %v1754, 1.0
    %v1760 = vadd.f32 %v1756, 1.0
    %v1761 = vadd.f32 %v1758, 1.0
    %v1762 = vrcp.pop %v1759
    %v1763 = vmul.f32 1.0, %v1762
    %v1764 = vrcp.pop %v1760
    %v1765 = vmul.f32 1.0, %v1764
    %v1766 = vrcp.pop %v1761
    %v1767 = vmul.f32 1.0, %v1766
    %v1768 = vtanh.pop %v1746
    %v1769 = vmul.f32 %v1765, %v1548
    %v1770 = vmul.f32 %v1763, %v1768
    %v1771 = vadd.f32 %v1769, %v1770
    %v1772 = vtanh.pop %v1771
    %v1773 = vmul.f32 %v1767, %v1772
    %s1774 = scalar_lea.vmem [#allocation2], 96
    %v1775 = vld [vmem:[%s1774] sm:$0xff]
    %v1776 = vld [vmem:[%s1774 + $0x8] sm:$0xff]
    %v1777 = vld [vmem:[%s1774 + $0x10] sm:$0xff]
    %v1778 = vld [vmem:[%s1774 + $0x18] sm:$0xff]
    %1779 = vmatprep.subr.bf16.mxu0 %v706
    %1780 = vmatpush1.bf16.msra.mxu0 %v705
    %1781 = vmatprep.subr.bf16.mxu0 %v710
    %1782 = vmatpush1.bf16.msra.mxu0 %v709
    %1783 = vmatprep.subr.bf16.mxu0 %v714
    %1784 = vmatpush1.bf16.msra.mxu0 %v713
    %1785 = vmatprep.subr.bf16.mxu0 %v718
    %1786 = vmatpush1.bf16.msra.mxu0 %v717
    %1787 = vmatprep.subr.bf16.mxu0 %v722
    %1788 = vmatpush1.bf16.msra.mxu0 %v721
    %1789 = vmatprep.subr.bf16.mxu0 %v726
    %1790 = vmatpush1.bf16.msra.mxu0 %v725
    %1791 = vmatprep.subr.bf16.mxu0 %v730
    %1792 = vmatpush1.bf16.msra.mxu0 %v729
    %1793 = vmatprep.subr.bf16.mxu0 %v734
    %1794 = vmatpush1.bf16.msra.mxu0 %v733
    %1795 = vmatprep.subr.bf16.mxu0 0
    %1796 = vmatpush1.bf16.msra.mxu0 0
    %1797 = vmatprep.subr.bf16.mxu0 0
    %1798 = vmatpush1.bf16.msra.mxu0 0
    %1799 = vmatprep.subr.bf16.mxu0 0
    %1800 = vmatpush1.bf16.msra.mxu0 0
    %1801 = vmatprep.subr.bf16.mxu0 0
    %1802 = vmatpush1.bf16.msra.mxu0 0
    %1803 = vmatprep.subr.bf16.mxu0 0
    %1804 = vmatpush1.bf16.msra.mxu0 0
    %1805 = vmatprep.subr.bf16.mxu0 0
    %1806 = vmatpush1.bf16.msra.mxu0 0
    %1807 = vmatprep.subr.bf16.mxu0 0
    %1808 = vmatpush1.bf16.msra.mxu0 0
    %1809 = vmatprep.subr.bf16.mxu0 0
    %1810 = vmatpush1.bf16.msra.mxu0 0
    %1811 = vmatprep.mubr.bf16.mxu0 0
    %1812 = vmatmul.mubr.bf16.gmra.mrb[0].mxu0 %v1666
    %v1813 = vpop.f32.mrb[0].mxu0
    %v1814 = vadd.f32 0.0, %v1813
    %v1815 = vpop.f32.mrb[0].mxu0
    %v1816 = vadd.f32 0.0, %v1815
    %v1817 = vpop.f32.mrb[0].mxu0
    %v1818 = vpop.f32.mrb[0].mxu0
    %1819 = vdwg.mxu0
    %1820 = vmatprep.subr.bf16.mxu0 %v708
    %1821 = vmatpush1.bf16.msra.mxu0 %v707
    %1822 = vmatprep.subr.bf16.mxu0 %v712
    %1823 = vmatpush1.bf16.msra.mxu0 %v711
    %1824 = vmatprep.subr.bf16.mxu0 %v716
    %1825 = vmatpush1.bf16.msra.mxu0 %v715
    %1826 = vmatprep.subr.bf16.mxu0 %v720
    %1827 = vmatpush1.bf16.msra.mxu0 %v719
    %1828 = vmatprep.subr.bf16.mxu0 %v724
    %1829 = vmatpush1.bf16.msra.mxu0 %v723
    %1830 = vmatprep.subr.bf16.mxu0 %v728
    %1831 = vmatpush1.bf16.msra.mxu0 %v727
    %1832 = vmatprep.subr.bf16.mxu0 %v732
    %1833 = vmatpush1.bf16.msra.mxu0 %v731
    %1834 = vmatprep.subr.bf16.mxu0 %v736
    %1835 = vmatpush1.bf16.msra.mxu0 %v735
    %1836 = vmatprep.subr.bf16.mxu0 0
    %1837 = vmatpush1.bf16.msra.mxu0 0
    %1838 = vmatprep.subr.bf16.mxu0 0
    %1839 = vmatpush1.bf16.msra.mxu0 0
    %1840 = vmatprep.subr.bf16.mxu0 0
    %1841 = vmatpush1.bf16.msra.mxu0 0
    %1842 = vmatprep.subr.bf16.mxu0 0
    %1843 = vmatpush1.bf16.msra.mxu0 0
    %1844 = vmatprep.subr.bf16.mxu0 0
    %1845 = vmatpush1.bf16.msra.mxu0 0
    %1846 = vmatprep.subr.bf16.mxu0 0
    %1847 = vmatpush1.bf16.msra.mxu0 0
    %1848 = vmatprep.subr.bf16.mxu0 0
    %1849 = vmatpush1.bf16.msra.mxu0 0
    %1850 = vmatprep.subr.bf16.mxu0 0
    %1851 = vmatpush1.bf16.msra.mxu0 0
    %1852 = vmatprep.mubr.bf16.mxu0 0
    %1853 = vmatmul.mubr.bf16.gmra.mrb[0].mxu0 %v1666
    %v1854 = vpop.f32.mrb[0].mxu0
    %v1855 = vadd.f32 0.0, %v1854
    %v1856 = vpop.f32.mrb[0].mxu0
    %v1857 = vadd.f32 0.0, %v1856
    %v1858 = vpop.f32.mrb[0].mxu0
    %v1859 = vpop.f32.mrb[0].mxu0
    %1860 = vdwg.mxu0
    %v1861 = vadd.f32 %v1775, %v1814
    %v1862 = vadd.f32 %v1776, %v1816
    %v1863 = vadd.f32 %v1777, %v1855
    %v1864 = vadd.f32 %v1778, %v1857
    %v1865 = vxor.u32 %v1861, 2147483648
    %v1866 = vxor.u32 %v1862, 2147483648
    %v1867 = vxor.u32 %v1863, 2147483648
    %v1868 = vmul.f32 %v1865, 1.442695
    %v1869 = vpow.pop %v1868
    %v1870 = vmul.f32 %v1866, 1.442695
    %v1871 = vpow.pop %v1870
    %v1872 = vmul.f32 %v1867, 1.442695
    %v1873 = vpow.pop %v1872
    %v1874 = vadd.f32 %v1869, 1.0
    %v1875 = vadd.f32 %v1871, 1.0
    %v1876 = vadd.f32 %v1873, 1.0
    %v1877 = vrcp.pop %v1874
    %v1878 = vmul.f32 1.0, %v1877
    %v1879 = vrcp.pop %v1875
    %v1880 = vmul.f32 1.0, %v1879
    %v1881 = vrcp.pop %v1876
    %v1882 = vmul.f32 1.0, %v1881
    %v1883 = vtanh.pop %v1864
    %v1884 = vmul.f32 %v1880, %v1663
    %v1885 = vmul.f32 %v1878, %v1883
    %v1886 = vadd.f32 %v1884, %v1885
    %v1887 = vtanh.pop %v1886
    %v1888 = vmul.f32 %v1882, %v1887
    %v1889 = vpack.c.bf16 %v1888, %v1888
    %v1890 = vpack.c.bf16 %v1773, %v1773
    %1891 = vmatprep.subr.bf16.mxu0 %v1095
    %1892 = vmatpush1.bf16.msra.mxu0 %v1094
    %1893 = vmatprep.subr.bf16.mxu0 %v1099
    %1894 = vmatpush1.bf16.msra.mxu0 %v1098
    %1895 = vmatprep.subr.bf16.mxu0 %v1103
    %1896 = vmatpush1.bf16.msra.mxu0 %v1102
    %1897 = vmatprep.subr.bf16.mxu0 %v1107
    %1898 = vmatpush1.bf16.msra.mxu0 %v1106
    %1899 = vmatprep.subr.bf16.mxu0 %v1111
    %1900 = vmatpush1.bf16.msra.mxu0 %v1110
    %1901 = vmatprep.subr.bf16.mxu0 %v1115
    %1902 = vmatpush1.bf16.msra.mxu0 %v1114
    %1903 = vmatprep.subr.bf16.mxu0 %v1119
    %1904 = vmatpush1.bf16.msra.mxu0 %v1118
    %1905 = vmatprep.subr.bf16.mxu0 %v1123
    %1906 = vmatpush1.bf16.msra.mxu0 %v1122
    %1907 = vmatprep.subr.bf16.mxu0 %v1127
    %1908 = vmatpush1.bf16.msra.mxu0 %v1126
    %1909 = vmatprep.subr.bf16.mxu0 %v1131
    %1910 = vmatpush1.bf16.msra.mxu0 %v1130
    %1911 = vmatprep.subr.bf16.mxu0 %v1135
    %1912 = vmatpush1.bf16.msra.mxu0 %v1134
    %1913 = vmatprep.subr.bf16.mxu0 %v1139
    %1914 = vmatpush1.bf16.msra.mxu0 %v1138
    %1915 = vmatprep.subr.bf16.mxu0 %v1143
    %1916 = vmatpush1.bf16.msra.mxu0 %v1142
    %1917 = vmatprep.subr.bf16.mxu0 %v1147
    %1918 = vmatpush1.bf16.msra.mxu0 %v1146
    %1919 = vmatprep.subr.bf16.mxu0 %v1151
    %1920 = vmatpush1.bf16.msra.mxu0 %v1150
    %1921 = vmatprep.subr.bf16.mxu0 %v1155
    %1922 = vmatpush1.bf16.msra.mxu0 %v1154
    %1923 = vmatprep.mubr.bf16.mxu0 %v1890
    %1924 = vmatmul.mubr.bf16.gmra.mrb[0].mxu0 %v1889
    %v1925 = vpop.f32.mrb[0].mxu0
    %v1926 = vadd.f32 %v885, %v1925
    %v1927 = vpop.f32.mrb[0].mxu0
    %v1928 = vadd.f32 %v889, %v1927
    %v1929 = vpop.f32.mrb[0].mxu0
    %v1930 = vpop.f32.mrb[0].mxu0
    %1931 = vdwg.mxu0
    %1932 = vmatprep.subr.bf16.mxu0 %v1097
    %1933 = vmatpush1.bf16.msra.mxu0 %v1096
    %1934 = vmatprep.subr.bf16.mxu0 %v1101
    %1935 = vmatpush1.bf16.msra.mxu0 %v1100
    %1936 = vmatprep.subr.bf16.mxu0 %v1105
    %1937 = vmatpush1.bf16.msra.mxu0 %v1104
    %1938 = vmatprep.subr.bf16.mxu0 %v1109
    %1939 = vmatpush1.bf16.msra.mxu0 %v1108
    %1940 = vmatprep.subr.bf16.mxu0 %v1113
    %1941 = vmatpush1.bf16.msra.mxu0 %v1112
    %1942 = vmatprep.subr.bf16.mxu0 %v1117
    %1943 = vmatpush1.bf16.msra.mxu0 %v1116
    %1944 = vmatprep.subr.bf16.mxu0 %v1121
    %1945 = vmatpush1.bf16.msra.mxu0 %v1120
    %1946 = vmatprep.subr.bf16.mxu0 %v1125
    %1947 = vmatpush1.bf16.msra.mxu0 %v1124
    %1948 = vmatprep.subr.bf16.mxu0 %v1129
    %1949 = vmatpush1.bf16.msra.mxu0 %v1128
    %1950 = vmatprep.subr.bf16.mxu0 %v1133
    %1951 = vmatpush1.bf16.msra.mxu0 %v1132
    %1952 = vmatprep.subr.bf16.mxu0 %v1137
    %1953 = vmatpush1.bf16.msra.mxu0 %v1136
    %1954 = vmatprep.subr.bf16.mxu0 %v1141
    %1955 = vmatpush1.bf16.msra.mxu0 %v1140
    %1956 = vmatprep.subr.bf16.mxu0 %v1145
    %1957 = vmatpush1.bf16.msra.mxu0 %v1144
    %1958 = vmatprep.subr.bf16.mxu0 %v1149
    %1959 = vmatpush1.bf16.msra.mxu0 %v1148
    %1960 = vmatprep.subr.bf16.mxu0 %v1153
    %1961 = vmatpush1.bf16.msra.mxu0 %v1152
    %1962 = vmatprep.subr.bf16.mxu0 %v1157
    %1963 = vmatpush1.bf16.msra.mxu0 %v1156
    %1964 = vmatprep.mubr.bf16.mxu0 %v1890
    %1965 = vmatmul.mubr.bf16.gmra.mrb[0].mxu0 %v1889
    %v1966 = vpop.f32.mrb[0].mxu0
    %v1967 = vadd.f32 %v893, %v1966
    %v1968 = vpop.f32.mrb[0].mxu0
    %v1969 = vadd.f32 %v897, %v1968
    %v1970 = vpop.f32.mrb[0].mxu0
    %v1971 = vpop.f32.mrb[0].mxu0
    %1972 = vdwg.mxu0
    %v1973 = vxor.u32 %v1926, 2147483648
    %v1974 = vxor.u32 %v1928, 2147483648
    %v1975 = vxor.u32 %v1967, 2147483648
    %v1976 = vmul.f32 %v1973, 1.442695
    %v1977 = vpow.pop %v1976
    %v1978 = vmul.f32 %v1974, 1.442695
    %v1979 = vpow.pop %v1978
    %v1980 = vmul.f32 %v1975, 1.442695
    %v1981 = vpow.pop %v1980
    %v1982 = vadd.f32 %v1977, 1.0
    %v1983 = vadd.f32 %v1979, 1.0
    %v1984 = vadd.f32 %v1981, 1.0
    %v1985 = vrcp.pop %v1982
    %v1986 = vmul.f32 1.0, %v1985
    %v1987 = vrcp.pop %v1983
    %v1988 = vmul.f32 1.0, %v1987
    %v1989 = vrcp.pop %v1984
    %v1990 = vmul.f32 1.0, %v1989
    %v1991 = vtanh.pop %v1969
    %v1992 = vmul.f32 %v1988, %v1771
    %v1993 = vmul.f32 %v1986, %v1991
    %v1994 = vadd.f32 %v1992, %v1993
    %v1995 = vtanh.pop %v1994
    %v1996 = vmul.f32 %v1990, %v1995
    %s1997 = scalar_lea.vmem [#allocation2], 128
    %v1998 = vld [vmem:[%s1997] sm:$0xff]
    %v1999 = vld [vmem:[%s1997 + $0x8] sm:$0xff]
    %v2000 = vld [vmem:[%s1997 + $0x10] sm:$0xff]
    %v2001 = vld [vmem:[%s1997 + $0x18] sm:$0xff]
    %2002 = vmatprep.subr.bf16.mxu0 %v706
    %2003 = vmatpush1.bf16.msra.mxu0 %v705
    %2004 = vmatprep.subr.bf16.mxu0 %v710
    %2005 = vmatpush1.bf16.msra.mxu0 %v709
    %2006 = vmatprep.subr.bf16.mxu0 %v714
    %2007 = vmatpush1.bf16.msra.mxu0 %v713
    %2008 = vmatprep.subr.bf16.mxu0 %v718
    %2009 = vmatpush1.bf16.msra.mxu0 %v717
    %2010 = vmatprep.subr.bf16.mxu0 %v722
    %2011 = vmatpush1.bf16.msra.mxu0 %v721
    %2012 = vmatprep.subr.bf16.mxu0 %v726
    %2013 = vmatpush1.bf16.msra.mxu0 %v725
    %2014 = vmatprep.subr.bf16.mxu0 %v730
    %2015 = vmatpush1.bf16.msra.mxu0 %v729
    %2016 = vmatprep.subr.bf16.mxu0 %v734
    %2017 = vmatpush1.bf16.msra.mxu0 %v733
    %2018 = vmatprep.subr.bf16.mxu0 0
    %2019 = vmatpush1.bf16.msra.mxu0 0
    %2020 = vmatprep.subr.bf16.mxu0 0
    %2021 = vmatpush1.bf16.msra.mxu0 0
    %2022 = vmatprep.subr.bf16.mxu0 0
    %2023 = vmatpush1.bf16.msra.mxu0 0
    %2024 = vmatprep.subr.bf16.mxu0 0
    %2025 = vmatpush1.bf16.msra.mxu0 0
    %2026 = vmatprep.subr.bf16.mxu0 0
    %2027 = vmatpush1.bf16.msra.mxu0 0
    %2028 = vmatprep.subr.bf16.mxu0 0
    %2029 = vmatpush1.bf16.msra.mxu0 0
    %2030 = vmatprep.subr.bf16.mxu0 0
    %2031 = vmatpush1.bf16.msra.mxu0 0
    %2032 = vmatprep.subr.bf16.mxu0 0
    %2033 = vmatpush1.bf16.msra.mxu0 0
    %2034 = vmatprep.mubr.bf16.mxu0 0
    %2035 = vmatmul.mubr.bf16.gmra.mrb[0].mxu0 %v1889
    %v2036 = vpop.f32.mrb[0].mxu0
    %v2037 = vadd.f32 0.0, %v2036
    %v2038 = vpop.f32.mrb[0].mxu0
    %v2039 = vadd.f32 0.0, %v2038
    %v2040 = vpop.f32.mrb[0].mxu0
    %v2041 = vpop.f32.mrb[0].mxu0
    %2042 = vdwg.mxu0
    %2043 = vmatprep.subr.bf16.mxu0 %v708
    %2044 = vmatpush1.bf16.msra.mxu0 %v707
    %2045 = vmatprep.subr.bf16.mxu0 %v712
    %2046 = vmatpush1.bf16.msra.mxu0 %v711
    %2047 = vmatprep.subr.bf16.mxu0 %v716
    %2048 = vmatpush1.bf16.msra.mxu0 %v715
    %2049 = vmatprep.subr.bf16.mxu0 %v720
    %2050 = vmatpush1.bf16.msra.mxu0 %v719
    %2051 = vmatprep.subr.bf16.mxu0 %v724
    %2052 = vmatpush1.bf16.msra.mxu0 %v723
    %2053 = vmatprep.subr.bf16.mxu0 %v728
    %2054 = vmatpush1.bf16.msra.mxu0 %v727
    %2055 = vmatprep.subr.bf16.mxu0 %v732
    %2056 = vmatpush1.bf16.msra.mxu0 %v731
    %2057 = vmatprep.subr.bf16.mxu0 %v736
    %2058 = vmatpush1.bf16.msra.mxu0 %v735
    %2059 = vmatprep.subr.bf16.mxu0 0
    %2060 = vmatpush1.bf16.msra.mxu0 0
    %2061 = vmatprep.subr.bf16.mxu0 0
    %2062 = vmatpush1.bf16.msra.mxu0 0
    %2063 = vmatprep.subr.bf16.mxu0 0
    %2064 = vmatpush1.bf16.msra.mxu0 0
    %2065 = vmatprep.subr.bf16.mxu0 0
    %2066 = vmatpush1.bf16.msra.mxu0 0
    %2067 = vmatprep.subr.bf16.mxu0 0
    %2068 = vmatpush1.bf16.msra.mxu0 0
    %2069 = vmatprep.subr.bf16.mxu0 0
    %2070 = vmatpush1.bf16.msra.mxu0 0
    %2071 = vmatprep.subr.bf16.mxu0 0
    %2072 = vmatpush1.bf16.msra.mxu0 0
    %2073 = vmatprep.subr.bf16.mxu0 0
    %2074 = vmatpush1.bf16.msra.mxu0 0
    %2075 = vmatprep.mubr.bf16.mxu0 0
    %2076 = vmatmul.mubr.bf16.gmra.mrb[0].mxu0 %v1889
    %v2077 = vpop.f32.mrb[0].mxu0
    %v2078 = vadd.f32 0.0, %v2077
    %v2079 = vpop.f32.mrb[0].mxu0
    %v2080 = vadd.f32 0.0, %v2079
    %v2081 = vpop.f32.mrb[0].mxu0
    %v2082 = vpop.f32.mrb[0].mxu0
    %2083 = vdwg.mxu0
    %v2084 = vadd.f32 %v1998, %v2037
    %v2085 = vadd.f32 %v1999, %v2039
    %v2086 = vadd.f32 %v2000, %v2078
    %v2087 = vadd.f32 %v2001, %v2080
    %v2088 = vxor.u32 %v2084, 2147483648
    %v2089 = vxor.u32 %v2085, 2147483648
    %v2090 = vxor.u32 %v2086, 2147483648
    %v2091 = vmul.f32 %v2088, 1.442695
    %v2092 = vpow.pop %v2091
    %v2093 = vmul.f32 %v2089, 1.442695
    %v2094 = vpow.pop %v2093
    %v2095 = vmul.f32 %v2090, 1.442695
    %v2096 = vpow.pop %v2095
    %v2097 = vadd.f32 %v2092, 1.0
    %v2098 = vadd.f32 %v2094, 1.0
    %v2099 = vadd.f32 %v2096, 1.0
    %v2100 = vrcp.pop %v2097
    %v2101 = vmul.f32 1.0, %v2100
    %v2102 = vrcp.pop %v2098
    %v2103 = vmul.f32 1.0, %v2102
    %v2104 = vrcp.pop %v2099
    %v2105 = vmul.f32 1.0, %v2104
    %v2106 = vtanh.pop %v2087
    %v2107 = vmul.f32 %v2103, %v1886
    %v2108 = vmul.f32 %v2101, %v2106
    %v2109 = vadd.f32 %v2107, %v2108
    %v2110 = vtanh.pop %v2109
    %v2111 = vmul.f32 %v2105, %v2110
    %v2112 = vpack.c.bf16 %v2111, %v2111
    %v2113 = vpack.c.bf16 %v1996, %v1996
    %2114 = vmatprep.subr.bf16.mxu0 %v1095
    %2115 = vmatpush1.bf16.msra.mxu0 %v1094
    %2116 = vmatprep.subr.bf16.mxu0 %v1099
    %2117 = vmatpush1.bf16.msra.mxu0 %v1098
    %2118 = vmatprep.subr.bf16.mxu0 %v1103
    %2119 = vmatpush1.bf16.msra.mxu0 %v1102
    %2120 = vmatprep.subr.bf16.mxu0 %v1107
    %2121 = vmatpush1.bf16.msra.mxu0 %v1106
    %2122 = vmatprep.subr.bf16.mxu0 %v1111
    %2123 = vmatpush1.bf16.msra.mxu0 %v1110
    %2124 = vmatprep.subr.bf16.mxu0 %v1115
    %2125 = vmatpush1.bf16.msra.mxu0 %v1114
    %2126 = vmatprep.subr.bf16.mxu0 %v1119
    %2127 = vmatpush1.bf16.msra.mxu0 %v1118
    %2128 = vmatprep.subr.bf16.mxu0 %v1123
    %2129 = vmatpush1.bf16.msra.mxu0 %v1122
    %2130 = vmatprep.subr.bf16.mxu0 %v1127
    %2131 = vmatpush1.bf16.msra.mxu0 %v1126
    %2132 = vmatprep.subr.bf16.mxu0 %v1131
    %2133 = vmatpush1.bf16.msra.mxu0 %v1130
    %2134 = vmatprep.subr.bf16.mxu0 %v1135
    %2135 = vmatpush1.bf16.msra.mxu0 %v1134
    %2136 = vmatprep.subr.bf16.mxu0 %v1139
    %2137 = vmatpush1.bf16.msra.mxu0 %v1138
    %2138 = vmatprep.subr.bf16.mxu0 %v1143
    %2139 = vmatpush1.bf16.msra.mxu0 %v1142
    %2140 = vmatprep.subr.bf16.mxu0 %v1147
    %2141 = vmatpush1.bf16.msra.mxu0 %v1146
    %2142 = vmatprep.subr.bf16.mxu0 %v1151
    %2143 = vmatpush1.bf16.msra.mxu0 %v1150
    %2144 = vmatprep.subr.bf16.mxu0 %v1155
    %2145 = vmatpush1.bf16.msra.mxu0 %v1154
    %2146 = vmatprep.mubr.bf16.mxu0 %v2113
    %2147 = vmatmul.mubr.bf16.gmra.mrb[0].mxu0 %v2112
    %v2148 = vpop.f32.mrb[0].mxu0
    %v2149 = vadd.f32 %v885, %v2148
    %v2150 = vpop.f32.mrb[0].mxu0
    %v2151 = vadd.f32 %v889, %v2150
    %v2152 = vpop.f32.mrb[0].mxu0
    %v2153 = vpop.f32.mrb[0].mxu0
    %2154 = vdwg.mxu0
    %2155 = vmatprep.subr.bf16.mxu0 %v1097
    %2156 = vmatpush1.bf16.msra.mxu0 %v1096
    %2157 = vmatprep.subr.bf16.mxu0 %v1101
    %2158 = vmatpush1.bf16.msra.mxu0 %v1100
    %2159 = vmatprep.subr.bf16.mxu0 %v1105
    %2160 = vmatpush1.bf16.msra.mxu0 %v1104
    %2161 = vmatprep.subr.bf16.mxu0 %v1109
    %2162 = vmatpush1.bf16.msra.mxu0 %v1108
    %2163 = vmatprep.subr.bf16.mxu0 %v1113
    %2164 = vmatpush1.bf16.msra.mxu0 %v1112
    %2165 = vmatprep.subr.bf16.mxu0 %v1117
    %2166 = vmatpush1.bf16.msra.mxu0 %v1116
    %2167 = vmatprep.subr.bf16.mxu0 %v1121
    %2168 = vmatpush1.bf16.msra.mxu0 %v1120
    %2169 = vmatprep.subr.bf16.mxu0 %v1125
    %2170 = vmatpush1.bf16.msra.mxu0 %v1124
    %2171 = vmatprep.subr.bf16.mxu0 %v1129
    %2172 = vmatpush1.bf16.msra.mxu0 %v1128
    %2173 = vmatprep.subr.bf16.mxu0 %v1133
    %2174 = vmatpush1.bf16.msra.mxu0 %v1132
    %2175 = vmatprep.subr.bf16.mxu0 %v1137
    %2176 = vmatpush1.bf16.msra.mxu0 %v1136
    %2177 = vmatprep.subr.bf16.mxu0 %v1141
    %2178 = vmatpush1.bf16.msra.mxu0 %v1140
    %2179 = vmatprep.subr.bf16.mxu0 %v1145
    %2180 = vmatpush1.bf16.msra.mxu0 %v1144
    %2181 = vmatprep.subr.bf16.mxu0 %v1149
    %2182 = vmatpush1.bf16.msra.mxu0 %v1148
    %2183 = vmatprep.subr.bf16.mxu0 %v1153
    %2184 = vmatpush1.bf16.msra.mxu0 %v1152
    %2185 = vmatprep.subr.bf16.mxu0 %v1157
    %2186 = vmatpush1.bf16.msra.mxu0 %v1156
    %2187 = vmatprep.mubr.bf16.mxu0 %v2113
    %2188 = vmatmul.mubr.bf16.gmra.mrb[0].mxu0 %v2112
    %v2189 = vpop.f32.mrb[0].mxu0
    %v2190 = vadd.f32 %v893, %v2189
    %v2191 = vpop.f32.mrb[0].mxu0
    %v2192 = vadd.f32 %v897, %v2191
    %v2193 = vpop.f32.mrb[0].mxu0
    %v2194 = vpop.f32.mrb[0].mxu0
    %2195 = vdwg.mxu0
    %v2196 = vxor.u32 %v2149, 2147483648
    %v2197 = vxor.u32 %v2151, 2147483648
    %v2198 = vxor.u32 %v2190, 2147483648
    %v2199 = vmul.f32 %v2196, 1.442695
    %v2200 = vpow.pop %v2199
    %v2201 = vmul.f32 %v2197, 1.442695
    %v2202 = vpow.pop %v2201
    %v2203 = vmul.f32 %v2198, 1.442695
    %v2204 = vpow.pop %v2203
    %v2205 = vadd.f32 %v2200, 1.0
    %v2206 = vadd.f32 %v2202, 1.0
    %v2207 = vadd.f32 %v2204, 1.0
    %v2208 = vrcp.pop %v2205
    %v2209 = vmul.f32 1.0, %v2208
    %v2210 = vrcp.pop %v2206
    %v2211 = vmul.f32 1.0, %v2210
    %v2212 = vrcp.pop %v2207
    %v2213 = vmul.f32 1.0, %v2212
    %v2214 = vtanh.pop %v2192
    %v2215 = vmul.f32 %v2211, %v1994
    %v2216 = vmul.f32 %v2209, %v2214
    %v2217 = vadd.f32 %v2215, %v2216
    %v2218 = vtanh.pop %v2217
    %v2219 = vmul.f32 %v2213, %v2218
    %s2220 = scalar_lea.vmem [#allocation2], 160
    %v2221 = vld [vmem:[%s2220] sm:$0xff]
    %v2222 = vld [vmem:[%s2220 + $0x8] sm:$0xff]
    %v2223 = vld [vmem:[%s2220 + $0x10] sm:$0xff]
    %v2224 = vld [vmem:[%s2220 + $0x18] sm:$0xff]
    %2225 = vmatprep.subr.bf16.mxu0 %v706
    %2226 = vmatpush1.bf16.msra.mxu0 %v705
    %2227 = vmatprep.subr.bf16.mxu0 %v710
    %2228 = vmatpush1.bf16.msra.mxu0 %v709
    %2229 = vmatprep.subr.bf16.mxu0 %v714
    %2230 = vmatpush1.bf16.msra.mxu0 %v713
    %2231 = vmatprep.subr.bf16.mxu0 %v718
    %2232 = vmatpush1.bf16.msra.mxu0 %v717
    %2233 = vmatprep.subr.bf16.mxu0 %v722
    %2234 = vmatpush1.bf16.msra.mxu0 %v721
    %2235 = vmatprep.subr.bf16.mxu0 %v726
    %2236 = vmatpush1.bf16.msra.mxu0 %v725
    %2237 = vmatprep.subr.bf16.mxu0 %v730
    %2238 = vmatpush1.bf16.msra.mxu0 %v729
    %2239 = vmatprep.subr.bf16.mxu0 %v734
    %2240 = vmatpush1.bf16.msra.mxu0 %v733
    %2241 = vmatprep.subr.bf16.mxu0 0
    %2242 = vmatpush1.bf16.msra.mxu0 0
    %2243 = vmatprep.subr.bf16.mxu0 0
    %2244 = vmatpush1.bf16.msra.mxu0 0
    %2245 = vmatprep.subr.bf16.mxu0 0
    %2246 = vmatpush1.bf16.msra.mxu0 0
    %2247 = vmatprep.subr.bf16.mxu0 0
    %2248 = vmatpush1.bf16.msra.mxu0 0
    %2249 = vmatprep.subr.bf16.mxu0 0
    %2250 = vmatpush1.bf16.msra.mxu0 0
    %2251 = vmatprep.subr.bf16.mxu0 0
    %2252 = vmatpush1.bf16.msra.mxu0 0
    %2253 = vmatprep.subr.bf16.mxu0 0
    %2254 = vmatpush1.bf16.msra.mxu0 0
    %2255 = vmatprep.subr.bf16.mxu0 0
    %2256 = vmatpush1.bf16.msra.mxu0 0
    %2257 = vmatprep.mubr.bf16.mxu0 0
    %2258 = vmatmul.mubr.bf16.gmra.mrb[0].mxu0 %v2112
    %v2259 = vpop.f32.mrb[0].mxu0
    %v2260 = vadd.f32 0.0, %v2259
    %v2261 = vpop.f32.mrb[0].mxu0
    %v2262 = vadd.f32 0.0, %v2261
    %v2263 = vpop.f32.mrb[0].mxu0
    %v2264 = vpop.f32.mrb[0].mxu0
    %2265 = vdwg.mxu0
    %2266 = vmatprep.subr.bf16.mxu0 %v708
    %2267 = vmatpush1.bf16.msra.mxu0 %v707
    %2268 = vmatprep.subr.bf16.mxu0 %v712
    %2269 = vmatpush1.bf16.msra.mxu0 %v711
    %2270 = vmatprep.subr.bf16.mxu0 %v716
    %2271 = vmatpush1.bf16.msra.mxu0 %v715
    %2272 = vmatprep.subr.bf16.mxu0 %v720
    %2273 = vmatpush1.bf16.msra.mxu0 %v719
    %2274 = vmatprep.subr.bf16.mxu0 %v724
    %2275 = vmatpush1.bf16.msra.mxu0 %v723
    %2276 = vmatprep.subr.bf16.mxu0 %v728
    %2277 = vmatpush1.bf16.msra.mxu0 %v727
    %2278 = vmatprep.subr.bf16.mxu0 %v732
    %2279 = vmatpush1.bf16.msra.mxu0 %v731
    %2280 = vmatprep.subr.bf16.mxu0 %v736
    %2281 = vmatpush1.bf16.msra.mxu0 %v735
    %2282 = vmatprep.subr.bf16.mxu0 0
    %2283 = vmatpush1.bf16.msra.mxu0 0
    %2284 = vmatprep.subr.bf16.mxu0 0
    %2285 = vmatpush1.bf16.msra.mxu0 0
    %2286 = vmatprep.subr.bf16.mxu0 0
    %2287 = vmatpush1.bf16.msra.mxu0 0
    %2288 = vmatprep.subr.bf16.mxu0 0
    %2289 = vmatpush1.bf16.msra.mxu0 0
    %2290 = vmatprep.subr.bf16.mxu0 0
    %2291 = vmatpush1.bf16.msra.mxu0 0
    %2292 = vmatprep.subr.bf16.mxu0 0
    %2293 = vmatpush1.bf16.msra.mxu0 0
    %2294 = vmatprep.subr.bf16.mxu0 0
    %2295 = vmatpush1.bf16.msra.mxu0 0
    %2296 = vmatprep.subr.bf16.mxu0 0
    %2297 = vmatpush1.bf16.msra.mxu0 0
    %2298 = vmatprep.mubr.bf16.mxu0 0
    %2299 = vmatmul.mubr.bf16.gmra.mrb[0].mxu0 %v2112
    %v2300 = vpop.f32.mrb[0].mxu0
    %v2301 = vadd.f32 0.0, %v2300
    %v2302 = vpop.f32.mrb[0].mxu0
    %v2303 = vadd.f32 0.0, %v2302
    %v2304 = vpop.f32.mrb[0].mxu0
    %v2305 = vpop.f32.mrb[0].mxu0
    %2306 = vdwg.mxu0
    %v2307 = vadd.f32 %v2221, %v2260
    %v2308 = vadd.f32 %v2222, %v2262
    %v2309 = vadd.f32 %v2223, %v2301
    %v2310 = vadd.f32 %v2224, %v2303
    %v2311 = vxor.u32 %v2307, 2147483648
    %v2312 = vxor.u32 %v2308, 2147483648
    %v2313 = vxor.u32 %v2309, 2147483648
    %v2314 = vmul.f32 %v2311, 1.442695
    %v2315 = vpow.pop %v2314
    %v2316 = vmul.f32 %v2312, 1.442695
    %v2317 = vpow.pop %v2316
    %v2318 = vmul.f32 %v2313, 1.442695
    %v2319 = vpow.pop %v2318
    %v2320 = vadd.f32 %v2315, 1.0
    %v2321 = vadd.f32 %v2317, 1.0
    %v2322 = vadd.f32 %v2319, 1.0
    %v2323 = vrcp.pop %v2320
    %v2324 = vmul.f32 1.0, %v2323
    %v2325 = vrcp.pop %v2321
    %v2326 = vmul.f32 1.0, %v2325
    %v2327 = vrcp.pop %v2322
    %v2328 = vmul.f32 1.0, %v2327
    %v2329 = vtanh.pop %v2310
    %v2330 = vmul.f32 %v2326, %v2109
    %v2331 = vmul.f32 %v2324, %v2329
    %v2332 = vadd.f32 %v2330, %v2331
    %v2333 = vtanh.pop %v2332
    %v2334 = vmul.f32 %v2328, %v2333
    %v2335 = vpack.c.bf16 %v2334, %v2334
    %v2336 = vpack.c.bf16 %v2219, %v2219
    %2337 = vmatprep.subr.bf16.mxu0 %v1095
    %2338 = vmatpush1.bf16.msra.mxu0 %v1094
    %2339 = vmatprep.subr.bf16.mxu0 %v1099
    %2340 = vmatpush1.bf16.msra.mxu0 %v1098
    %2341 = vmatprep.subr.bf16.mxu0 %v1103
    %2342 = vmatpush1.bf16.msra.mxu0 %v1102
    %2343 = vmatprep.subr.bf16.mxu0 %v1107
    %2344 = vmatpush1.bf16.msra.mxu0 %v1106
    %2345 = vmatprep.subr.bf16.mxu0 %v1111
    %2346 = vmatpush1.bf16.msra.mxu0 %v1110
    %2347 = vmatprep.subr.bf16.mxu0 %v1115
    %2348 = vmatpush1.bf16.msra.mxu0 %v1114
    %2349 = vmatprep.subr.bf16.mxu0 %v1119
    %2350 = vmatpush1.bf16.msra.mxu0 %v1118
    %2351 = vmatprep.subr.bf16.mxu0 %v1123
    %2352 = vmatpush1.bf16.msra.mxu0 %v1122
    %2353 = vmatprep.subr.bf16.mxu0 %v1127
    %2354 = vmatpush1.bf16.msra.mxu0 %v1126
    %2355 = vmatprep.subr.bf16.mxu0 %v1131
    %2356 = vmatpush1.bf16.msra.mxu0 %v1130
    %2357 = vmatprep.subr.bf16.mxu0 %v1135
    %2358 = vmatpush1.bf16.msra.mxu0 %v1134
    %2359 = vmatprep.subr.bf16.mxu0 %v1139
    %2360 = vmatpush1.bf16.msra.mxu0 %v1138
    %2361 = vmatprep.subr.bf16.mxu0 %v1143
    %2362 = vmatpush1.bf16.msra.mxu0 %v1142
    %2363 = vmatprep.subr.bf16.mxu0 %v1147
    %2364 = vmatpush1.bf16.msra.mxu0 %v1146
    %2365 = vmatprep.subr.bf16.mxu0 %v1151
    %2366 = vmatpush1.bf16.msra.mxu0 %v1150
    %2367 = vmatprep.subr.bf16.mxu0 %v1155
    %2368 = vmatpush1.bf16.msra.mxu0 %v1154
    %2369 = vmatprep.mubr.bf16.mxu0 %v2336
    %2370 = vmatmul.mubr.bf16.gmra.mrb[0].mxu0 %v2335
    %v2371 = vpop.f32.mrb[0].mxu0
    %v2372 = vadd.f32 %v885, %v2371
    %v2373 = vpop.f32.mrb[0].mxu0
    %v2374 = vadd.f32 %v889, %v2373
    %v2375 = vpop.f32.mrb[0].mxu0
    %v2376 = vpop.f32.mrb[0].mxu0
    %2377 = vdwg.mxu0
    %2378 = vmatprep.subr.bf16.mxu0 %v1097
    %2379 = vmatpush1.bf16.msra.mxu0 %v1096
    %2380 = vmatprep.subr.bf16.mxu0 %v1101
    %2381 = vmatpush1.bf16.msra.mxu0 %v1100
    %2382 = vmatprep.subr.bf16.mxu0 %v1105
    %2383 = vmatpush1.bf16.msra.mxu0 %v1104
    %2384 = vmatprep.subr.bf16.mxu0 %v1109
    %2385 = vmatpush1.bf16.msra.mxu0 %v1108
    %2386 = vmatprep.subr.bf16.mxu0 %v1113
    %2387 = vmatpush1.bf16.msra.mxu0 %v1112
    %2388 = vmatprep.subr.bf16.mxu0 %v1117
    %2389 = vmatpush1.bf16.msra.mxu0 %v1116
    %2390 = vmatprep.subr.bf16.mxu0 %v1121
    %2391 = vmatpush1.bf16.msra.mxu0 %v1120
    %2392 = vmatprep.subr.bf16.mxu0 %v1125
    %2393 = vmatpush1.bf16.msra.mxu0 %v1124
    %2394 = vmatprep.subr.bf16.mxu0 %v1129
    %2395 = vmatpush1.bf16.msra.mxu0 %v1128
    %2396 = vmatprep.subr.bf16.mxu0 %v1133
    %2397 = vmatpush1.bf16.msra.mxu0 %v1132
    %2398 = vmatprep.subr.bf16.mxu0 %v1137
    %2399 = vmatpush1.bf16.msra.mxu0 %v1136
    %2400 = vmatprep.subr.bf16.mxu0 %v1141
    %2401 = vmatpush1.bf16.msra.mxu0 %v1140
    %2402 = vmatprep.subr.bf16.mxu0 %v1145
    %2403 = vmatpush1.bf16.msra.mxu0 %v1144
    %2404 = vmatprep.subr.bf16.mxu0 %v1149
    %2405 = vmatpush1.bf16.msra.mxu0 %v1148
    %2406 = vmatprep.subr.bf16.mxu0 %v1153
    %2407 = vmatpush1.bf16.msra.mxu0 %v1152
    %2408 = vmatprep.subr.bf16.mxu0 %v1157
    %2409 = vmatpush1.bf16.msra.mxu0 %v1156
    %2410 = vmatprep.mubr.bf16.mxu0 %v2336
    %2411 = vmatmul.mubr.bf16.gmra.mrb[0].mxu0 %v2335
    %v2412 = vpop.f32.mrb[0].mxu0
    %v2413 = vadd.f32 %v893, %v2412
    %v2414 = vpop.f32.mrb[0].mxu0
    %v2415 = vadd.f32 %v897, %v2414
    %v2416 = vpop.f32.mrb[0].mxu0
    %v2417 = vpop.f32.mrb[0].mxu0
    %2418 = vdwg.mxu0
    %v2419 = vxor.u32 %v2372, 2147483648
    %v2420 = vxor.u32 %v2374, 2147483648
    %v2421 = vxor.u32 %v2413, 2147483648
    %v2422 = vmul.f32 %v2419, 1.442695
    %v2423 = vpow.pop %v2422
    %v2424 = vmul.f32 %v2420, 1.442695
    %v2425 = vpow.pop %v2424
    %v2426 = vmul.f32 %v2421, 1.442695
    %v2427 = vpow.pop %v2426
    %v2428 = vadd.f32 %v2423, 1.0
    %v2429 = vadd.f32 %v2425, 1.0
    %v2430 = vadd.f32 %v2427, 1.0
    %v2431 = vrcp.pop %v2428
    %v2432 = vmul.f32 1.0, %v2431
    %v2433 = vrcp.pop %v2429
    %v2434 = vmul.f32 1.0, %v2433
    %v2435 = vrcp.pop %v2430
    %v2436 = vmul.f32 1.0, %v2435
    %v2437 = vtanh.pop %v2415
    %v2438 = vmul.f32 %v2434, %v2217
    %v2439 = vmul.f32 %v2432, %v2437
    %v2440 = vadd.f32 %v2438, %v2439
    %v2441 = vtanh.pop %v2440
    %v2442 = vmul.f32 %v2436, %v2441
    %s2443 = scalar_lea.vmem [#allocation2], 192
    %v2444 = vld [vmem:[%s2443] sm:$0xff]
    %v2445 = vld [vmem:[%s2443 + $0x8] sm:$0xff]
    %v2446 = vld [vmem:[%s2443 + $0x10] sm:$0xff]
    %v2447 = vld [vmem:[%s2443 + $0x18] sm:$0xff]
    %2448 = vmatprep.subr.bf16.mxu0 %v706
    %2449 = vmatpush1.bf16.msra.mxu0 %v705
    %2450 = vmatprep.subr.bf16.mxu0 %v710
    %2451 = vmatpush1.bf16.msra.mxu0 %v709
    %2452 = vmatprep.subr.bf16.mxu0 %v714
    %2453 = vmatpush1.bf16.msra.mxu0 %v713
    %2454 = vmatprep.subr.bf16.mxu0 %v718
    %2455 = vmatpush1.bf16.msra.mxu0 %v717
    %2456 = vmatprep.subr.bf16.mxu0 %v722
    %2457 = vmatpush1.bf16.msra.mxu0 %v721
    %2458 = vmatprep.subr.bf16.mxu0 %v726
    %2459 = vmatpush1.bf16.msra.mxu0 %v725
    %2460 = vmatprep.subr.bf16.mxu0 %v730
    %2461 = vmatpush1.bf16.msra.mxu0 %v729
    %2462 = vmatprep.subr.bf16.mxu0 %v734
    %2463 = vmatpush1.bf16.msra.mxu0 %v733
    %2464 = vmatprep.subr.bf16.mxu0 0
    %2465 = vmatpush1.bf16.msra.mxu0 0
    %2466 = vmatprep.subr.bf16.mxu0 0
    %2467 = vmatpush1.bf16.msra.mxu0 0
    %2468 = vmatprep.subr.bf16.mxu0 0
    %2469 = vmatpush1.bf16.msra.mxu0 0
    %2470 = vmatprep.subr.bf16.mxu0 0
    %2471 = vmatpush1.bf16.msra.mxu0 0
    %2472 = vmatprep.subr.bf16.mxu0 0
    %2473 = vmatpush1.bf16.msra.mxu0 0
    %2474 = vmatprep.subr.bf16.mxu0 0
    %2475 = vmatpush1.bf16.msra.mxu0 0
    %2476 = vmatprep.subr.bf16.mxu0 0
    %2477 = vmatpush1.bf16.msra.mxu0 0
    %2478 = vmatprep.subr.bf16.mxu0 0
    %2479 = vmatpush1.bf16.msra.mxu0 0
    %2480 = vmatprep.mubr.bf16.mxu0 0
    %2481 = vmatmul.mubr.bf16.gmra.mrb[0].mxu0 %v2335
    %v2482 = vpop.f32.mrb[0].mxu0
    %v2483 = vadd.f32 0.0, %v2482
    %v2484 = vpop.f32.mrb[0].mxu0
    %v2485 = vadd.f32 0.0, %v2484
    %v2486 = vpop.f32.mrb[0].mxu0
    %v2487 = vpop.f32.mrb[0].mxu0
    %2488 = vdwg.mxu0
    %2489 = vmatprep.subr.bf16.mxu0 %v708
    %2490 = vmatpush1.bf16.msra.mxu0 %v707
    %2491 = vmatprep.subr.bf16.mxu0 %v712
    %2492 = vmatpush1.bf16.msra.mxu0 %v711
    %2493 = vmatprep.subr.bf16.mxu0 %v716
    %2494 = vmatpush1.bf16.msra.mxu0 %v715
    %2495 = vmatprep.subr.bf16.mxu0 %v720
    %2496 = vmatpush1.bf16.msra.mxu0 %v719
    %2497 = vmatprep.subr.bf16.mxu0 %v724
    %2498 = vmatpush1.bf16.msra.mxu0 %v723
    %2499 = vmatprep.subr.bf16.mxu0 %v728
    %2500 = vmatpush1.bf16.msra.mxu0 %v727
    %2501 = vmatprep.subr.bf16.mxu0 %v732
    %2502 = vmatpush1.bf16.msra.mxu0 %v731
    %2503 = vmatprep.subr.bf16.mxu0 %v736
    %2504 = vmatpush1.bf16.msra.mxu0 %v735
    %2505 = vmatprep.subr.bf16.mxu0 0
    %2506 = vmatpush1.bf16.msra.mxu0 0
    %2507 = vmatprep.subr.bf16.mxu0 0
    %2508 = vmatpush1.bf16.msra.mxu0 0
    %2509 = vmatprep.subr.bf16.mxu0 0
    %2510 = vmatpush1.bf16.msra.mxu0 0
    %2511 = vmatprep.subr.bf16.mxu0 0
    %2512 = vmatpush1.bf16.msra.mxu0 0
    %2513 = vmatprep.subr.bf16.mxu0 0
    %2514 = vmatpush1.bf16.msra.mxu0 0
    %2515 = vmatprep.subr.bf16.mxu0 0
    %2516 = vmatpush1.bf16.msra.mxu0 0
    %2517 = vmatprep.subr.bf16.mxu0 0
    %2518 = vmatpush1.bf16.msra.mxu0 0
    %2519 = vmatprep.subr.bf16.mxu0 0
    %2520 = vmatpush1.bf16.msra.mxu0 0
    %2521 = vmatprep.mubr.bf16.mxu0 0
    %2522 = vmatmul.mubr.bf16.gmra.mrb[0].mxu0 %v2335
    %v2523 = vpop.f32.mrb[0].mxu0
    %v2524 = vadd.f32 0.0, %v2523
    %v2525 = vpop.f32.mrb[0].mxu0
    %v2526 = vadd.f32 0.0, %v2525
    %v2527 = vpop.f32.mrb[0].mxu0
    %v2528 = vpop.f32.mrb[0].mxu0
    %2529 = vdwg.mxu0
    %v2530 = vadd.f32 %v2444, %v2483
    %v2531 = vadd.f32 %v2445, %v2485
    %v2532 = vadd.f32 %v2446, %v2524
    %v2533 = vadd.f32 %v2447, %v2526
    %v2534 = vxor.u32 %v2530, 2147483648
    %v2535 = vxor.u32 %v2531, 2147483648
    %v2536 = vxor.u32 %v2532, 2147483648
    %v2537 = vmul.f32 %v2534, 1.442695
    %v2538 = vpow.pop %v2537
    %v2539 = vmul.f32 %v2535, 1.442695
    %v2540 = vpow.pop %v2539
    %v2541 = vmul.f32 %v2536, 1.442695
    %v2542 = vpow.pop %v2541
    %v2543 = vadd.f32 %v2538, 1.0
    %v2544 = vadd.f32 %v2540, 1.0
    %v2545 = vadd.f32 %v2542, 1.0
    %v2546 = vrcp.pop %v2543
    %v2547 = vmul.f32 1.0, %v2546
    %v2548 = vrcp.pop %v2544
    %v2549 = vmul.f32 1.0, %v2548
    %v2550 = vrcp.pop %v2545
    %v2551 = vmul.f32 1.0, %v2550
    %v2552 = vtanh.pop %v2533
    %v2553 = vmul.f32 %v2549, %v2332
    %v2554 = vmul.f32 %v2547, %v2552
    %v2555 = vadd.f32 %v2553, %v2554
    %v2556 = vtanh.pop %v2555
    %v2557 = vmul.f32 %v2551, %v2556
    %v2558 = vpack.c.bf16 %v2557, %v2557
    %v2559 = vpack.c.bf16 %v2442, %v2442
    %2560 = vmatprep.subr.bf16.mxu0 %v1095
    %2561 = vmatpush1.bf16.msra.mxu0 %v1094
    %2562 = vmatprep.subr.bf16.mxu0 %v1099
    %2563 = vmatpush1.bf16.msra.mxu0 %v1098
    %2564 = vmatprep.subr.bf16.mxu0 %v1103
    %2565 = vmatpush1.bf16.msra.mxu0 %v1102
    %2566 = vmatprep.subr.bf16.mxu0 %v1107
    %2567 = vmatpush1.bf16.msra.mxu0 %v1106
    %2568 = vmatprep.subr.bf16.mxu0 %v1111
    %2569 = vmatpush1.bf16.msra.mxu0 %v1110
    %2570 = vmatprep.subr.bf16.mxu0 %v1115
    %2571 = vmatpush1.bf16.msra.mxu0 %v1114
    %2572 = vmatprep.subr.bf16.mxu0 %v1119
    %2573 = vmatpush1.bf16.msra.mxu0 %v1118
    %2574 = vmatprep.subr.bf16.mxu0 %v1123
    %2575 = vmatpush1.bf16.msra.mxu0 %v1122
    %2576 = vmatprep.subr.bf16.mxu0 %v1127
    %2577 = vmatpush1.bf16.msra.mxu0 %v1126
    %2578 = vmatprep.subr.bf16.mxu0 %v1131
    %2579 = vmatpush1.bf16.msra.mxu0 %v1130
    %2580 = vmatprep.subr.bf16.mxu0 %v1135
    %2581 = vmatpush1.bf16.msra.mxu0 %v1134
    %2582 = vmatprep.subr.bf16.mxu0 %v1139
    %2583 = vmatpush1.bf16.msra.mxu0 %v1138
    %2584 = vmatprep.subr.bf16.mxu0 %v1143
    %2585 = vmatpush1.bf16.msra.mxu0 %v1142
    %2586 = vmatprep.subr.bf16.mxu0 %v1147
    %2587 = vmatpush1.bf16.msra.mxu0 %v1146
    %2588 = vmatprep.subr.bf16.mxu0 %v1151
    %2589 = vmatpush1.bf16.msra.mxu0 %v1150
    %2590 = vmatprep.subr.bf16.mxu0 %v1155
    %2591 = vmatpush1.bf16.msra.mxu0 %v1154
    %2592 = vmatprep.mubr.bf16.mxu0 %v2559
    %2593 = vmatmul.mubr.bf16.gmra.mrb[0].mxu0 %v2558
    %v2594 = vpop.f32.mrb[0].mxu0
    %v2595 = vadd.f32 %v885, %v2594
    %v2596 = vpop.f32.mrb[0].mxu0
    %v2597 = vadd.f32 %v889, %v2596
    %v2598 = vpop.f32.mrb[0].mxu0
    %v2599 = vpop.f32.mrb[0].mxu0
    %2600 = vdwg.mxu0
    %2601 = vmatprep.subr.bf16.mxu0 %v1097
    %2602 = vmatpush1.bf16.msra.mxu0 %v1096
    %2603 = vmatprep.subr.bf16.mxu0 %v1101
    %2604 = vmatpush1.bf16.msra.mxu0 %v1100
    %2605 = vmatprep.subr.bf16.mxu0 %v1105
    %2606 = vmatpush1.bf16.msra.mxu0 %v1104
    %2607 = vmatprep.subr.bf16.mxu0 %v1109
    %2608 = vmatpush1.bf16.msra.mxu0 %v1108
    %2609 = vmatprep.subr.bf16.mxu0 %v1113
    %2610 = vmatpush1.bf16.msra.mxu0 %v1112
    %2611 = vmatprep.subr.bf16.mxu0 %v1117
    %2612 = vmatpush1.bf16.msra.mxu0 %v1116
    %2613 = vmatprep.subr.bf16.mxu0 %v1121
    %2614 = vmatpush1.bf16.msra.mxu0 %v1120
    %2615 = vmatprep.subr.bf16.mxu0 %v1125
    %2616 = vmatpush1.bf16.msra.mxu0 %v1124
    %2617 = vmatprep.subr.bf16.mxu0 %v1129
    %2618 = vmatpush1.bf16.msra.mxu0 %v1128
    %2619 = vmatprep.subr.bf16.mxu0 %v1133
    %2620 = vmatpush1.bf16.msra.mxu0 %v1132
    %2621 = vmatprep.subr.bf16.mxu0 %v1137
    %2622 = vmatpush1.bf16.msra.mxu0 %v1136
    %2623 = vmatprep.subr.bf16.mxu0 %v1141
    %2624 = vmatpush1.bf16.msra.mxu0 %v1140
    %2625 = vmatprep.subr.bf16.mxu0 %v1145
    %2626 = vmatpush1.bf16.msra.mxu0 %v1144
    %2627 = vmatprep.subr.bf16.mxu0 %v1149
    %2628 = vmatpush1.bf16.msra.mxu0 %v1148
    %2629 = vmatprep.subr.bf16.mxu0 %v1153
    %2630 = vmatpush1.bf16.msra.mxu0 %v1152
    %2631 = vmatprep.subr.bf16.mxu0 %v1157
    %2632 = vmatpush1.bf16.msra.mxu0 %v1156
    %2633 = vmatprep.mubr.bf16.mxu0 %v2559
    %2634 = vmatmul.mubr.bf16.gmra.mrb[0].mxu0 %v2558
    %v2635 = vpop.f32.mrb[0].mxu0
    %v2636 = vadd.f32 %v893, %v2635
    %v2637 = vpop.f32.mrb[0].mxu0
    %v2638 = vadd.f32 %v897, %v2637
    %v2639 = vpop.f32.mrb[0].mxu0
    %v2640 = vpop.f32.mrb[0].mxu0
    %2641 = vdwg.mxu0
    %v2642 = vxor.u32 %v2595, 2147483648
    %v2643 = vxor.u32 %v2597, 2147483648
    %v2644 = vxor.u32 %v2636, 2147483648
    %v2645 = vmul.f32 %v2642, 1.442695
    %v2646 = vpow.pop %v2645
    %v2647 = vmul.f32 %v2643, 1.442695
    %v2648 = vpow.pop %v2647
    %v2649 = vmul.f32 %v2644, 1.442695
    %v2650 = vpow.pop %v2649
    %v2651 = vadd.f32 %v2646, 1.0
    %v2652 = vadd.f32 %v2648, 1.0
    %v2653 = vadd.f32 %v2650, 1.0
    %v2654 = vrcp.pop %v2651
    %v2655 = vmul.f32 1.0, %v2654
    %v2656 = vrcp.pop %v2652
    %v2657 = vmul.f32 1.0, %v2656
    %v2658 = vrcp.pop %v2653
    %v2659 = vmul.f32 1.0, %v2658
    %v2660 = vtanh.pop %v2638
    %v2661 = vmul.f32 %v2657, %v2440
    %v2662 = vmul.f32 %v2655, %v2660
    %v2663 = vadd.f32 %v2661, %v2662
    %v2664 = vtanh.pop %v2663
    %v2665 = vmul.f32 %v2659, %v2664
    %s2666 = scalar_lea.vmem [#allocation2], 224
    %v2667 = vld [vmem:[%s2666] sm:$0xff]
    %v2668 = vld [vmem:[%s2666 + $0x8] sm:$0xff]
    %v2669 = vld [vmem:[%s2666 + $0x10] sm:$0xff]
    %v2670 = vld [vmem:[%s2666 + $0x18] sm:$0xff]
    %2671 = vmatprep.subr.bf16.mxu0 %v706
    %2672 = vmatpush1.bf16.msra.mxu0 %v705
    %2673 = vmatprep.subr.bf16.mxu0 %v710
    %2674 = vmatpush1.bf16.msra.mxu0 %v709
    %2675 = vmatprep.subr.bf16.mxu0 %v714
    %2676 = vmatpush1.bf16.msra.mxu0 %v713
    %2677 = vmatprep.subr.bf16.mxu0 %v718
    %2678 = vmatpush1.bf16.msra.mxu0 %v717
    %2679 = vmatprep.subr.bf16.mxu0 %v722
    %2680 = vmatpush1.bf16.msra.mxu0 %v721
    %2681 = vmatprep.subr.bf16.mxu0 %v726
    %2682 = vmatpush1.bf16.msra.mxu0 %v725
    %2683 = vmatprep.subr.bf16.mxu0 %v730
    %2684 = vmatpush1.bf16.msra.mxu0 %v729
    %2685 = vmatprep.subr.bf16.mxu0 %v734
    %2686 = vmatpush1.bf16.msra.mxu0 %v733
    %2687 = vmatprep.subr.bf16.mxu0 0
    %2688 = vmatpush1.bf16.msra.mxu0 0
    %2689 = vmatprep.subr.bf16.mxu0 0
    %2690 = vmatpush1.bf16.msra.mxu0 0
    %2691 = vmatprep.subr.bf16.mxu0 0
    %2692 = vmatpush1.bf16.msra.mxu0 0
    %2693 = vmatprep.subr.bf16.mxu0 0
    %2694 = vmatpush1.bf16.msra.mxu0 0
    %2695 = vmatprep.subr.bf16.mxu0 0
    %2696 = vmatpush1.bf16.msra.mxu0 0
    %2697 = vmatprep.subr.bf16.mxu0 0
    %2698 = vmatpush1.bf16.msra.mxu0 0
    %2699 = vmatprep.subr.bf16.mxu0 0
    %2700 = vmatpush1.bf16.msra.mxu0 0
    %2701 = vmatprep.subr.bf16.mxu0 0
    %2702 = vmatpush1.bf16.msra.mxu0 0
    %2703 = vmatprep.mubr.bf16.mxu0 0
    %2704 = vmatmul.mubr.bf16.gmra.mrb[0].mxu0 %v2558
    %v2705 = vpop.f32.mrb[0].mxu0
    %v2706 = vadd.f32 0.0, %v2705
    %v2707 = vpop.f32.mrb[0].mxu0
    %v2708 = vadd.f32 0.0, %v2707
    %v2709 = vpop.f32.mrb[0].mxu0
    %v2710 = vpop.f32.mrb[0].mxu0
    %2711 = vdwg.mxu0
    %2712 = vmatprep.subr.bf16.mxu0 %v708
    %2713 = vmatpush1.bf16.msra.mxu0 %v707
    %2714 = vmatprep.subr.bf16.mxu0 %v712
    %2715 = vmatpush1.bf16.msra.mxu0 %v711
    %2716 = vmatprep.subr.bf16.mxu0 %v716
    %2717 = vmatpush1.bf16.msra.mxu0 %v715
    %2718 = vmatprep.subr.bf16.mxu0 %v720
    %2719 = vmatpush1.bf16.msra.mxu0 %v719
    %2720 = vmatprep.subr.bf16.mxu0 %v724
    %2721 = vmatpush1.bf16.msra.mxu0 %v723
    %2722 = vmatprep.subr.bf16.mxu0 %v728
    %2723 = vmatpush1.bf16.msra.mxu0 %v727
    %2724 = vmatprep.subr.bf16.mxu0 %v732
    %2725 = vmatpush1.bf16.msra.mxu0 %v731
    %2726 = vmatprep.subr.bf16.mxu0 %v736
    %2727 = vmatpush1.bf16.msra.mxu0 %v735
    %2728 = vmatprep.subr.bf16.mxu0 0
    %2729 = vmatpush1.bf16.msra.mxu0 0
    %2730 = vmatprep.subr.bf16.mxu0 0
    %2731 = vmatpush1.bf16.msra.mxu0 0
    %2732 = vmatprep.subr.bf16.mxu0 0
    %2733 = vmatpush1.bf16.msra.mxu0 0
    %2734 = vmatprep.subr.bf16.mxu0 0
    %2735 = vmatpush1.bf16.msra.mxu0 0
    %2736 = vmatprep.subr.bf16.mxu0 0
    %2737 = vmatpush1.bf16.msra.mxu0 0
    %2738 = vmatprep.subr.bf16.mxu0 0
    %2739 = vmatpush1.bf16.msra.mxu0 0
    %2740 = vmatprep.subr.bf16.mxu0 0
    %2741 = vmatpush1.bf16.msra.mxu0 0
    %2742 = vmatprep.subr.bf16.mxu0 0
    %2743 = vmatpush1.bf16.msra.mxu0 0
    %2744 = vmatprep.mubr.bf16.mxu0 0
    %2745 = vmatmul.mubr.bf16.gmra.mrb[0].mxu0 %v2558
    %v2746 = vpop.f32.mrb[0].mxu0
    %v2747 = vadd.f32 0.0, %v2746
    %v2748 = vpop.f32.mrb[0].mxu0
    %v2749 = vadd.f32 0.0, %v2748
    %v2750 = vpop.f32.mrb[0].mxu0
    %v2751 = vpop.f32.mrb[0].mxu0
    %2752 = vdwg.mxu0
    %v2753 = vadd.f32 %v2667, %v2706
    %v2754 = vadd.f32 %v2668, %v2708
    %v2755 = vadd.f32 %v2669, %v2747
    %v2756 = vadd.f32 %v2670, %v2749
    %v2757 = vxor.u32 %v2753, 2147483648
    %v2758 = vxor.u32 %v2754, 2147483648
    %v2759 = vxor.u32 %v2755, 2147483648
    %v2760 = vmul.f32 %v2757, 1.442695
    %v2761 = vpow.pop %v2760
    %v2762 = vmul.f32 %v2758, 1.442695
    %v2763 = vpow.pop %v2762
    %v2764 = vmul.f32 %v2759, 1.442695
    %v2765 = vpow.pop %v2764
    %v2766 = vadd.f32 %v2761, 1.0
    %v2767 = vadd.f32 %v2763, 1.0
    %v2768 = vadd.f32 %v2765, 1.0
    %v2769 = vrcp.pop %v2766
    %v2770 = vmul.f32 1.0, %v2769
    %v2771 = vrcp.pop %v2767
    %v2772 = vmul.f32 1.0, %v2771
    %v2773 = vrcp.pop %v2768
    %v2774 = vmul.f32 1.0, %v2773
    %v2775 = vtanh.pop %v2756
    %v2776 = vmul.f32 %v2772, %v2555
    %v2777 = vmul.f32 %v2770, %v2775
    %v2778 = vadd.f32 %v2776, %v2777
    %v2779 = vtanh.pop %v2778
    %v2780 = vmul.f32 %v2774, %v2779
    %v2781 = vpack.c.bf16 %v2780, %v2780
    %v2782 = vpack.c.bf16 %v2665, %v2665
    %2783 = vmatprep.subr.bf16.mxu0 %v1095
    %2784 = vmatpush1.bf16.msra.mxu0 %v1094
    %2785 = vmatprep.subr.bf16.mxu0 %v1099
    %2786 = vmatpush1.bf16.msra.mxu0 %v1098
    %2787 = vmatprep.subr.bf16.mxu0 %v1103
    %2788 = vmatpush1.bf16.msra.mxu0 %v1102
    %2789 = vmatprep.subr.bf16.mxu0 %v1107
    %2790 = vmatpush1.bf16.msra.mxu0 %v1106
    %2791 = vmatprep.subr.bf16.mxu0 %v1111
    %2792 = vmatpush1.bf16.msra.mxu0 %v1110
    %2793 = vmatprep.subr.bf16.mxu0 %v1115
    %2794 = vmatpush1.bf16.msra.mxu0 %v1114
    %2795 = vmatprep.subr.bf16.mxu0 %v1119
    %2796 = vmatpush1.bf16.msra.mxu0 %v1118
    %2797 = vmatprep.subr.bf16.mxu0 %v1123
    %2798 = vmatpush1.bf16.msra.mxu0 %v1122
    %2799 = vmatprep.subr.bf16.mxu0 %v1127
    %2800 = vmatpush1.bf16.msra.mxu0 %v1126
    %2801 = vmatprep.subr.bf16.mxu0 %v1131
    %2802 = vmatpush1.bf16.msra.mxu0 %v1130
    %2803 = vmatprep.subr.bf16.mxu0 %v1135
    %2804 = vmatpush1.bf16.msra.mxu0 %v1134
    %2805 = vmatprep.subr.bf16.mxu0 %v1139
    %2806 = vmatpush1.bf16.msra.mxu0 %v1138
    %2807 = vmatprep.subr.bf16.mxu0 %v1143
    %2808 = vmatpush1.bf16.msra.mxu0 %v1142
    %2809 = vmatprep.subr.bf16.mxu0 %v1147
    %2810 = vmatpush1.bf16.msra.mxu0 %v1146
    %2811 = vmatprep.subr.bf16.mxu0 %v1151
    %2812 = vmatpush1.bf16.msra.mxu0 %v1150
    %2813 = vmatprep.subr.bf16.mxu0 %v1155
    %2814 = vmatpush1.bf16.msra.mxu0 %v1154
    %2815 = vmatprep.mubr.bf16.mxu0 %v2782
    %2816 = vmatmul.mubr.bf16.gmra.mrb[0].mxu0 %v2781
    %v2817 = vpop.f32.mrb[0].mxu0
    %v2818 = vadd.f32 %v885, %v2817
    %v2819 = vpop.f32.mrb[0].mxu0
    %v2820 = vadd.f32 %v889, %v2819
    %v2821 = vpop.f32.mrb[0].mxu0
    %v2822 = vpop.f32.mrb[0].mxu0
    %2823 = vdwg.mxu0
    %2824 = vmatprep.subr.bf16.mxu0 %v1097
    %2825 = vmatpush1.bf16.msra.mxu0 %v1096
    %2826 = vmatprep.subr.bf16.mxu0 %v1101
    %2827 = vmatpush1.bf16.msra.mxu0 %v1100
    %2828 = vmatprep.subr.bf16.mxu0 %v1105
    %2829 = vmatpush1.bf16.msra.mxu0 %v1104
    %2830 = vmatprep.subr.bf16.mxu0 %v1109
    %2831 = vmatpush1.bf16.msra.mxu0 %v1108
    %2832 = vmatprep.subr.bf16.mxu0 %v1113
    %2833 = vmatpush1.bf16.msra.mxu0 %v1112
    %2834 = vmatprep.subr.bf16.mxu0 %v1117
    %2835 = vmatpush1.bf16.msra.mxu0 %v1116
    %2836 = vmatprep.subr.bf16.mxu0 %v1121
    %2837 = vmatpush1.bf16.msra.mxu0 %v1120
    %2838 = vmatprep.subr.bf16.mxu0 %v1125
    %2839 = vmatpush1.bf16.msra.mxu0 %v1124
    %2840 = vmatprep.subr.bf16.mxu0 %v1129
    %2841 = vmatpush1.bf16.msra.mxu0 %v1128
    %2842 = vmatprep.subr.bf16.mxu0 %v1133
    %2843 = vmatpush1.bf16.msra.mxu0 %v1132
    %2844 = vmatprep.subr.bf16.mxu0 %v1137
    %2845 = vmatpush1.bf16.msra.mxu0 %v1136
    %2846 = vmatprep.subr.bf16.mxu0 %v1141
    %2847 = vmatpush1.bf16.msra.mxu0 %v1140
    %2848 = vmatprep.subr.bf16.mxu0 %v1145
    %2849 = vmatpush1.bf16.msra.mxu0 %v1144
    %2850 = vmatprep.subr.bf16.mxu0 %v1149
    %2851 = vmatpush1.bf16.msra.mxu0 %v1148
    %2852 = vmatprep.subr.bf16.mxu0 %v1153
    %2853 = vmatpush1.bf16.msra.mxu0 %v1152
    %2854 = vmatprep.subr.bf16.mxu0 %v1157
    %2855 = vmatpush1.bf16.msra.mxu0 %v1156
    %2856 = vmatprep.mubr.bf16.mxu0 %v2782
    %2857 = vmatmul.mubr.bf16.gmra.mrb[0].mxu0 %v2781
    %v2858 = vpop.f32.mrb[0].mxu0
    %v2859 = vadd.f32 %v893, %v2858
    %v2860 = vpop.f32.mrb[0].mxu0
    %v2861 = vadd.f32 %v897, %v2860
    %v2862 = vpop.f32.mrb[0].mxu0
    %v2863 = vpop.f32.mrb[0].mxu0
    %2864 = vdwg.mxu0
    %v2865 = vxor.u32 %v2818, 2147483648
    %v2866 = vxor.u32 %v2820, 2147483648
    %v2867 = vxor.u32 %v2859, 2147483648
    %v2868 = vmul.f32 %v2865, 1.442695
    %v2869 = vpow.pop %v2868
    %v2870 = vmul.f32 %v2866, 1.442695
    %v2871 = vpow.pop %v2870
    %v2872 = vmul.f32 %v2867, 1.442695
    %v2873 = vpow.pop %v2872
    %v2874 = vadd.f32 %v2869, 1.0
    %v2875 = vadd.f32 %v2871, 1.0
    %v2876 = vadd.f32 %v2873, 1.0
    %v2877 = vrcp.pop %v2874
    %v2878 = vmul.f32 1.0, %v2877
    %v2879 = vrcp.pop %v2875
    %v2880 = vmul.f32 1.0, %v2879
    %v2881 = vrcp.pop %v2876
    %v2882 = vmul.f32 1.0, %v2881
    %v2883 = vtanh.pop %v2861
    %v2884 = vmul.f32 %v2880, %v2663
    %v2885 = vmul.f32 %v2878, %v2883
    %v2886 = vadd.f32 %v2884, %v2885
    %v2887 = vtanh.pop %v2886
    %v2888 = vmul.f32 %v2882, %v2887
    %2889 = vst [vmem:[#allocation3] sm:$0xff] %v2780
    %2890 = vst [vmem:[#allocation4] sm:$0xff] %v2778
    %2891 = vst [vmem:[#allocation5] sm:$0xff] %v2888
    %2892 = vst [vmem:[#allocation6] sm:$0xff] %v2886
    // Predicated region
    $region50: #{lstm_student_forward.1} parent=1 // pred_check
      %p2893 = pneg %p71
    $region51: #{lstm_student_forward.1} parent=1 // pred_check_branch
      %2895 = sbr.rel (%p2893) target = $region53
    $region52: #{lstm_student_forward.1} parent=1 // pred_region
      %v2896 = vpack.c.bf16 %v2888, %v2888
      %v2897 = vld [vmem:[%s6] sm:$0xf]
      %v2898 = vld [vmem:[%s6 + $0x4] sm:$0xf]
      %v2899 = vld [vmem:[%s6 + $0x8] sm:$0xf]
      %v2900 = vld [vmem:[%s6 + $0xc] sm:$0xf]
      %v2901 = vld [vmem:[%s6 + $0x10] sm:$0xf]
      %v2902 = vld [vmem:[%s6 + $0x14] sm:$0xf]
      %v2903 = vld [vmem:[%s6 + $0x18] sm:$0xf]
      %v2904 = vld [vmem:[%s6 + $0x1c] sm:$0xf]
      %v2905 = vld [vmem:[%s6 + $0x20] sm:$0xf]
      %v2906 = vld [vmem:[%s6 + $0x24] sm:$0xf]
      %v2907 = vld [vmem:[%s6 + $0x28] sm:$0xf]
      %v2908 = vld [vmem:[%s6 + $0x2c] sm:$0xf]
      %v2909 = vld [vmem:[%s6 + $0x30] sm:$0xf]
      %v2910 = vld [vmem:[%s6 + $0x34] sm:$0xf]
      %v2911 = vld [vmem:[%s6 + $0x38] sm:$0xf]
      %v2912 = vld [vmem:[%s6 + $0x3c] sm:$0xf]
      %v2913 = vld [vmem:[%s7] sm:$0x1]
      %v2915 = vlaneseq
      %v2916 = vshrl.u32 %v2915, 7
      %v2917 = vsub.s32 0, %v2916
      %v2918 = vrot.slane %v2913, %v2917
      %v2936 = vunpack.c.l.b16 %v2897
      %v2937 = vunpack.c.l.b16 %v2898
      %v2938 = vunpack.c.l.b16 %v2899
      %v2939 = vunpack.c.l.b16 %v2900
      %v2940 = vunpack.c.l.b16 %v2901
      %v2941 = vunpack.c.l.b16 %v2902
      %v2942 = vunpack.c.l.b16 %v2903
      %v2943 = vunpack.c.l.b16 %v2904
      %v2944 = vunpack.c.l.b16 %v2905
      %v2945 = vunpack.c.l.b16 %v2906
      %v2946 = vunpack.c.l.b16 %v2907
      %v2947 = vunpack.c.l.b16 %v2908
      %v2948 = vunpack.c.l.b16 %v2909
      %v2949 = vunpack.c.l.b16 %v2910
      %v2950 = vunpack.c.l.b16 %v2911
      %v2951 = vunpack.c.l.b16 %v2912
      %v2952 = vpack.c.b16 %v2937, %v2936
      %v2953 = vpack.c.b16 %v2939, %v2938
      %v2954 = vpack.c.b16 %v2941, %v2940
      %v2955 = vpack.c.b16 %v2943, %v2942
      %v2956 = vpack.c.b16 %v2945, %v2944
      %v2957 = vpack.c.b16 %v2947, %v2946
      %v2958 = vpack.c.b16 %v2949, %v2948
      %v2959 = vpack.c.b16 %v2951, %v2950
      %2968 = vmatprep.subr.bf16.mxu0 0
      %2969 = vmatpush1.bf16.msra.mxu0 %v2952
      %2970 = vmatprep.subr.bf16.mxu0 0
      %2971 = vmatpush1.bf16.msra.mxu0 %v2953
      %2972 = vmatprep.subr.bf16.mxu0 0
      %2973 = vmatpush1.bf16.msra.mxu0 %v2954
      %2974 = vmatprep.subr.bf16.mxu0 0
      %2975 = vmatpush1.bf16.msra.mxu0 %v2955
      %2976 = vmatprep.subr.bf16.mxu0 0
      %2977 = vmatpush1.bf16.msra.mxu0 %v2956
      %2978 = vmatprep.subr.bf16.mxu0 0
      %2979 = vmatpush1.bf16.msra.mxu0 %v2957
      %2980 = vmatprep.subr.bf16.mxu0 0
      %2981 = vmatpush1.bf16.msra.mxu0 %v2958
      %2982 = vmatprep.subr.bf16.mxu0 0
      %2983 = vmatpush1.bf16.msra.mxu0 %v2959
      %2984 = vmatprep.subr.bf16.mxu0 0
      %2985 = vmatpush1.bf16.msra.mxu0 0
      %2986 = vmatprep.subr.bf16.mxu0 0
      %2987 = vmatpush1.bf16.msra.mxu0 0
      %2988 = vmatprep.subr.bf16.mxu0 0
      %2989 = vmatpush1.bf16.msra.mxu0 0
      %2990 = vmatprep.subr.bf16.mxu0 0
      %2991 = vmatpush1.bf16.msra.mxu0 0
      %2992 = vmatprep.subr.bf16.mxu0 0
      %2993 = vmatpush1.bf16.msra.mxu0 0
      %2994 = vmatprep.subr.bf16.mxu0 0
      %2995 = vmatpush1.bf16.msra.mxu0 0
      %2996 = vmatprep.subr.bf16.mxu0 0
      %2997 = vmatpush1.bf16.msra.mxu0 0
      %2998 = vmatprep.subr.bf16.mxu0 0
      %2999 = vmatpush1.bf16.msra.mxu0 0
      %3000 = vmatprep.mubr.bf16.mxu0 0
      %3001 = vmatmul.mubr.bf16.gmra.mrb[0].mxu0 %v2896
      %v3002 = vpop.f32.mrb[0].mxu0
      %v3003 = vadd.f32 %v2918, %v3002
      %v3004 = vpop.f32.mrb[0].mxu0
      %v3005 = vpop.f32.mrb[0].mxu0
      %v3006 = vpop.f32.mrb[0].mxu0
      %3007 = vdwg.mxu0
      %3008 = vst [vmem:[%s8] sm:$0xff] %v3003
    $region53: #{lstm_student_forward.1} parent=1 // pred_fallthru
      _
    // Predicated region
    $region54: #{lstm_student_forward.1} parent=1 // pred_check
      _
    $region55: #{lstm_student_forward.1} parent=1 // pred_check_branch
      %3010 = sbr.rel (0) target = $region57
    $region56: #{lstm_student_forward.1} parent=1 // pred_region
      _
    $region57: #{lstm_student_forward.1} parent=1 // pred_fallthru
      _
    // Predicated region
    $region58: #{lstm_student_forward.1} parent=1 // pred_check
      _
    $region59: #{lstm_student_forward.1} parent=1 // pred_check_branch
      %3012 = sbr.rel (0) target = $region61
    $region60: #{lstm_student_forward.1} parent=1 // pred_region
      _
    $region61: #{lstm_student_forward.1} parent=1 // pred_fallthru
      _
    %3013 = vsyncpa [#allocation8], 1
    %3014 = vsyncpa [#allocation10], 1

</llo_original>
